<compile_context>
chip_gen: v5e
topology: v5e:2x2
jax: 0.10.0
libtpu: 0.0.40
codegen_flags: <defaults>
</compile_context>

<pallas_src>
import numpy as np
import jax
import jax.numpy as jnp
from jax.experimental import pallas as pl
from jax.experimental.pallas import tpu as pltpu


_VMEM_LIMIT = 32 * 1024 * 1024   # safe scoped-VMEM limit on v5e/v6e/v7x; actual usage is ~2-4 MiB.


def _round_up(x, m):
    return (x + m - 1) // m * m


def _pick_tile_b(batch):
    """Samples per grid step: multiple of 8, <=64, aiming for >=2 grid steps (v7x megacore)."""
    b_al = _round_up(batch, 8)
    if b_al <= 8:
        return 8
    return min(64, _round_up((b_al + 1) // 2, 8))


# ----------------------------- Pallas kernels ------------------------------------------

def _conv1_pool_relu_kernel(x_ref, w_ref, b_ref, o_ref):
    """conv1 -> 2x2 max-pool -> +bias -> ReLU, fully in VMEM.

    x_ref: (14, tile_b, 56) f32   row-pair planar input: x_ref[u, b, r*28+c] = x[b, 2u+r, c]
    w_ref: (3, 56, 512) bf16      Toeplitz RHS; row (u, r*28+c), col = shift*128 + q*10 + oc
    b_ref: (1, 128) f32           conv1 bias tiled over the 12 pooled columns (lanes 120.. = 0)
    o_ref: (12, tile_b, 128) f32  o_ref[p, b, q*10+oc] = relu(maxpool(conv1))[b, oc, p, q]
    """
    tile_b = x_ref.shape[1]
    xv = x_ref[...]                                            # (14, tile_b, 56)
    w = w_ref[...]                                             # (3, 56, 512)

    # Pooled output row p needs input rows 2p..2p+5 = row-pairs p, p+1, p+2.
    # Accumulate one GEMM per row-pair offset u; LHS is a free slice+reshape of the input tile.
    g = None
    for u in range(3):
        piece = xv[u:u + 12].reshape(12 * tile_b, 56).astype(jnp.bfloat16)
        part = jnp.dot(piece, w[u], preferred_element_type=jnp.float32)   # (12*tile_b, 512)
        g = part if g is None else g + part

    # 2x2 max-pool == elementwise max over the four 128-lane pool-shift groups.
    y = jnp.maximum(jnp.maximum(g[:, 0:128], g[:, 128:256]),
                    jnp.maximum(g[:, 256:384], g[:, 384:512]))
    y = jnp.maximum(y + b_ref[...], 0.0)
    o_ref[...] = y.reshape(12, tile_b, 128)


def _conv2_mlp_softmax_kernel(a1_ref, w2_ref, b2_ref, wfc1_ref, bfc1_ref,
                              wfc2_ref, bfc2_ref, o_ref):
    """conv2 -> 2x2 max-pool -> +bias -> ReLU -> fc1 -> ReLU -> fc2 -> softmax, per batch tile.

    a1_ref:   (12, tile_b, 128) f32   stage-1 output (lanes 120..127 are exactly zero)
    w2_ref:   (6, 128, 512) bf16      conv2 Toeplitz RHS; col = shift*128 + Q*20 + oc
    b2_ref:   (1, 128) f32            conv2 bias tiled over the 4 pooled columns (lanes 80.. = 0)
    wfc1_ref: (4, 128, 50) bf16       fc1 weight grouped by spatial row P (lane order Q*20+oc)
    bfc1_ref: (1, 50) f32
    wfc2_ref: (50, K) bf16
    bfc2_ref: (1, K) f32
    o_ref:    (tile_b, K) f32         softmax probabilities
    """
    tile_b = a1_ref.shape[1]
    a1 = a1_ref[...]                                           # (12, tile_b, 128)
    w2 = w2_ref[...]                                           # (6, 128, 512)

    # Pooled output row P needs stage-1 rows 2P+j, j=0..5; accumulate one GEMM per j.
    g = None
    for j in range(6):
        piece = jnp.concatenate([a1[j], a1[j + 2], a1[j + 4], a1[j + 6]],
                                axis=0).astype(jnp.bfloat16)   # (4*tile_b, 128), row = P*tile_b+b
        part = jnp.dot(piece, w2[j], preferred_element_type=jnp.float32)  # (4*tile_b, 512)
        g = part if g is None else g + part

    y = jnp.maximum(jnp.maximum(g[:, 0:128], g[:, 128:256]),
                    jnp.maximum(g[:, 256:384], g[:, 384:512]))
    y = jnp.maximum(y + b2_ref[...], 0.0)                      # (4*tile_b, 128), lanes 80.. = 0
    # TODO(synk): Dropout2d / F.dropout treated as inference-mode identities.

    # fc1 over the flattened (20,4,4) activation, accumulated over the 4 spatial rows P.
    wfc1 = wfc1_ref[...]                                       # (4, 128, 50)
    h = None
    for p in range(4):
        part = jnp.dot(y[p * tile_b:(p + 1) * tile_b].astype(jnp.bfloat16), wfc1[p],
                       preferred_element_type=jnp.float32)     # (tile_b, 50)
        h = part if h is None else h + part
    h = jnp.maximum(h + bfc1_ref[...], 0.0)

    logits = jnp.dot(h.astype(jnp.bfloat16), wfc2_ref[...],
                     preferred_element_type=jnp.float32) + bfc2_ref[...]

    m = jnp.max(logits, axis=1, keepdims=True)
    e = jnp.exp(logits - m)
    o_ref[...] = e / jnp.sum(e, axis=1, keepdims=True)


# ----------------------------- pallas_call wrappers -------------------------------------

def _conv1_stage(x14, w1t, b1row, tile_b):
    _, b_pad, _ = x14.shape
    cost = pl.CostEstimate(
        flops=2 * 12 * b_pad * 168 * 512,
        transcendentals=0,
        bytes_accessed=(14 * 56 * b_pad + 12 * 128 * b_pad + 128) * 4 + 3 * 56 * 512 * 2,
    )
    return pl.pallas_call(
        _conv1_pool_relu_kernel,
        out_shape=jax.ShapeDtypeStruct((12, b_pad, 128), jnp.float32),
        grid_spec=pltpu.PrefetchScalarGridSpec(
            num_scalar_prefetch=0,
            grid=(b_pad // tile_b,),
            in_specs=[
                pl.BlockSpec((14, tile_b, 56), lambda i: (0, i, 0)),   # batch-tiled activations
                pl.BlockSpec((3, 56, 512), lambda i: (0, 0, 0)),       # grid-invariant weights
                pl.BlockSpec((1, 128), lambda i: (0, 0)),
            ],
            out_specs=pl.BlockSpec((12, tile_b, 128), lambda i: (0, i, 0)),
        ),
        compiler_params=pltpu.CompilerParams(
            dimension_semantics=("parallel",),
            vmem_limit_bytes=_VMEM_LIMIT,
        ),
        cost_estimate=cost,
    )(x14, w1t, b1row)


def _conv2_mlp_stage(a1, w2t, b2row, wfc1p, bfc1, wfc2t, bfc2, tile_b):
    _, b_pad, _ = a1.shape
    k = wfc2t.shape[1]
    cost = pl.CostEstimate(
        flops=2 * b_pad * (4 * 768 * 512 + 4 * 128 * 50 + 50 * k),
        transcendentals=b_pad * k,
        bytes_accessed=(12 * 128 * b_pad + b_pad * k + 128 + 50 + k) * 4
        + (6 * 128 * 512 + 4 * 128 * 50 + 50 * k) * 2,
    )
    return pl.pallas_call(
        _conv2_mlp_softmax_kernel,
        out_shape=jax.ShapeDtypeStruct((b_pad, k), jnp.float32),
        grid_spec=pltpu.PrefetchScalarGridSpec(
            num_scalar_prefetch=0,
            grid=(b_pad // tile_b,),
            in_specs=[
                pl.BlockSpec((12, tile_b, 128), lambda i: (0, i, 0)),  # batch-tiled activations
                pl.BlockSpec((6, 128, 512), lambda i: (0, 0, 0)),      # grid-invariant weights
                pl.BlockSpec((1, 128), lambda i: (0, 0)),
                pl.BlockSpec((4, 128, 50), lambda i: (0, 0, 0)),
                pl.BlockSpec((1, 50), lambda i: (0, 0)),
                pl.BlockSpec((50, k), lambda i: (0, 0)),
                pl.BlockSpec((1, k), lambda i: (0, 0)),
            ],
            out_specs=pl.BlockSpec((tile_b, k), lambda i: (i, 0)),
        ),
        compiler_params=pltpu.CompilerParams(
            dimension_semantics=("parallel",),
            vmem_limit_bytes=_VMEM_LIMIT,
        ),
        cost_estimate=cost,
    )(a1, w2t, b2row, wfc1p, bfc1, wfc2t, bfc2)


# ----------------------------- parameters -----------------------------------------------

def init_params(key, init_k=10):
    """Parameters in canonical PyTorch layouts (nn.Conv2d OIHW, nn.Linear (out, in))."""
    ks = jax.random.split(key, 8)
    s = 0.1
    return {
        "w_conv1": s * jax.random.normal(ks[0], (10, 1, 5, 5), jnp.float32),
        "b_conv1": s * jax.random.normal(ks[1], (10,), jnp.float32),
        "w_conv2": s * jax.random.normal(ks[2], (20, 10, 5, 5), jnp.float32),
        "b_conv2": s * jax.random.normal(ks[3], (20,), jnp.float32),
        "w_fc1": s * jax.random.normal(ks[4], (50, 320), jnp.float32),
        "b_fc1": s * jax.random.normal(ks[5], (50,), jnp.float32),
        "w_fc2": s * jax.random.normal(ks[6], (init_k, 50), jnp.float32),
        "b_fc2": s * jax.random.normal(ks[7], (init_k,), jnp.float32),
    }


def prepare_params(params):
    """One-time host-side repack of the (tiny) PyTorch weights into the fused GEMM layouts."""
    f32 = np.float32
    w1 = np.asarray(params["w_conv1"], f32)       # (10, 1, 5, 5)
    b1 = np.asarray(params["b_conv1"], f32)
    w2 = np.asarray(params["w_conv2"], f32)       # (20, 10, 5, 5)
    b2 = np.asarray(params["b_conv2"], f32)
    wfc1 = np.asarray(params["w_fc1"], f32)       # (50, 320)
    bfc1 = np.asarray(params["b_fc1"], f32)
    wfc2 = np.asarray(params["w_fc2"], f32)       # (K, 50)
    bfc2 = np.asarray(params["b_fc2"], f32)
    k_out = wfc2.shape[0]

    # conv1 fused conv+pool Toeplitz RHS (168, 512):
    #   row = j*28 + c   (j = input-row offset 0..5 within the 6-row window, c = input col)
    #   col = shift*128 + q*10 + oc   (shift = 2*di + dj of the 2x2 pool window, q = pooled col)
    w1t = np.zeros((6 * 28, 4 * 128), f32)
    for di in range(2):
        for dj in range(2):
            s = 2 * di + dj
            for q in range(12):
                for dh in range(5):
                    for dw in range(5):
                        row = (di + dh) * 28 + (2 * q + dj + dw)
                        col = s * 128 + q * 10
                        w1t[row, col:col + 10] = w1[:, 0, dh, dw]
    b1row = np.zeros((1, 128), f32)
    b1row[0, :120] = np.tile(b1, 12)

    # conv2 fused conv+pool Toeplitz RHS (768, 512):
    #   row = j*128 + c*10 + ic ; col = shift*128 + Q*20 + oc   (8 / 48 zero-pad lanes per group)
    w2t = np.zeros((6 * 128, 4 * 128), f32)
    for di in range(2):
        for dj in range(2):
            s = 2 * di + dj
            for q in range(4):
                for dh in range(5):
                    for dw in range(5):
                        row = (di + dh) * 128 + (2 * q + dj + dw) * 10
                        col = s * 128 + q * 20
                        w2t[row:row + 10, col:col + 20] = w2[:, :, dh, dw].T
    b2row = np.zeros((1, 128), f32)
    b2row[0, :80] = np.tile(b2, 4)

    # fc1: fold PyTorch's NCHW flatten (f = oc*16 + P*4 + Q) into the weight; group by spatial
    # row P with lane order Q*20 + oc to match the stage-2 activation layout; lanes 80.. are 0.
    wfc1p = np.zeros((4, 128, 50), f32)
    wr = wfc1.reshape(50, 20, 4, 4)                           # (j, oc, P, Q)
    wfc1p[:, :80, :] = np.transpose(wr, (2, 3, 1, 0)).reshape(4, 80, 50)

    return {
        "w1t": jnp.asarray(w1t.reshape(3, 56, 512), jnp.bfloat16),
        "b1row": jnp.asarray(b1row),
        "w2t": jnp.asarray(w2t.reshape(6, 128, 512), jnp.bfloat16),
        "b2row": jnp.asarray(b2row),
        "wfc1p": jnp.asarray(wfc1p, jnp.bfloat16),
        "bfc1": jnp.asarray(bfc1.reshape(1, 50)),
        "wfc2t": jnp.asarray(np.ascontiguousarray(wfc2.T), jnp.bfloat16),   # (50, K)
        "bfc2": jnp.asarray(bfc2.reshape(1, k_out)),
    }


# ----------------------------- forward ---------------------------------------------------

@jax.jit
def conv_classifier_forward(x, prep):
    """x: (B, 1, 28, 28) f32 -> softmax probabilities (B, init_k)."""
    batch = x.shape[0]
    tile_b = _pick_tile_b(batch)
    b_pad = _round_up(batch, tile_b)

    # Free row-pair view of the 28x28 image + one tiny (1x input) pad/transpose so each kernel
    # reads sample-major slabs.  No im2col / patch tensors ever hit HBM.
    x14 = x.reshape(batch, 14, 56)
    if b_pad != batch:
        x14 = jnp.pad(x14, ((0, b_pad - batch), (0, 0), (0, 0)))
    x14 = jnp.transpose(x14, (1, 0, 2))                       # (14, B_pad, 56)

    a1 = _conv1_stage(x14, prep["w1t"], prep["b1row"], tile_b)            # (12, B_pad, 128)
    out = _conv2_mlp_stage(a1, prep["w2t"], prep["b2row"], prep["wfc1p"],
                           prep["bfc1"], prep["wfc2t"], prep["bfc2"], tile_b)
    return out[:batch]


# ----------------------------- pure-JAX reference (for correctness check) ---------------

def reference_forward(x, params):
    def conv(z, w, b):
        y = jax.lax.conv_general_dilated(
            z, w, window_strides=(1, 1), padding="VALID",
            dimension_numbers=("NCHW", "OIHW", "NCHW"))
        return y + b[None, :, None, None]

    def max_pool2(z):
        return jax.lax.reduce_window(
            z, -jnp.inf, jax.lax.max,
            window_dimensions=(1, 1, 2, 2), window_strides=(1, 1, 2, 2), padding="VALID")

    y = jax.nn.relu(max_pool2(conv(x, params["w_conv1"], params["b_conv1"])))
    y = jax.nn.relu(max_pool2(conv(y, params["w_conv2"], params["b_conv2"])))
    y = y.reshape(y.shape[0], -1)                             # NCHW flatten -> (B, 320)
    h = jax.nn.relu(y @ params["w_fc1"].T + params["b_fc1"])
    logits = h @ params["w_fc2"].T + params["b_fc2"]
    return jax.nn.softmax(logits, axis=1)


if __name__ == "__main__":
    key = jax.random.PRNGKey(0)
    k_x, k_p = jax.random.split(key)
    init_k = 10  # hparams.init_k

    # The 320-wide flatten (20 * 4 * 4) implies 28x28 single-channel inputs (MNIST-style).
    x = jax.random.normal(k_x, (2, 1, 28, 28), dtype=jnp.float32)
    params = init_params(k_p, init_k=init_k)
    prep = prepare_params(params)

    out = jax.block_until_ready(conv_classifier_forward(x, prep))

    assert out.shape == (2, init_k), out.shape
    assert bool(jnp.all(jnp.isfinite(out)))
    # softmax rows should sum to ~1 (exact divide -> tight)
    assert bool(jnp.all(jnp.abs(jnp.sum(out, axis=1) - 1.0) < 1e-3))
    # compare against a pure-JAX f32 reference (bf16 MXU operands -> loose tolerance)
    ref = reference_forward(x, params)
    max_err = float(jnp.max(jnp.abs(out - ref)))
    assert max_err < 2e-2, max_err
    print("KERNEL_OK")
</pallas_src>

<mosaic_0001>
module attributes {stable_mosaic.version = 11 : i64} {
  func.func @_conv2_mlp_softmax_kernel(%arg0: i32, %arg1: memref<12x8x128xf32, #tpu.memory_space<vmem>>, %arg2: memref<6x128x512xbf16, #tpu.memory_space<vmem>>, %arg3: memref<1x128xf32, #tpu.memory_space<vmem>>, %arg4: memref<4x128x50xbf16, #tpu.memory_space<vmem>>, %arg5: memref<1x50xf32, #tpu.memory_space<vmem>>, %arg6: memref<50x10xbf16, #tpu.memory_space<vmem>>, %arg7: memref<1x10xf32, #tpu.memory_space<vmem>>, %arg8: memref<8x10xf32, #tpu.memory_space<vmem>>) attributes {dimension_semantics = [#tpu.dimension_semantics<parallel>], iteration_bounds = array<i64: 1>, scalar_prefetch = 0 : i64, scratch_operands = 0 : i64, tpu.core_type = #tpu.core_type<tc>, window_params = [{transform_indices = @transform_0, window_bounds = array<i64: 12, 8, 128>}, {pipeline_mode = #tpu.pipeline_mode<synchronous>, transform_indices = @transform_1, window_bounds = array<i64: 6, 128, 512>}, {pipeline_mode = #tpu.pipeline_mode<synchronous>, transform_indices = @transform_2, window_bounds = array<i64: 1, 128>}, {pipeline_mode = #tpu.pipeline_mode<synchronous>, transform_indices = @transform_3, window_bounds = array<i64: 4, 128, 50>}, {pipeline_mode = #tpu.pipeline_mode<synchronous>, transform_indices = @transform_4, window_bounds = array<i64: 1, 50>}, {pipeline_mode = #tpu.pipeline_mode<synchronous>, transform_indices = @transform_5, window_bounds = array<i64: 50, 10>}, {pipeline_mode = #tpu.pipeline_mode<synchronous>, transform_indices = @transform_6, window_bounds = array<i64: 1, 10>}, {transform_indices = @transform_7, window_bounds = array<i64: 8, 10>}]} {
    %c0 = arith.constant 0 : index
    %c0_0 = arith.constant 0 : index
    %c0_1 = arith.constant 0 : index
    %0 = vector.load %arg1[%c0, %c0_0, %c0_1] : memref<12x8x128xf32, #tpu.memory_space<vmem>>, vector<12x8x128xf32>
    %c0_2 = arith.constant 0 : index
    %c0_3 = arith.constant 0 : index
    %c0_4 = arith.constant 0 : index
    %1 = vector.load %arg2[%c0_2, %c0_3, %c0_4] : memref<6x128x512xbf16, #tpu.memory_space<vmem>>, vector<6x128x512xbf16>
    %2 = vector.extract_strided_slice %0 {offsets = [0, 0, 0], sizes = [1, 8, 128], strides = [1, 1, 1]} : vector<12x8x128xf32> to vector<1x8x128xf32>
    %3 = vector.shape_cast %2 : vector<1x8x128xf32> to vector<8x128xf32>
    %4 = vector.extract_strided_slice %0 {offsets = [2, 0, 0], sizes = [1, 8, 128], strides = [1, 1, 1]} : vector<12x8x128xf32> to vector<1x8x128xf32>
    %5 = vector.shape_cast %4 : vector<1x8x128xf32> to vector<8x128xf32>
    %6 = vector.extract_strided_slice %0 {offsets = [4, 0, 0], sizes = [1, 8, 128], strides = [1, 1, 1]} : vector<12x8x128xf32> to vector<1x8x128xf32>
    %7 = vector.shape_cast %6 : vector<1x8x128xf32> to vector<8x128xf32>
    %8 = vector.extract_strided_slice %0 {offsets = [6, 0, 0], sizes = [1, 8, 128], strides = [1, 1, 1]} : vector<12x8x128xf32> to vector<1x8x128xf32>
    %9 = vector.shape_cast %8 : vector<1x8x128xf32> to vector<8x128xf32>
    %10 = tpu.concatenate %3, %5, %7, %9 in 0 : vector<8x128xf32>, vector<8x128xf32>, vector<8x128xf32>, vector<8x128xf32> -> vector<32x128xf32>
    %11 = arith.truncf %10 : vector<32x128xf32> to vector<32x128xbf16>
    %12 = vector.extract_strided_slice %1 {offsets = [0, 0, 0], sizes = [1, 128, 512], strides = [1, 1, 1]} : vector<6x128x512xbf16> to vector<1x128x512xbf16>
    %13 = vector.shape_cast %12 : vector<1x128x512xbf16> to vector<128x512xbf16>
    %cst = arith.constant dense<0.000000e+00> : vector<32x512xf32>
    %14 = tpu.matmul %11, %13, %cst {dimension_numbers = #tpu.dot_dimension_numbers<[1], [0], [0], [1], [0, 0, 1, 1], [], []>} : vector<32x128xbf16>, vector<128x512xbf16>, vector<32x512xf32> -> vector<32x512xf32>
    %15 = vector.extract_strided_slice %0 {offsets = [1, 0, 0], sizes = [1, 8, 128], strides = [1, 1, 1]} : vector<12x8x128xf32> to vector<1x8x128xf32>
    %16 = vector.shape_cast %15 : vector<1x8x128xf32> to vector<8x128xf32>
    %17 = vector.extract_strided_slice %0 {offsets = [3, 0, 0], sizes = [1, 8, 128], strides = [1, 1, 1]} : vector<12x8x128xf32> to vector<1x8x128xf32>
    %18 = vector.shape_cast %17 : vector<1x8x128xf32> to vector<8x128xf32>
    %19 = vector.extract_strided_slice %0 {offsets = [5, 0, 0], sizes = [1, 8, 128], strides = [1, 1, 1]} : vector<12x8x128xf32> to vector<1x8x128xf32>
    %20 = vector.shape_cast %19 : vector<1x8x128xf32> to vector<8x128xf32>
    %21 = vector.extract_strided_slice %0 {offsets = [7, 0, 0], sizes = [1, 8, 128], strides = [1, 1, 1]} : vector<12x8x128xf32> to vector<1x8x128xf32>
    %22 = vector.shape_cast %21 : vector<1x8x128xf32> to vector<8x128xf32>
    %23 = tpu.concatenate %16, %18, %20, %22 in 0 : vector<8x128xf32>, vector<8x128xf32>, vector<8x128xf32>, vector<8x128xf32> -> vector<32x128xf32>
    %24 = arith.truncf %23 : vector<32x128xf32> to vector<32x128xbf16>
    %25 = vector.extract_strided_slice %1 {offsets = [1, 0, 0], sizes = [1, 128, 512], strides = [1, 1, 1]} : vector<6x128x512xbf16> to vector<1x128x512xbf16>
    %26 = vector.shape_cast %25 : vector<1x128x512xbf16> to vector<128x512xbf16>
    %cst_5 = arith.constant dense<0.000000e+00> : vector<32x512xf32>
    %27 = tpu.matmul %24, %26, %cst_5 {dimension_numbers = #tpu.dot_dimension_numbers<[1], [0], [0], [1], [0, 0, 1, 1], [], []>} : vector<32x128xbf16>, vector<128x512xbf16>, vector<32x512xf32> -> vector<32x512xf32>
    %28 = arith.addf %14, %27 : vector<32x512xf32>
    %29 = vector.extract_strided_slice %0 {offsets = [2, 0, 0], sizes = [1, 8, 128], strides = [1, 1, 1]} : vector<12x8x128xf32> to vector<1x8x128xf32>
    %30 = vector.shape_cast %29 : vector<1x8x128xf32> to vector<8x128xf32>
    %31 = vector.extract_strided_slice %0 {offsets = [4, 0, 0], sizes = [1, 8, 128], strides = [1, 1, 1]} : vector<12x8x128xf32> to vector<1x8x128xf32>
    %32 = vector.shape_cast %31 : vector<1x8x128xf32> to vector<8x128xf32>
    %33 = vector.extract_strided_slice %0 {offsets = [6, 0, 0], sizes = [1, 8, 128], strides = [1, 1, 1]} : vector<12x8x128xf32> to vector<1x8x128xf32>
    %34 = vector.shape_cast %33 : vector<1x8x128xf32> to vector<8x128xf32>
    %35 = vector.extract_strided_slice %0 {offsets = [8, 0, 0], sizes = [1, 8, 128], strides = [1, 1, 1]} : vector<12x8x128xf32> to vector<1x8x128xf32>
    %36 = vector.shape_cast %35 : vector<1x8x128xf32> to vector<8x128xf32>
    %37 = tpu.concatenate %30, %32, %34, %36 in 0 : vector<8x128xf32>, vector<8x128xf32>, vector<8x128xf32>, vector<8x128xf32> -> vector<32x128xf32>
    %38 = arith.truncf %37 : vector<32x128xf32> to vector<32x128xbf16>
    %39 = vector.extract_strided_slice %1 {offsets = [2, 0, 0], sizes = [1, 128, 512], strides = [1, 1, 1]} : vector<6x128x512xbf16> to vector<1x128x512xbf16>
    %40 = vector.shape_cast %39 : vector<1x128x512xbf16> to vector<128x512xbf16>
    %cst_6 = arith.constant dense<0.000000e+00> : vector<32x512xf32>
    %41 = tpu.matmul %38, %40, %cst_6 {dimension_numbers = #tpu.dot_dimension_numbers<[1], [0], [0], [1], [0, 0, 1, 1], [], []>} : vector<32x128xbf16>, vector<128x512xbf16>, vector<32x512xf32> -> vector<32x512xf32>
    %42 = arith.addf %28, %41 : vector<32x512xf32>
    %43 = vector.extract_strided_slice %0 {offsets = [3, 0, 0], sizes = [1, 8, 128], strides = [1, 1, 1]} : vector<12x8x128xf32> to vector<1x8x128xf32>
    %44 = vector.shape_cast %43 : vector<1x8x128xf32> to vector<8x128xf32>
    %45 = vector.extract_strided_slice %0 {offsets = [5, 0, 0], sizes = [1, 8, 128], strides = [1, 1, 1]} : vector<12x8x128xf32> to vector<1x8x128xf32>
    %46 = vector.shape_cast %45 : vector<1x8x128xf32> to vector<8x128xf32>
    %47 = vector.extract_strided_slice %0 {offsets = [7, 0, 0], sizes = [1, 8, 128], strides = [1, 1, 1]} : vector<12x8x128xf32> to vector<1x8x128xf32>
    %48 = vector.shape_cast %47 : vector<1x8x128xf32> to vector<8x128xf32>
    %49 = vector.extract_strided_slice %0 {offsets = [9, 0, 0], sizes = [1, 8, 128], strides = [1, 1, 1]} : vector<12x8x128xf32> to vector<1x8x128xf32>
    %50 = vector.shape_cast %49 : vector<1x8x128xf32> to vector<8x128xf32>
    %51 = tpu.concatenate %44, %46, %48, %50 in 0 : vector<8x128xf32>, vector<8x128xf32>, vector<8x128xf32>, vector<8x128xf32> -> vector<32x128xf32>
    %52 = arith.truncf %51 : vector<32x128xf32> to vector<32x128xbf16>
    %53 = vector.extract_strided_slice %1 {offsets = [3, 0, 0], sizes = [1, 128, 512], strides = [1, 1, 1]} : vector<6x128x512xbf16> to vector<1x128x512xbf16>
    %54 = vector.shape_cast %53 : vector<1x128x512xbf16> to vector<128x512xbf16>
    %cst_7 = arith.constant dense<0.000000e+00> : vector<32x512xf32>
    %55 = tpu.matmul %52, %54, %cst_7 {dimension_numbers = #tpu.dot_dimension_numbers<[1], [0], [0], [1], [0, 0, 1, 1], [], []>} : vector<32x128xbf16>, vector<128x512xbf16>, vector<32x512xf32> -> vector<32x512xf32>
    %56 = arith.addf %42, %55 : vector<32x512xf32>
    %57 = vector.extract_strided_slice %0 {offsets = [4, 0, 0], sizes = [1, 8, 128], strides = [1, 1, 1]} : vector<12x8x128xf32> to vector<1x8x128xf32>
    %58 = vector.shape_cast %57 : vector<1x8x128xf32> to vector<8x128xf32>
    %59 = vector.extract_strided_slice %0 {offsets = [6, 0, 0], sizes = [1, 8, 128], strides = [1, 1, 1]} : vector<12x8x128xf32> to vector<1x8x128xf32>
    %60 = vector.shape_cast %59 : vector<1x8x128xf32> to vector<8x128xf32>
    %61 = vector.extract_strided_slice %0 {offsets = [8, 0, 0], sizes = [1, 8, 128], strides = [1, 1, 1]} : vector<12x8x128xf32> to vector<1x8x128xf32>
    %62 = vector.shape_cast %61 : vector<1x8x128xf32> to vector<8x128xf32>
    %63 = vector.extract_strided_slice %0 {offsets = [10, 0, 0], sizes = [1, 8, 128], strides = [1, 1, 1]} : vector<12x8x128xf32> to vector<1x8x128xf32>
    %64 = vector.shape_cast %63 : vector<1x8x128xf32> to vector<8x128xf32>
    %65 = tpu.concatenate %58, %60, %62, %64 in 0 : vector<8x128xf32>, vector<8x128xf32>, vector<8x128xf32>, vector<8x128xf32> -> vector<32x128xf32>
    %66 = arith.truncf %65 : vector<32x128xf32> to vector<32x128xbf16>
    %67 = vector.extract_strided_slice %1 {offsets = [4, 0, 0], sizes = [1, 128, 512], strides = [1, 1, 1]} : vector<6x128x512xbf16> to vector<1x128x512xbf16>
    %68 = vector.shape_cast %67 : vector<1x128x512xbf16> to vector<128x512xbf16>
    %cst_8 = arith.constant dense<0.000000e+00> : vector<32x512xf32>
    %69 = tpu.matmul %66, %68, %cst_8 {dimension_numbers = #tpu.dot_dimension_numbers<[1], [0], [0], [1], [0, 0, 1, 1], [], []>} : vector<32x128xbf16>, vector<128x512xbf16>, vector<32x512xf32> -> vector<32x512xf32>
    %70 = arith.addf %56, %69 : vector<32x512xf32>
    %71 = vector.extract_strided_slice %0 {offsets = [5, 0, 0], sizes = [1, 8, 128], strides = [1, 1, 1]} : vector<12x8x128xf32> to vector<1x8x128xf32>
    %72 = vector.shape_cast %71 : vector<1x8x128xf32> to vector<8x128xf32>
    %73 = vector.extract_strided_slice %0 {offsets = [7, 0, 0], sizes = [1, 8, 128], strides = [1, 1, 1]} : vector<12x8x128xf32> to vector<1x8x128xf32>
    %74 = vector.shape_cast %73 : vector<1x8x128xf32> to vector<8x128xf32>
    %75 = vector.extract_strided_slice %0 {offsets = [9, 0, 0], sizes = [1, 8, 128], strides = [1, 1, 1]} : vector<12x8x128xf32> to vector<1x8x128xf32>
    %76 = vector.shape_cast %75 : vector<1x8x128xf32> to vector<8x128xf32>
    %77 = vector.extract_strided_slice %0 {offsets = [11, 0, 0], sizes = [1, 8, 128], strides = [1, 1, 1]} : vector<12x8x128xf32> to vector<1x8x128xf32>
    %78 = vector.shape_cast %77 : vector<1x8x128xf32> to vector<8x128xf32>
    %79 = tpu.concatenate %72, %74, %76, %78 in 0 : vector<8x128xf32>, vector<8x128xf32>, vector<8x128xf32>, vector<8x128xf32> -> vector<32x128xf32>
    %80 = arith.truncf %79 : vector<32x128xf32> to vector<32x128xbf16>
    %81 = vector.extract_strided_slice %1 {offsets = [5, 0, 0], sizes = [1, 128, 512], strides = [1, 1, 1]} : vector<6x128x512xbf16> to vector<1x128x512xbf16>
    %82 = vector.shape_cast %81 : vector<1x128x512xbf16> to vector<128x512xbf16>
    %cst_9 = arith.constant dense<0.000000e+00> : vector<32x512xf32>
    %83 = tpu.matmul %80, %82, %cst_9 {dimension_numbers = #tpu.dot_dimension_numbers<[1], [0], [0], [1], [0, 0, 1, 1], [], []>} : vector<32x128xbf16>, vector<128x512xbf16>, vector<32x512xf32> -> vector<32x512xf32>
    %84 = arith.addf %70, %83 : vector<32x512xf32>
    %85 = vector.extract_strided_slice %84 {offsets = [0, 0], sizes = [32, 128], strides = [1, 1]} : vector<32x512xf32> to vector<32x128xf32>
    %86 = vector.extract_strided_slice %84 {offsets = [0, 128], sizes = [32, 128], strides = [1, 1]} : vector<32x512xf32> to vector<32x128xf32>
    %87 = arith.maximumf %85, %86 : vector<32x128xf32>
    %88 = vector.extract_strided_slice %84 {offsets = [0, 256], sizes = [32, 128], strides = [1, 1]} : vector<32x512xf32> to vector<32x128xf32>
    %89 = vector.extract_strided_slice %84 {offsets = [0, 384], sizes = [32, 128], strides = [1, 1]} : vector<32x512xf32> to vector<32x128xf32>
    %90 = arith.maximumf %88, %89 : vector<32x128xf32>
    %91 = arith.maximumf %87, %90 : vector<32x128xf32>
    %c0_10 = arith.constant 0 : index
    %c0_11 = arith.constant 0 : index
    %92 = vector.load %arg3[%c0_10, %c0_11] : memref<1x128xf32, #tpu.memory_space<vmem>>, vector<1x128xf32>
    %93 = vector.broadcast %92 : vector<1x128xf32> to vector<32x128xf32>
    %94 = arith.addf %91, %93 : vector<32x128xf32>
    %cst_12 = arith.constant 0.000000e+00 : f32
    %95 = vector.broadcast %cst_12 : f32 to vector<32x128xf32>
    %96 = arith.maximumf %94, %95 : vector<32x128xf32>
    %c0_13 = arith.constant 0 : index
    %c0_14 = arith.constant 0 : index
    %c0_15 = arith.constant 0 : index
    %97 = vector.load %arg4[%c0_13, %c0_14, %c0_15] : memref<4x128x50xbf16, #tpu.memory_space<vmem>>, vector<4x128x50xbf16>
    %98 = vector.extract_strided_slice %96 {offsets = [0, 0], sizes = [8, 128], strides = [1, 1]} : vector<32x128xf32> to vector<8x128xf32>
    %99 = arith.truncf %98 : vector<8x128xf32> to vector<8x128xbf16>
    %100 = vector.extract_strided_slice %97 {offsets = [0, 0, 0], sizes = [1, 128, 50], strides = [1, 1, 1]} : vector<4x128x50xbf16> to vector<1x128x50xbf16>
    %101 = vector.shape_cast %100 : vector<1x128x50xbf16> to vector<128x50xbf16>
    %cst_16 = arith.constant dense<0.000000e+00> : vector<8x50xf32>
    %102 = tpu.matmul %99, %101, %cst_16 {dimension_numbers = #tpu.dot_dimension_numbers<[1], [0], [0], [1], [0, 0, 1, 1], [], []>} : vector<8x128xbf16>, vector<128x50xbf16>, vector<8x50xf32> -> vector<8x50xf32>
    %103 = vector.extract_strided_slice %96 {offsets = [8, 0], sizes = [8, 128], strides = [1, 1]} : vector<32x128xf32> to vector<8x128xf32>
    %104 = arith.truncf %103 : vector<8x128xf32> to vector<8x128xbf16>
    %105 = vector.extract_strided_slice %97 {offsets = [1, 0, 0], sizes = [1, 128, 50], strides = [1, 1, 1]} : vector<4x128x50xbf16> to vector<1x128x50xbf16>
    %106 = vector.shape_cast %105 : vector<1x128x50xbf16> to vector<128x50xbf16>
    %cst_17 = arith.constant dense<0.000000e+00> : vector<8x50xf32>
    %107 = tpu.matmul %104, %106, %cst_17 {dimension_numbers = #tpu.dot_dimension_numbers<[1], [0], [0], [1], [0, 0, 1, 1], [], []>} : vector<8x128xbf16>, vector<128x50xbf16>, vector<8x50xf32> -> vector<8x50xf32>
    %108 = arith.addf %102, %107 : vector<8x50xf32>
    %109 = vector.extract_strided_slice %96 {offsets = [16, 0], sizes = [8, 128], strides = [1, 1]} : vector<32x128xf32> to vector<8x128xf32>
    %110 = arith.truncf %109 : vector<8x128xf32> to vector<8x128xbf16>
    %111 = vector.extract_strided_slice %97 {offsets = [2, 0, 0], sizes = [1, 128, 50], strides = [1, 1, 1]} : vector<4x128x50xbf16> to vector<1x128x50xbf16>
    %112 = vector.shape_cast %111 : vector<1x128x50xbf16> to vector<128x50xbf16>
    %cst_18 = arith.constant dense<0.000000e+00> : vector<8x50xf32>
    %113 = tpu.matmul %110, %112, %cst_18 {dimension_numbers = #tpu.dot_dimension_numbers<[1], [0], [0], [1], [0, 0, 1, 1], [], []>} : vector<8x128xbf16>, vector<128x50xbf16>, vector<8x50xf32> -> vector<8x50xf32>
    %114 = arith.addf %108, %113 : vector<8x50xf32>
    %115 = vector.extract_strided_slice %96 {offsets = [24, 0], sizes = [8, 128], strides = [1, 1]} : vector<32x128xf32> to vector<8x128xf32>
    %116 = arith.truncf %115 : vector<8x128xf32> to vector<8x128xbf16>
    %117 = vector.extract_strided_slice %97 {offsets = [3, 0, 0], sizes = [1, 128, 50], strides = [1, 1, 1]} : vector<4x128x50xbf16> to vector<1x128x50xbf16>
    %118 = vector.shape_cast %117 : vector<1x128x50xbf16> to vector<128x50xbf16>
    %cst_19 = arith.constant dense<0.000000e+00> : vector<8x50xf32>
    %119 = tpu.matmul %116, %118, %cst_19 {dimension_numbers = #tpu.dot_dimension_numbers<[1], [0], [0], [1], [0, 0, 1, 1], [], []>} : vector<8x128xbf16>, vector<128x50xbf16>, vector<8x50xf32> -> vector<8x50xf32>
    %120 = arith.addf %114, %119 : vector<8x50xf32>
    %c0_20 = arith.constant 0 : index
    %c0_21 = arith.constant 0 : index
    %121 = vector.load %arg5[%c0_20, %c0_21] : memref<1x50xf32, #tpu.memory_space<vmem>>, vector<1x50xf32>
    %122 = vector.broadcast %121 : vector<1x50xf32> to vector<8x50xf32>
    %123 = arith.addf %120, %122 : vector<8x50xf32>
    %cst_22 = arith.constant 0.000000e+00 : f32
    %124 = vector.broadcast %cst_22 : f32 to vector<8x50xf32>
    %125 = arith.maximumf %123, %124 : vector<8x50xf32>
    %126 = arith.truncf %125 : vector<8x50xf32> to vector<8x50xbf16>
    %c0_23 = arith.constant 0 : index
    %c0_24 = arith.constant 0 : index
    %127 = vector.load %arg6[%c0_23, %c0_24] : memref<50x10xbf16, #tpu.memory_space<vmem>>, vector<50x10xbf16>
    %cst_25 = arith.constant dense<0.000000e+00> : vector<8x10xf32>
    %128 = tpu.matmul %126, %127, %cst_25 {dimension_numbers = #tpu.dot_dimension_numbers<[1], [0], [0], [1], [0, 0, 1, 1], [], []>} : vector<8x50xbf16>, vector<50x10xbf16>, vector<8x10xf32> -> vector<8x10xf32>
    %c0_26 = arith.constant 0 : index
    %c0_27 = arith.constant 0 : index
    %129 = vector.load %arg7[%c0_26, %c0_27] : memref<1x10xf32, #tpu.memory_space<vmem>>, vector<1x10xf32>
    %130 = vector.broadcast %129 : vector<1x10xf32> to vector<8x10xf32>
    %131 = arith.addf %128, %130 : vector<8x10xf32>
    %cst_28 = arith.constant dense<0xFF800000> : vector<8xf32>
    %132 = vector.multi_reduction <maximumf>, %131, %cst_28 [1] : vector<8x10xf32> to vector<8xf32>
    %133 = vector.shape_cast %132 : vector<8xf32> to vector<8x1xf32>
    %134 = vector.broadcast %133 : vector<8x1xf32> to vector<8x10xf32>
    %135 = arith.subf %131, %134 : vector<8x10xf32>
    %136 = math.exp %135 : vector<8x10xf32>
    %cst_29 = arith.constant dense<0.000000e+00> : vector<8xf32>
    %137 = vector.multi_reduction <add>, %136, %cst_29 [1] : vector<8x10xf32> to vector<8xf32>
    %138 = vector.shape_cast %137 : vector<8xf32> to vector<8x1xf32>
    %139 = vector.broadcast %138 : vector<8x1xf32> to vector<8x10xf32>
    %140 = arith.divf %136, %139 : vector<8x10xf32>
    %c0_30 = arith.constant 0 : index
    %c0_31 = arith.constant 0 : index
    %141 = vector.load %arg8[%c0_30, %c0_31] : memref<8x10xf32, #tpu.memory_space<vmem>>, vector<8x10xf32>
    tpu.vector_store %arg8[%c0_30, %c0_31], %140 {strides = array<i32>} : memref<8x10xf32, #tpu.memory_space<vmem>>, vector<8x10xf32>,
    return
  }
  func.func @transform_0(%arg0: i32) -> (i32, i32, i32) {
    %c0_i32 = arith.constant 0 : i32
    %c0_i32_0 = arith.constant 0 : i32
    %c0_i32_1 = arith.constant 0 : i32
    return %c0_i32, %arg0, %c0_i32_0 : i32, i32, i32
  }
  func.func @transform_1(%arg0: i32) -> (i32, i32, i32) {
    %c0_i32 = arith.constant 0 : i32
    %c0_i32_0 = arith.constant 0 : i32
    %c0_i32_1 = arith.constant 0 : i32
    %c0_i32_2 = arith.constant 0 : i32
    return %c0_i32, %c0_i32_0, %c0_i32_1 : i32, i32, i32
  }
  func.func @transform_2(%arg0: i32) -> (i32, i32) {
    %c0_i32 = arith.constant 0 : i32
    %c0_i32_0 = arith.constant 0 : i32
    %c0_i32_1 = arith.constant 0 : i32
    return %c0_i32, %c0_i32_0 : i32, i32
  }
  func.func @transform_3(%arg0: i32) -> (i32, i32, i32) {
    %c0_i32 = arith.constant 0 : i32
    %c0_i32_0 = arith.constant 0 : i32
    %c0_i32_1 = arith.constant 0 : i32
    %c0_i32_2 = arith.constant 0 : i32
    return %c0_i32, %c0_i32_0, %c0_i32_1 : i32, i32, i32
  }
  func.func @transform_4(%arg0: i32) -> (i32, i32) {
    %c0_i32 = arith.constant 0 : i32
    %c0_i32_0 = arith.constant 0 : i32
    %c0_i32_1 = arith.constant 0 : i32
    return %c0_i32, %c0_i32_0 : i32, i32
  }
  func.func @transform_5(%arg0: i32) -> (i32, i32) {
    %c0_i32 = arith.constant 0 : i32
    %c0_i32_0 = arith.constant 0 : i32
    %c0_i32_1 = arith.constant 0 : i32
    return %c0_i32, %c0_i32_0 : i32, i32
  }
  func.func @transform_6(%arg0: i32) -> (i32, i32) {
    %c0_i32 = arith.constant 0 : i32
    %c0_i32_0 = arith.constant 0 : i32
    %c0_i32_1 = arith.constant 0 : i32
    return %c0_i32, %c0_i32_0 : i32, i32
  }
  func.func @transform_7(%arg0: i32) -> (i32, i32) {
    %c0_i32 = arith.constant 0 : i32
    %c0_i32_0 = arith.constant 0 : i32
    return %arg0, %c0_i32 : i32, i32
  }
}

module attributes {stable_mosaic.version = 11 : i64} {
  func.func @_conv1_pool_relu_kernel(%arg0: i32, %arg1: memref<14x8x56xf32, #tpu.memory_space<vmem>>, %arg2: memref<3x56x512xbf16, #tpu.memory_space<vmem>>, %arg3: memref<1x128xf32, #tpu.memory_space<vmem>>, %arg4: memref<12x8x128xf32, #tpu.memory_space<vmem>>) attributes {dimension_semantics = [#tpu.dimension_semantics<parallel>], iteration_bounds = array<i64: 1>, scalar_prefetch = 0 : i64, scratch_operands = 0 : i64, tpu.core_type = #tpu.core_type<tc>, window_params = [{transform_indices = @transform_0, window_bounds = array<i64: 14, 8, 56>}, {pipeline_mode = #tpu.pipeline_mode<synchronous>, transform_indices = @transform_1, window_bounds = array<i64: 3, 56, 512>}, {pipeline_mode = #tpu.pipeline_mode<synchronous>, transform_indices = @transform_2, window_bounds = array<i64: 1, 128>}, {transform_indices = @transform_3, window_bounds = array<i64: 12, 8, 128>}]} {
    %c0 = arith.constant 0 : index
    %c0_0 = arith.constant 0 : index
    %c0_1 = arith.constant 0 : index
    %0 = vector.load %arg1[%c0, %c0_0, %c0_1] : memref<14x8x56xf32, #tpu.memory_space<vmem>>, vector<14x8x56xf32>
    %c0_2 = arith.constant 0 : index
    %c0_3 = arith.constant 0 : index
    %c0_4 = arith.constant 0 : index
    %1 = vector.load %arg2[%c0_2, %c0_3, %c0_4] : memref<3x56x512xbf16, #tpu.memory_space<vmem>>, vector<3x56x512xbf16>
    %2 = vector.extract_strided_slice %0 {offsets = [0, 0, 0], sizes = [12, 8, 56], strides = [1, 1, 1]} : vector<14x8x56xf32> to vector<12x8x56xf32>
    %3 = vector.shape_cast %2 : vector<12x8x56xf32> to vector<96x56xf32>
    %4 = arith.truncf %3 : vector<96x56xf32> to vector<96x56xbf16>
    %5 = vector.extract_strided_slice %1 {offsets = [0, 0, 0], sizes = [1, 56, 512], strides = [1, 1, 1]} : vector<3x56x512xbf16> to vector<1x56x512xbf16>
    %6 = vector.shape_cast %5 : vector<1x56x512xbf16> to vector<56x512xbf16>
    %cst = arith.constant dense<0.000000e+00> : vector<96x512xf32>
    %7 = tpu.matmul %4, %6, %cst {dimension_numbers = #tpu.dot_dimension_numbers<[1], [0], [0], [1], [0, 0, 1, 1], [], []>} : vector<96x56xbf16>, vector<56x512xbf16>, vector<96x512xf32> -> vector<96x512xf32>
    %8 = vector.extract_strided_slice %0 {offsets = [1, 0, 0], sizes = [12, 8, 56], strides = [1, 1, 1]} : vector<14x8x56xf32> to vector<12x8x56xf32>
    %9 = vector.shape_cast %8 : vector<12x8x56xf32> to vector<96x56xf32>
    %10 = arith.truncf %9 : vector<96x56xf32> to vector<96x56xbf16>
    %11 = vector.extract_strided_slice %1 {offsets = [1, 0, 0], sizes = [1, 56, 512], strides = [1, 1, 1]} : vector<3x56x512xbf16> to vector<1x56x512xbf16>
    %12 = vector.shape_cast %11 : vector<1x56x512xbf16> to vector<56x512xbf16>
    %cst_5 = arith.constant dense<0.000000e+00> : vector<96x512xf32>
    %13 = tpu.matmul %10, %12, %cst_5 {dimension_numbers = #tpu.dot_dimension_numbers<[1], [0], [0], [1], [0, 0, 1, 1], [], []>} : vector<96x56xbf16>, vector<56x512xbf16>, vector<96x512xf32> -> vector<96x512xf32>
    %14 = arith.addf %7, %13 : vector<96x512xf32>
    %15 = vector.extract_strided_slice %0 {offsets = [2, 0, 0], sizes = [12, 8, 56], strides = [1, 1, 1]} : vector<14x8x56xf32> to vector<12x8x56xf32>
    %16 = vector.shape_cast %15 : vector<12x8x56xf32> to vector<96x56xf32>
    %17 = arith.truncf %16 : vector<96x56xf32> to vector<96x56xbf16>
    %18 = vector.extract_strided_slice %1 {offsets = [2, 0, 0], sizes = [1, 56, 512], strides = [1, 1, 1]} : vector<3x56x512xbf16> to vector<1x56x512xbf16>
    %19 = vector.shape_cast %18 : vector<1x56x512xbf16> to vector<56x512xbf16>
    %cst_6 = arith.constant dense<0.000000e+00> : vector<96x512xf32>
    %20 = tpu.matmul %17, %19, %cst_6 {dimension_numbers = #tpu.dot_dimension_numbers<[1], [0], [0], [1], [0, 0, 1, 1], [], []>} : vector<96x56xbf16>, vector<56x512xbf16>, vector<96x512xf32> -> vector<96x512xf32>
    %21 = arith.addf %14, %20 : vector<96x512xf32>
    %22 = vector.extract_strided_slice %21 {offsets = [0, 0], sizes = [96, 128], strides = [1, 1]} : vector<96x512xf32> to vector<96x128xf32>
    %23 = vector.extract_strided_slice %21 {offsets = [0, 128], sizes = [96, 128], strides = [1, 1]} : vector<96x512xf32> to vector<96x128xf32>
    %24 = arith.maximumf %22, %23 : vector<96x128xf32>
    %25 = vector.extract_strided_slice %21 {offsets = [0, 256], sizes = [96, 128], strides = [1, 1]} : vector<96x512xf32> to vector<96x128xf32>
    %26 = vector.extract_strided_slice %21 {offsets = [0, 384], sizes = [96, 128], strides = [1, 1]} : vector<96x512xf32> to vector<96x128xf32>
    %27 = arith.maximumf %25, %26 : vector<96x128xf32>
    %28 = arith.maximumf %24, %27 : vector<96x128xf32>
    %c0_7 = arith.constant 0 : index
    %c0_8 = arith.constant 0 : index
    %29 = vector.load %arg3[%c0_7, %c0_8] : memref<1x128xf32, #tpu.memory_space<vmem>>, vector<1x128xf32>
    %30 = vector.broadcast %29 : vector<1x128xf32> to vector<96x128xf32>
    %31 = arith.addf %28, %30 : vector<96x128xf32>
    %cst_9 = arith.constant 0.000000e+00 : f32
    %32 = vector.broadcast %cst_9 : f32 to vector<96x128xf32>
    %33 = arith.maximumf %31, %32 : vector<96x128xf32>
    %34 = vector.shape_cast %33 : vector<96x128xf32> to vector<12x8x128xf32>
    %c0_10 = arith.constant 0 : index
    %c0_11 = arith.constant 0 : index
    %c0_12 = arith.constant 0 : index
    %35 = vector.load %arg4[%c0_10, %c0_11, %c0_12] : memref<12x8x128xf32, #tpu.memory_space<vmem>>, vector<12x8x128xf32>
    tpu.vector_store %arg4[%c0_10, %c0_11, %c0_12], %34 {strides = array<i32>} : memref<12x8x128xf32, #tpu.memory_space<vmem>>, vector<12x8x128xf32>,
    return
  }
  func.func @transform_0(%arg0: i32) -> (i32, i32, i32) {
    %c0_i32 = arith.constant 0 : i32
    %c0_i32_0 = arith.constant 0 : i32
    %c0_i32_1 = arith.constant 0 : i32
    return %c0_i32, %arg0, %c0_i32_0 : i32, i32, i32
  }
  func.func @transform_1(%arg0: i32) -> (i32, i32, i32) {
    %c0_i32 = arith.constant 0 : i32
    %c0_i32_0 = arith.constant 0 : i32
    %c0_i32_1 = arith.constant 0 : i32
    %c0_i32_2 = arith.constant 0 : i32
    return %c0_i32, %c0_i32_0, %c0_i32_1 : i32, i32, i32
  }
  func.func @transform_2(%arg0: i32) -> (i32, i32) {
    %c0_i32 = arith.constant 0 : i32
    %c0_i32_0 = arith.constant 0 : i32
    %c0_i32_1 = arith.constant 0 : i32
    return %c0_i32, %c0_i32_0 : i32, i32
  }
  func.func @transform_3(%arg0: i32) -> (i32, i32, i32) {
    %c0_i32 = arith.constant 0 : i32
    %c0_i32_0 = arith.constant 0 : i32
    %c0_i32_1 = arith.constant 0 : i32
    return %c0_i32, %arg0, %c0_i32_0 : i32, i32, i32
  }
}

</mosaic_0001>

<llo_original>
// kernel: conv_classifier_forward.2
$region0: #{conv_classifier_forward.2}
  #allocation0 [shape = 'u32[]', space=smem, size = 0x4, offset = 0x4, fixed_abs, tag = 'smem constant byte address 0x4 - core index']
  #allocation1 [shape = 'u32[72,128]{1,0:T(1,128)}', space=vmem, size = 0x9000, scoped, tag = 'internal scratch']
  %s0 = inlined_call_operand.vmem [shape: f32[14,8,56], index: 0, kind: input, shape index: {}]
  %s1 = inlined_call_operand.vmem [shape: bf16[3,56,512], index: 1, kind: input, shape index: {}]
  %s2 = inlined_call_operand.vmem [shape: f32[1,128], index: 2, kind: input, shape index: {}]
  %s3 = inlined_call_operand.vmem [shape: f32[12,8,128], index: 3, kind: output, shape index: {}]
  %s4 = sld [smem:[#allocation0]]
  $region22: #{conv_classifier_forward.2} parent=0
    _
  %s6 = ssub.s32 1, %s4
  %s7 = scalar_select 0, %s6, %s4
  // Predicated region
  $region2: #{conv_classifier_forward.2} parent=0 // pred_check
    _
  $region3: #{conv_classifier_forward.2} parent=0 // pred_check_branch
    %9 = sbr.rel (0) target = $region5
  $region4: #{conv_classifier_forward.2} parent=0 // pred_region
    _
  $region5: #{conv_classifier_forward.2} parent=0 // pred_fallthru
    _
  // Predicated region
  $region6: #{conv_classifier_forward.2} parent=0 // pred_check
    _
  $region7: #{conv_classifier_forward.2} parent=0 // pred_check_branch
    %11 = sbr.rel (0) target = $region9
  $region8: #{conv_classifier_forward.2} parent=0 // pred_region
    _
  $region9: #{conv_classifier_forward.2} parent=0 // pred_fallthru
    _
  // Predicated region
  $region10: #{conv_classifier_forward.2} parent=0 // pred_check
    _
  $region11: #{conv_classifier_forward.2} parent=0 // pred_check_branch
    %13 = sbr.rel (0) target = $region13
  $region12: #{conv_classifier_forward.2} parent=0 // pred_region
    _
  $region13: #{conv_classifier_forward.2} parent=0 // pred_fallthru
    _
  %v15 = vld [vmem:[%s0] sm:$0xff]
  %v16 = vld [vmem:[%s0 + $0x8] sm:$0xff]
  %v17 = vld [vmem:[%s0 + $0x10] sm:$0xff]
  %v18 = vld [vmem:[%s0 + $0x18] sm:$0xff]
  %v19 = vld [vmem:[%s0 + $0x20] sm:$0xff]
  %v20 = vld [vmem:[%s0 + $0x28] sm:$0xff]
  %v21 = vld [vmem:[%s0 + $0x30] sm:$0xff]
  %v22 = vld [vmem:[%s0 + $0x38] sm:$0xff]
  %v23 = vld [vmem:[%s0 + $0x40] sm:$0xff]
  %v24 = vld [vmem:[%s0 + $0x48] sm:$0xff]
  %v25 = vld [vmem:[%s0 + $0x50] sm:$0xff]
  %v26 = vld [vmem:[%s0 + $0x58] sm:$0xff]
  %v27 = vld [vmem:[%s0 + $0x60] sm:$0xff]
  %v28 = vld [vmem:[%s0 + $0x68] sm:$0xff]
  %v29 = vld [vmem:[%s1] sm:$0xff]
  %v30 = vld [vmem:[%s1 + $0x8] sm:$0xff]
  %v31 = vld [vmem:[%s1 + $0x10] sm:$0xff]
  %v32 = vld [vmem:[%s1 + $0x18] sm:$0xff]
  %v33 = vld [vmem:[%s1 + $0x20] sm:$0xff]
  %v34 = vld [vmem:[%s1 + $0x28] sm:$0xff]
  %v35 = vld [vmem:[%s1 + $0x30] sm:$0xff]
  %v36 = vld [vmem:[%s1 + $0x38] sm:$0xff]
  %v37 = vld [vmem:[%s1 + $0x40] sm:$0xff]
  %v38 = vld [vmem:[%s1 + $0x48] sm:$0xff]
  %v39 = vld [vmem:[%s1 + $0x50] sm:$0xff]
  %v40 = vld [vmem:[%s1 + $0x58] sm:$0xff]
  %v41 = vld [vmem:[%s1 + $0x60] sm:$0xff]
  %v42 = vld [vmem:[%s1 + $0x68] sm:$0xff]
  %v43 = vld [vmem:[%s1 + $0x70] sm:$0xff]
  %v44 = vld [vmem:[%s1 + $0x78] sm:$0xff]
  %v45 = vld [vmem:[%s1 + $0x80] sm:$0xff]
  %v46 = vld [vmem:[%s1 + $0x88] sm:$0xff]
  %v47 = vld [vmem:[%s1 + $0x90] sm:$0xff]
  %v48 = vld [vmem:[%s1 + $0x98] sm:$0xff]
  %v49 = vld [vmem:[%s1 + $0xa0] sm:$0xff]
  %v50 = vld [vmem:[%s1 + $0xa8] sm:$0xff]
  %v51 = vld [vmem:[%s1 + $0xb0] sm:$0xff]
  %v52 = vld [vmem:[%s1 + $0xb8] sm:$0xff]
  %v53 = vld [vmem:[%s1 + $0xc0] sm:$0xff]
  %v54 = vld [vmem:[%s1 + $0xc8] sm:$0xff]
  %v55 = vld [vmem:[%s1 + $0xd0] sm:$0xff]
  %v56 = vld [vmem:[%s1 + $0xd8] sm:$0xff]
  %v57 = vld [vmem:[%s1 + $0xe0] sm:$0xff]
  %v58 = vld [vmem:[%s1 + $0xe8] sm:$0xff]
  %v59 = vld [vmem:[%s1 + $0xf0] sm:$0xff]
  %v60 = vld [vmem:[%s1 + $0xf8] sm:$0xff]
  %v61 = vld [vmem:[%s1 + $0x100] sm:$0xff]
  %v62 = vld [vmem:[%s1 + $0x108] sm:$0xff]
  %v63 = vld [vmem:[%s1 + $0x110] sm:$0xff]
  %v64 = vld [vmem:[%s1 + $0x118] sm:$0xff]
  %v65 = vld [vmem:[%s1 + $0x120] sm:$0xff]
  %v66 = vld [vmem:[%s1 + $0x128] sm:$0xff]
  %v67 = vld [vmem:[%s1 + $0x130] sm:$0xff]
  %v68 = vld [vmem:[%s1 + $0x138] sm:$0xff]
  %v69 = vld [vmem:[%s1 + $0x140] sm:$0xff]
  %v70 = vld [vmem:[%s1 + $0x148] sm:$0xff]
  %v71 = vpack.c.bf16 %v16, %v15
  %v72 = vpack.c.bf16 %v18, %v17
  %v73 = vpack.c.bf16 %v20, %v19
  %v74 = vpack.c.bf16 %v22, %v21
  %v75 = vpack.c.bf16 %v24, %v23
  %v76 = vpack.c.bf16 %v26, %v25
  %v77 = vpack.c.bf16 %v17, %v16
  %v78 = vpack.c.bf16 %v19, %v18
  %v79 = vpack.c.bf16 %v21, %v20
  %v80 = vpack.c.bf16 %v23, %v22
  %v81 = vpack.c.bf16 %v25, %v24
  %v82 = vpack.c.bf16 %v27, %v26
  %v97 = vunpack.c.l.b16 %v43
  %v98 = vunpack.c.h.b16 %v43
  %v99 = vunpack.c.l.b16 %v44
  %v100 = vunpack.c.h.b16 %v44
  %v101 = vunpack.c.l.b16 %v45
  %v102 = vunpack.c.h.b16 %v45
  %v103 = vunpack.c.l.b16 %v46
  %v104 = vunpack.c.h.b16 %v46
  %v105 = vunpack.c.l.b16 %v47
  %v106 = vunpack.c.h.b16 %v47
  %v107 = vunpack.c.l.b16 %v48
  %v108 = vunpack.c.h.b16 %v48
  %v109 = vunpack.c.l.b16 %v49
  %v110 = vunpack.c.h.b16 %v49
  %v111 = vunpack.c.l.b16 %v50
  %v112 = vunpack.c.h.b16 %v50
  %v113 = vunpack.c.l.b16 %v51
  %v114 = vunpack.c.h.b16 %v51
  %v115 = vunpack.c.l.b16 %v52
  %v116 = vunpack.c.h.b16 %v52
  %v117 = vunpack.c.l.b16 %v53
  %v118 = vunpack.c.h.b16 %v53
  %v119 = vunpack.c.l.b16 %v54
  %v120 = vunpack.c.h.b16 %v54
  %v121 = vunpack.c.l.b16 %v55
  %v122 = vunpack.c.h.b16 %v55
  %v123 = vunpack.c.l.b16 %v56
  %v124 = vunpack.c.h.b16 %v56
  %v125 = vpack.c.b16 %v101, %v97
  %v126 = vpack.c.b16 %v102, %v98
  %v127 = vpack.c.b16 %v103, %v99
  %v128 = vpack.c.b16 %v104, %v100
  %v129 = vpack.c.b16 %v109, %v105
  %v130 = vpack.c.b16 %v110, %v106
  %v131 = vpack.c.b16 %v111, %v107
  %v132 = vpack.c.b16 %v112, %v108
  %v133 = vpack.c.b16 %v117, %v113
  %v134 = vpack.c.b16 %v118, %v114
  %v135 = vpack.c.b16 %v119, %v115
  %v136 = vpack.c.b16 %v120, %v116
  %v137 = vpack.c.b16 %v121, %v121
  %v138 = vpack.c.b16 %v122, %v122
  %v139 = vpack.c.b16 %v123, %v123
  %v140 = vpack.c.b16 %v124, %v124
  %vm153 = vcmask 457728
  %v155 = vsel %vm153, %v77, 0
  %v158 = vsel %vm153, %v78, 0
  %v161 = vsel %vm153, %v79, 0
  %v164 = vsel %vm153, %v80, 0
  %v167 = vsel %vm153, %v81, 0
  %v170 = vsel %vm153, %v82, 0
  %vm172 = vcmask 1043456
  %v174 = vsel %vm172, %v137, 0
  %v177 = vsel %vm172, %v138, 0
  %v180 = vsel %vm172, %v139, 0
  %v183 = vsel %vm172, %v140, 0
  %185 = vmatpush.bf16.msra.mxu0 0
  %186 = vmatpush.bf16.msra.mxu0 0
  %187 = vmatpush.bf16.msra.mxu0 0
  %188 = vmatpush.bf16.msra.mxu0 0
  %189 = vmatpush.bf16.msra.mxu0 %v174
  %190 = vmatpush.bf16.msra.mxu0 %v133
  %191 = vmatpush.bf16.msra.mxu0 %v129
  %192 = vmatpush.bf16.msra.mxu0 %v125
  %193 = vmatmul.bf16.gmra.mxu0 %v155
  %v194 = vpop.f32.mrf.mxu0
  %v195 = vadd.f32 0.0, %v194
  %v196 = vpop.f32.mrf.mxu0
  %v197 = vadd.f32 0.0, %v196
  %198 = vmatmul.bf16.gmra.mxu0 %v158
  %v199 = vpop.f32.mrf.mxu0
  %v200 = vadd.f32 0.0, %v199
  %v201 = vpop.f32.mrf.mxu0
  %v202 = vadd.f32 0.0, %v201
  %203 = vmatmul.bf16.gmra.mxu0 %v161
  %v204 = vpop.f32.mrf.mxu0
  %v205 = vadd.f32 0.0, %v204
  %v206 = vpop.f32.mrf.mxu0
  %v207 = vadd.f32 0.0, %v206
  %208 = vmatmul.bf16.gmra.mxu0 %v164
  %v209 = vpop.f32.mrf.mxu0
  %v210 = vadd.f32 0.0, %v209
  %v211 = vpop.f32.mrf.mxu0
  %v212 = vadd.f32 0.0, %v211
  %213 = vmatmul.bf16.gmra.mxu0 %v167
  %v214 = vpop.f32.mrf.mxu0
  %v215 = vadd.f32 0.0, %v214
  %v216 = vpop.f32.mrf.mxu0
  %v217 = vadd.f32 0.0, %v216
  %218 = vmatmul.bf16.gmra.mxu0 %v170
  %v219 = vpop.f32.mrf.mxu0
  %v220 = vadd.f32 0.0, %v219
  %v221 = vpop.f32.mrf.mxu0
  %v222 = vadd.f32 0.0, %v221
  %223 = vdwg.mxu0
  %224 = vmatpush.bf16.msra.mxu0 0
  %225 = vmatpush.bf16.msra.mxu0 0
  %226 = vmatpush.bf16.msra.mxu0 0
  %227 = vmatpush.bf16.msra.mxu0 0
  %228 = vmatpush.bf16.msra.mxu0 %v177
  %229 = vmatpush.bf16.msra.mxu0 %v134
  %230 = vmatpush.bf16.msra.mxu0 %v130
  %231 = vmatpush.bf16.msra.mxu0 %v126
  %232 = vmatmul.bf16.gmra.mxu0 %v155
  %v233 = vpop.f32.mrf.mxu0
  %v234 = vadd.f32 0.0, %v233
  %v235 = vpop.f32.mrf.mxu0
  %v236 = vadd.f32 0.0, %v235
  %237 = vmatmul.bf16.gmra.mxu0 %v158
  %v238 = vpop.f32.mrf.mxu0
  %v239 = vadd.f32 0.0, %v238
  %v240 = vpop.f32.mrf.mxu0
  %v241 = vadd.f32 0.0, %v240
  %242 = vmatmul.bf16.gmra.mxu0 %v161
  %v243 = vpop.f32.mrf.mxu0
  %v244 = vadd.f32 0.0, %v243
  %v245 = vpop.f32.mrf.mxu0
  %v246 = vadd.f32 0.0, %v245
  %247 = vmatmul.bf16.gmra.mxu0 %v164
  %v248 = vpop.f32.mrf.mxu0
  %v249 = vadd.f32 0.0, %v248
  %v250 = vpop.f32.mrf.mxu0
  %v251 = vadd.f32 0.0, %v250
  %252 = vmatmul.bf16.gmra.mxu0 %v167
  %v253 = vpop.f32.mrf.mxu0
  %v254 = vadd.f32 0.0, %v253
  %v255 = vpop.f32.mrf.mxu0
  %v256 = vadd.f32 0.0, %v255
  %257 = vmatmul.bf16.gmra.mxu0 %v170
  %v258 = vpop.f32.mrf.mxu0
  %v259 = vadd.f32 0.0, %v258
  %v260 = vpop.f32.mrf.mxu0
  %v261 = vadd.f32 0.0, %v260
  %262 = vdwg.mxu0
  %263 = vmatpush.bf16.msra.mxu0 0
  %264 = vmatpush.bf16.msra.mxu0 0
  %265 = vmatpush.bf16.msra.mxu0 0
  %266 = vmatpush.bf16.msra.mxu0 0
  %267 = vmatpush.bf16.msra.mxu0 %v180
  %268 = vmatpush.bf16.msra.mxu0 %v135
  %269 = vmatpush.bf16.msra.mxu0 %v131
  %270 = vmatpush.bf16.msra.mxu0 %v127
  %271 = vmatmul.bf16.gmra.mxu0 %v155
  %v272 = vpop.f32.mrf.mxu0
  %v273 = vadd.f32 0.0, %v272
  %v274 = vpop.f32.mrf.mxu0
  %v275 = vadd.f32 0.0, %v274
  %276 = vmatmul.bf16.gmra.mxu0 %v158
  %v277 = vpop.f32.mrf.mxu0
  %v278 = vadd.f32 0.0, %v277
  %v279 = vpop.f32.mrf.mxu0
  %v280 = vadd.f32 0.0, %v279
  %281 = vmatmul.bf16.gmra.mxu0 %v161
  %v282 = vpop.f32.mrf.mxu0
  %v283 = vadd.f32 0.0, %v282
  %v284 = vpop.f32.mrf.mxu0
  %v285 = vadd.f32 0.0, %v284
  %286 = vmatmul.bf16.gmra.mxu0 %v164
  %v287 = vpop.f32.mrf.mxu0
  %v288 = vadd.f32 0.0, %v287
  %v289 = vpop.f32.mrf.mxu0
  %v290 = vadd.f32 0.0, %v289
  %291 = vmatmul.bf16.gmra.mxu0 %v167
  %v292 = vpop.f32.mrf.mxu0
  %v293 = vadd.f32 0.0, %v292
  %v294 = vpop.f32.mrf.mxu0
  %v295 = vadd.f32 0.0, %v294
  %296 = vmatmul.bf16.gmra.mxu0 %v170
  %v297 = vpop.f32.mrf.mxu0
  %v298 = vadd.f32 0.0, %v297
  %v299 = vpop.f32.mrf.mxu0
  %v300 = vadd.f32 0.0, %v299
  %301 = vdwg.mxu0
  %302 = vmatpush.bf16.msra.mxu0 0
  %303 = vmatpush.bf16.msra.mxu0 0
  %304 = vmatpush.bf16.msra.mxu0 0
  %305 = vmatpush.bf16.msra.mxu0 0
  %306 = vmatpush.bf16.msra.mxu0 %v183
  %307 = vmatpush.bf16.msra.mxu0 %v136
  %308 = vmatpush.bf16.msra.mxu0 %v132
  %309 = vmatpush.bf16.msra.mxu0 %v128
  %310 = vmatmul.bf16.gmra.mxu0 %v155
  %v311 = vpop.f32.mrf.mxu0
  %v312 = vadd.f32 0.0, %v311
  %v313 = vpop.f32.mrf.mxu0
  %v314 = vadd.f32 0.0, %v313
  %315 = vmatmul.bf16.gmra.mxu0 %v158
  %v316 = vpop.f32.mrf.mxu0
  %v317 = vadd.f32 0.0, %v316
  %v318 = vpop.f32.mrf.mxu0
  %v319 = vadd.f32 0.0, %v318
  %320 = vmatmul.bf16.gmra.mxu0 %v161
  %v321 = vpop.f32.mrf.mxu0
  %v322 = vadd.f32 0.0, %v321
  %v323 = vpop.f32.mrf.mxu0
  %v324 = vadd.f32 0.0, %v323
  %325 = vmatmul.bf16.gmra.mxu0 %v164
  %v326 = vpop.f32.mrf.mxu0
  %v327 = vadd.f32 0.0, %v326
  %v328 = vpop.f32.mrf.mxu0
  %v329 = vadd.f32 0.0, %v328
  %330 = vmatmul.bf16.gmra.mxu0 %v167
  %v331 = vpop.f32.mrf.mxu0
  %v332 = vadd.f32 0.0, %v331
  %v333 = vpop.f32.mrf.mxu0
  %v334 = vadd.f32 0.0, %v333
  %335 = vmatmul.bf16.gmra.mxu0 %v170
  %v336 = vpop.f32.mrf.mxu0
  %v337 = vadd.f32 0.0, %v336
  %v338 = vpop.f32.mrf.mxu0
  %v339 = vadd.f32 0.0, %v338
  %340 = vdwg.mxu0
  %v355 = vunpack.c.l.b16 %v29
  %v356 = vunpack.c.h.b16 %v29
  %v357 = vunpack.c.l.b16 %v30
  %v358 = vunpack.c.h.b16 %v30
  %v359 = vunpack.c.l.b16 %v31
  %v360 = vunpack.c.h.b16 %v31
  %v361 = vunpack.c.l.b16 %v32
  %v362 = vunpack.c.h.b16 %v32
  %v363 = vunpack.c.l.b16 %v33
  %v364 = vunpack.c.h.b16 %v33
  %v365 = vunpack.c.l.b16 %v34
  %v366 = vunpack.c.h.b16 %v34
  %v367 = vunpack.c.l.b16 %v35
  %v368 = vunpack.c.h.b16 %v35
  %v369 = vunpack.c.l.b16 %v36
  %v370 = vunpack.c.h.b16 %v36
  %v371 = vunpack.c.l.b16 %v37
  %v372 = vunpack.c.h.b16 %v37
  %v373 = vunpack.c.l.b16 %v38
  %v374 = vunpack.c.h.b16 %v38
  %v375 = vunpack.c.l.b16 %v39
  %v376 = vunpack.c.h.b16 %v39
  %v377 = vunpack.c.l.b16 %v40
  %v378 = vunpack.c.h.b16 %v40
  %v379 = vunpack.c.l.b16 %v41
  %v380 = vunpack.c.h.b16 %v41
  %v381 = vunpack.c.l.b16 %v42
  %v382 = vunpack.c.h.b16 %v42
  %v383 = vpack.c.b16 %v359, %v355
  %v384 = vpack.c.b16 %v360, %v356
  %v385 = vpack.c.b16 %v361, %v357
  %v386 = vpack.c.b16 %v362, %v358
  %v387 = vpack.c.b16 %v367, %v363
  %v388 = vpack.c.b16 %v368, %v364
  %v389 = vpack.c.b16 %v369, %v365
  %v390 = vpack.c.b16 %v370, %v366
  %v391 = vpack.c.b16 %v375, %v371
  %v392 = vpack.c.b16 %v376, %v372
  %v393 = vpack.c.b16 %v377, %v373
  %v394 = vpack.c.b16 %v378, %v374
  %v395 = vpack.c.b16 %v379, %v379
  %v396 = vpack.c.b16 %v380, %v380
  %v397 = vpack.c.b16 %v381, %v381
  %v398 = vpack.c.b16 %v382, %v382
  %v412 = vsel %vm153, %v71, 0
  %v415 = vsel %vm153, %v72, 0
  %v418 = vsel %vm153, %v73, 0
  %v421 = vsel %vm153, %v74, 0
  %v424 = vsel %vm153, %v75, 0
  %v427 = vsel %vm153, %v76, 0
  %v430 = vsel %vm172, %v395, 0
  %v433 = vsel %vm172, %v396, 0
  %v436 = vsel %vm172, %v397, 0
  %v439 = vsel %vm172, %v398, 0
  %441 = vmatpush.bf16.msra.mxu0 0
  %442 = vmatpush.bf16.msra.mxu0 0
  %443 = vmatpush.bf16.msra.mxu0 0
  %444 = vmatpush.bf16.msra.mxu0 0
  %445 = vmatpush.bf16.msra.mxu0 %v430
  %446 = vmatpush.bf16.msra.mxu0 %v391
  %447 = vmatpush.bf16.msra.mxu0 %v387
  %448 = vmatpush.bf16.msra.mxu0 %v383
  %449 = vmatmul.bf16.gmra.mxu0 %v412
  %v450 = vpop.f32.mrf.mxu0
  %v451 = vadd.f32 %v195, %v450
  %v452 = vpop.f32.mrf.mxu0
  %v453 = vadd.f32 %v197, %v452
  %454 = vmatmul.bf16.gmra.mxu0 %v415
  %v455 = vpop.f32.mrf.mxu0
  %v456 = vadd.f32 %v200, %v455
  %v457 = vpop.f32.mrf.mxu0
  %v458 = vadd.f32 %v202, %v457
  %459 = vmatmul.bf16.gmra.mxu0 %v418
  %v460 = vpop.f32.mrf.mxu0
  %v461 = vadd.f32 %v205, %v460
  %v462 = vpop.f32.mrf.mxu0
  %v463 = vadd.f32 %v207, %v462
  %464 = vmatmul.bf16.gmra.mxu0 %v421
  %v465 = vpop.f32.mrf.mxu0
  %v466 = vadd.f32 %v210, %v465
  %v467 = vpop.f32.mrf.mxu0
  %v468 = vadd.f32 %v212, %v467
  %469 = vmatmul.bf16.gmra.mxu0 %v424
  %v470 = vpop.f32.mrf.mxu0
  %v471 = vadd.f32 %v215, %v470
  %v472 = vpop.f32.mrf.mxu0
  %v473 = vadd.f32 %v217, %v472
  %474 = vmatmul.bf16.gmra.mxu0 %v427
  %v475 = vpop.f32.mrf.mxu0
  %v476 = vadd.f32 %v220, %v475
  %v477 = vpop.f32.mrf.mxu0
  %v478 = vadd.f32 %v222, %v477
  %479 = vdwg.mxu0
  %480 = vmatpush.bf16.msra.mxu0 0
  %481 = vmatpush.bf16.msra.mxu0 0
  %482 = vmatpush.bf16.msra.mxu0 0
  %483 = vmatpush.bf16.msra.mxu0 0
  %484 = vmatpush.bf16.msra.mxu0 %v433
  %485 = vmatpush.bf16.msra.mxu0 %v392
  %486 = vmatpush.bf16.msra.mxu0 %v388
  %487 = vmatpush.bf16.msra.mxu0 %v384
  %488 = vmatmul.bf16.gmra.mxu0 %v412
  %v489 = vpop.f32.mrf.mxu0
  %v490 = vadd.f32 %v234, %v489
  %v491 = vpop.f32.mrf.mxu0
  %v492 = vadd.f32 %v236, %v491
  %493 = vmatmul.bf16.gmra.mxu0 %v415
  %v494 = vpop.f32.mrf.mxu0
  %v495 = vadd.f32 %v239, %v494
  %v496 = vpop.f32.mrf.mxu0
  %v497 = vadd.f32 %v241, %v496
  %498 = vmatmul.bf16.gmra.mxu0 %v418
  %v499 = vpop.f32.mrf.mxu0
  %v500 = vadd.f32 %v244, %v499
  %v501 = vpop.f32.mrf.mxu0
  %v502 = vadd.f32 %v246, %v501
  %503 = vmatmul.bf16.gmra.mxu0 %v421
  %v504 = vpop.f32.mrf.mxu0
  %v505 = vadd.f32 %v249, %v504
  %v506 = vpop.f32.mrf.mxu0
  %v507 = vadd.f32 %v251, %v506
  %508 = vmatmul.bf16.gmra.mxu0 %v424
  %v509 = vpop.f32.mrf.mxu0
  %v510 = vadd.f32 %v254, %v509
  %v511 = vpop.f32.mrf.mxu0
  %v512 = vadd.f32 %v256, %v511
  %513 = vmatmul.bf16.gmra.mxu0 %v427
  %v514 = vpop.f32.mrf.mxu0
  %v515 = vadd.f32 %v259, %v514
  %v516 = vpop.f32.mrf.mxu0
  %v517 = vadd.f32 %v261, %v516
  %518 = vdwg.mxu0
  %519 = vmatpush.bf16.msra.mxu0 0
  %520 = vmatpush.bf16.msra.mxu0 0
  %521 = vmatpush.bf16.msra.mxu0 0
  %522 = vmatpush.bf16.msra.mxu0 0
  %523 = vmatpush.bf16.msra.mxu0 %v436
  %524 = vmatpush.bf16.msra.mxu0 %v393
  %525 = vmatpush.bf16.msra.mxu0 %v389
  %526 = vmatpush.bf16.msra.mxu0 %v385
  %527 = vmatmul.bf16.gmra.mxu0 %v412
  %v528 = vpop.f32.mrf.mxu0
  %v529 = vadd.f32 %v273, %v528
  %v530 = vpop.f32.mrf.mxu0
  %v531 = vadd.f32 %v275, %v530
  %532 = vmatmul.bf16.gmra.mxu0 %v415
  %v533 = vpop.f32.mrf.mxu0
  %v534 = vadd.f32 %v278, %v533
  %v535 = vpop.f32.mrf.mxu0
  %v536 = vadd.f32 %v280, %v535
  %537 = vmatmul.bf16.gmra.mxu0 %v418
  %v538 = vpop.f32.mrf.mxu0
  %v539 = vadd.f32 %v283, %v538
  %v540 = vpop.f32.mrf.mxu0
  %v541 = vadd.f32 %v285, %v540
  %542 = vmatmul.bf16.gmra.mxu0 %v421
  %v543 = vpop.f32.mrf.mxu0
  %v544 = vadd.f32 %v288, %v543
  %v545 = vpop.f32.mrf.mxu0
  %v546 = vadd.f32 %v290, %v545
  %547 = vmatmul.bf16.gmra.mxu0 %v424
  %v548 = vpop.f32.mrf.mxu0
  %v549 = vadd.f32 %v293, %v548
  %v550 = vpop.f32.mrf.mxu0
  %v551 = vadd.f32 %v295, %v550
  %552 = vmatmul.bf16.gmra.mxu0 %v427
  %v553 = vpop.f32.mrf.mxu0
  %v554 = vadd.f32 %v298, %v553
  %v555 = vpop.f32.mrf.mxu0
  %v556 = vadd.f32 %v300, %v555
  %557 = vdwg.mxu0
  %558 = vmatpush.bf16.msra.mxu0 0
  %559 = vmatpush.bf16.msra.mxu0 0
  %560 = vmatpush.bf16.msra.mxu0 0
  %561 = vmatpush.bf16.msra.mxu0 0
  %562 = vmatpush.bf16.msra.mxu0 %v439
  %563 = vmatpush.bf16.msra.mxu0 %v394
  %564 = vmatpush.bf16.msra.mxu0 %v390
  %565 = vmatpush.bf16.msra.mxu0 %v386
  %566 = vmatmul.bf16.gmra.mxu0 %v412
  %v567 = vpop.f32.mrf.mxu0
  %v568 = vadd.f32 %v312, %v567
  %v569 = vpop.f32.mrf.mxu0
  %v570 = vadd.f32 %v314, %v569
  %571 = vmatmul.bf16.gmra.mxu0 %v415
  %v572 = vpop.f32.mrf.mxu0
  %v573 = vadd.f32 %v317, %v572
  %v574 = vpop.f32.mrf.mxu0
  %v575 = vadd.f32 %v319, %v574
  %576 = vmatmul.bf16.gmra.mxu0 %v418
  %v577 = vpop.f32.mrf.mxu0
  %v578 = vadd.f32 %v322, %v577
  %v579 = vpop.f32.mrf.mxu0
  %v580 = vadd.f32 %v324, %v579
  %581 = vmatmul.bf16.gmra.mxu0 %v421
  %v582 = vpop.f32.mrf.mxu0
  %v583 = vadd.f32 %v327, %v582
  %v584 = vpop.f32.mrf.mxu0
  %v585 = vadd.f32 %v329, %v584
  %586 = vmatmul.bf16.gmra.mxu0 %v424
  %v587 = vpop.f32.mrf.mxu0
  %v588 = vadd.f32 %v332, %v587
  %v589 = vpop.f32.mrf.mxu0
  %v590 = vadd.f32 %v334, %v589
  %591 = vmatmul.bf16.gmra.mxu0 %v427
  %v592 = vpop.f32.mrf.mxu0
  %v593 = vadd.f32 %v337, %v592
  %v594 = vpop.f32.mrf.mxu0
  %v595 = vadd.f32 %v339, %v594
  %596 = vdwg.mxu0
  %v597 = vpack.c.bf16 %v28, %v27
  %v612 = vunpack.c.l.b16 %v57
  %v613 = vunpack.c.h.b16 %v57
  %v614 = vunpack.c.l.b16 %v58
  %v615 = vunpack.c.h.b16 %v58
  %v616 = vunpack.c.l.b16 %v59
  %v617 = vunpack.c.h.b16 %v59
  %v618 = vunpack.c.l.b16 %v60
  %v619 = vunpack.c.h.b16 %v60
  %v620 = vunpack.c.l.b16 %v61
  %v621 = vunpack.c.h.b16 %v61
  %v622 = vunpack.c.l.b16 %v62
  %v623 = vunpack.c.h.b16 %v62
  %v624 = vunpack.c.l.b16 %v63
  %v625 = vunpack.c.h.b16 %v63
  %v626 = vunpack.c.l.b16 %v64
  %v627 = vunpack.c.h.b16 %v64
  %v628 = vunpack.c.l.b16 %v65
  %v629 = vunpack.c.h.b16 %v65
  %v630 = vunpack.c.l.b16 %v66
  %v631 = vunpack.c.h.b16 %v66
  %v632 = vunpack.c.l.b16 %v67
  %v633 = vunpack.c.h.b16 %v67
  %v634 = vunpack.c.l.b16 %v68
  %v635 = vunpack.c.h.b16 %v68
  %v636 = vunpack.c.l.b16 %v69
  %v637 = vunpack.c.h.b16 %v69
  %v638 = vunpack.c.l.b16 %v70
  %v639 = vunpack.c.h.b16 %v70
  %v640 = vpack.c.b16 %v616, %v612
  %v641 = vpack.c.b16 %v617, %v613
  %v642 = vpack.c.b16 %v618, %v614
  %v643 = vpack.c.b16 %v619, %v615
  %v644 = vpack.c.b16 %v624, %v620
  %v645 = vpack.c.b16 %v625, %v621
  %v646 = vpack.c.b16 %v626, %v622
  %v647 = vpack.c.b16 %v627, %v623
  %v648 = vpack.c.b16 %v632, %v628
  %v649 = vpack.c.b16 %v633, %v629
  %v650 = vpack.c.b16 %v634, %v630
  %v651 = vpack.c.b16 %v635, %v631
  %v652 = vpack.c.b16 %v636, %v636
  %v653 = vpack.c.b16 %v637, %v637
  %v654 = vpack.c.b16 %v638, %v638
  %v655 = vpack.c.b16 %v639, %v639
  %v669 = vsel %vm153, %v597, 0
  %v672 = vsel %vm172, %v652, 0
  %v675 = vsel %vm172, %v653, 0
  %v678 = vsel %vm172, %v654, 0
  %v681 = vsel %vm172, %v655, 0
  %683 = vmatpush.bf16.msra.mxu0 0
  %684 = vmatpush.bf16.msra.mxu0 0
  %685 = vmatpush.bf16.msra.mxu0 0
  %686 = vmatpush.bf16.msra.mxu0 0
  %687 = vmatpush.bf16.msra.mxu0 %v672
  %688 = vmatpush.bf16.msra.mxu0 %v648
  %689 = vmatpush.bf16.msra.mxu0 %v644
  %690 = vmatpush.bf16.msra.mxu0 %v640
  %691 = vmatmul.bf16.gmra.mxu0 %v415
  %v692 = vpop.f32.mrf.mxu0
  %v693 = vadd.f32 0.0, %v692
  %v694 = vpop.f32.mrf.mxu0
  %v695 = vadd.f32 0.0, %v694
  %696 = vmatmul.bf16.gmra.mxu0 %v418
  %v697 = vpop.f32.mrf.mxu0
  %v698 = vadd.f32 0.0, %v697
  %v699 = vpop.f32.mrf.mxu0
  %v700 = vadd.f32 0.0, %v699
  %701 = vmatmul.bf16.gmra.mxu0 %v421
  %v702 = vpop.f32.mrf.mxu0
  %v703 = vadd.f32 0.0, %v702
  %v704 = vpop.f32.mrf.mxu0
  %v705 = vadd.f32 0.0, %v704
  %706 = vmatmul.bf16.gmra.mxu0 %v424
  %v707 = vpop.f32.mrf.mxu0
  %v708 = vadd.f32 0.0, %v707
  %v709 = vpop.f32.mrf.mxu0
  %v710 = vadd.f32 0.0, %v709
  %711 = vmatmul.bf16.gmra.mxu0 %v427
  %v712 = vpop.f32.mrf.mxu0
  %v713 = vadd.f32 0.0, %v712
  %v714 = vpop.f32.mrf.mxu0
  %v715 = vadd.f32 0.0, %v714
  %716 = vmatmul.bf16.gmra.mxu0 %v669
  %v717 = vpop.f32.mrf.mxu0
  %v718 = vadd.f32 0.0, %v717
  %v719 = vpop.f32.mrf.mxu0
  %v720 = vadd.f32 0.0, %v719
  %721 = vdwg.mxu0
  %722 = vmatpush.bf16.msra.mxu0 0
  %723 = vmatpush.bf16.msra.mxu0 0
  %724 = vmatpush.bf16.msra.mxu0 0
  %725 = vmatpush.bf16.msra.mxu0 0
  %726 = vmatpush.bf16.msra.mxu0 %v675
  %727 = vmatpush.bf16.msra.mxu0 %v649
  %728 = vmatpush.bf16.msra.mxu0 %v645
  %729 = vmatpush.bf16.msra.mxu0 %v641
  %730 = vmatmul.bf16.gmra.mxu0 %v415
  %v731 = vpop.f32.mrf.mxu0
  %v732 = vadd.f32 0.0, %v731
  %v733 = vpop.f32.mrf.mxu0
  %v734 = vadd.f32 0.0, %v733
  %735 = vmatmul.bf16.gmra.mxu0 %v418
  %v736 = vpop.f32.mrf.mxu0
  %v737 = vadd.f32 0.0, %v736
  %v738 = vpop.f32.mrf.mxu0
  %v739 = vadd.f32 0.0, %v738
  %740 = vmatmul.bf16.gmra.mxu0 %v421
  %v741 = vpop.f32.mrf.mxu0
  %v742 = vadd.f32 0.0, %v741
  %v743 = vpop.f32.mrf.mxu0
  %v744 = vadd.f32 0.0, %v743
  %745 = vmatmul.bf16.gmra.mxu0 %v424
  %v746 = vpop.f32.mrf.mxu0
  %v747 = vadd.f32 0.0, %v746
  %v748 = vpop.f32.mrf.mxu0
  %v749 = vadd.f32 0.0, %v748
  %750 = vmatmul.bf16.gmra.mxu0 %v427
  %v751 = vpop.f32.mrf.mxu0
  %v752 = vadd.f32 0.0, %v751
  %v753 = vpop.f32.mrf.mxu0
  %v754 = vadd.f32 0.0, %v753
  %755 = vmatmul.bf16.gmra.mxu0 %v669
  %v756 = vpop.f32.mrf.mxu0
  %v757 = vadd.f32 0.0, %v756
  %v758 = vpop.f32.mrf.mxu0
  %v759 = vadd.f32 0.0, %v758
  %760 = vdwg.mxu0
  %761 = vmatpush.bf16.msra.mxu0 0
  %762 = vmatpush.bf16.msra.mxu0 0
  %763 = vmatpush.bf16.msra.mxu0 0
  %764 = vmatpush.bf16.msra.mxu0 0
  %765 = vmatpush.bf16.msra.mxu0 %v678
  %766 = vmatpush.bf16.msra.mxu0 %v650
  %767 = vmatpush.bf16.msra.mxu0 %v646
  %768 = vmatpush.bf16.msra.mxu0 %v642
  %769 = vmatmul.bf16.gmra.mxu0 %v415
  %v770 = vpop.f32.mrf.mxu0
  %v771 = vadd.f32 0.0, %v770
  %v772 = vpop.f32.mrf.mxu0
  %v773 = vadd.f32 0.0, %v772
  %774 = vmatmul.bf16.gmra.mxu0 %v418
  %v775 = vpop.f32.mrf.mxu0
  %v776 = vadd.f32 0.0, %v775
  %v777 = vpop.f32.mrf.mxu0
  %v778 = vadd.f32 0.0, %v777
  %779 = vmatmul.bf16.gmra.mxu0 %v421
  %v780 = vpop.f32.mrf.mxu0
  %v781 = vadd.f32 0.0, %v780
  %v782 = vpop.f32.mrf.mxu0
  %v783 = vadd.f32 0.0, %v782
  %784 = vmatmul.bf16.gmra.mxu0 %v424
  %v785 = vpop.f32.mrf.mxu0
  %v786 = vadd.f32 0.0, %v785
  %v787 = vpop.f32.mrf.mxu0
  %v788 = vadd.f32 0.0, %v787
  %789 = vmatmul.bf16.gmra.mxu0 %v427
  %v790 = vpop.f32.mrf.mxu0
  %v791 = vadd.f32 0.0, %v790
  %v792 = vpop.f32.mrf.mxu0
  %v793 = vadd.f32 0.0, %v792
  %794 = vmatmul.bf16.gmra.mxu0 %v669
  %v795 = vpop.f32.mrf.mxu0
  %v796 = vadd.f32 0.0, %v795
  %v797 = vpop.f32.mrf.mxu0
  %v798 = vadd.f32 0.0, %v797
  %799 = vdwg.mxu0
  %800 = vmatpush.bf16.msra.mxu0 0
  %801 = vmatpush.bf16.msra.mxu0 0
  %802 = vmatpush.bf16.msra.mxu0 0
  %803 = vmatpush.bf16.msra.mxu0 0
  %804 = vmatpush.bf16.msra.mxu0 %v681
  %805 = vmatpush.bf16.msra.mxu0 %v651
  %806 = vmatpush.bf16.msra.mxu0 %v647
  %807 = vmatpush.bf16.msra.mxu0 %v643
  %808 = vmatmul.bf16.gmra.mxu0 %v415
  %v809 = vpop.f32.mrf.mxu0
  %v810 = vadd.f32 0.0, %v809
  %v811 = vpop.f32.mrf.mxu0
  %v812 = vadd.f32 0.0, %v811
  %813 = vmatmul.bf16.gmra.mxu0 %v418
  %v814 = vpop.f32.mrf.mxu0
  %v815 = vadd.f32 0.0, %v814
  %v816 = vpop.f32.mrf.mxu0
  %v817 = vadd.f32 0.0, %v816
  %818 = vmatmul.bf16.gmra.mxu0 %v421
  %v819 = vpop.f32.mrf.mxu0
  %v820 = vadd.f32 0.0, %v819
  %v821 = vpop.f32.mrf.mxu0
  %v822 = vadd.f32 0.0, %v821
  %823 = vmatmul.bf16.gmra.mxu0 %v424
  %v824 = vpop.f32.mrf.mxu0
  %v825 = vadd.f32 0.0, %v824
  %v826 = vpop.f32.mrf.mxu0
  %v827 = vadd.f32 0.0, %v826
  %828 = vmatmul.bf16.gmra.mxu0 %v427
  %v829 = vpop.f32.mrf.mxu0
  %v830 = vadd.f32 0.0, %v829
  %v831 = vpop.f32.mrf.mxu0
  %v832 = vadd.f32 0.0, %v831
  %833 = vmatmul.bf16.gmra.mxu0 %v669
  %v834 = vpop.f32.mrf.mxu0
  %v835 = vadd.f32 0.0, %v834
  %v836 = vpop.f32.mrf.mxu0
  %v837 = vadd.f32 0.0, %v836
  %838 = vdwg.mxu0
  %v839 = vadd.f32 %v451, %v693
  %v840 = vadd.f32 %v490, %v732
  %v841 = vadd.f32 %v529, %v771
  %v842 = vadd.f32 %v568, %v810
  %v843 = vadd.f32 %v453, %v695
  %v844 = vadd.f32 %v492, %v734
  %v845 = vadd.f32 %v531, %v773
  %v846 = vadd.f32 %v570, %v812
  %v847 = vadd.f32 %v456, %v698
  %v848 = vadd.f32 %v495, %v737
  %v849 = vadd.f32 %v534, %v776
  %v850 = vadd.f32 %v573, %v815
  %v851 = vadd.f32 %v458, %v700
  %v852 = vadd.f32 %v497, %v739
  %v853 = vadd.f32 %v536, %v778
  %v854 = vadd.f32 %v575, %v817
  %v855 = vadd.f32 %v461, %v703
  %v856 = vadd.f32 %v500, %v742
  %v857 = vadd.f32 %v539, %v781
  %v858 = vadd.f32 %v578, %v820
  %v859 = vadd.f32 %v463, %v705
  %v860 = vadd.f32 %v502, %v744
  %v861 = vadd.f32 %v541, %v783
  %v862 = vadd.f32 %v580, %v822
  %v863 = vadd.f32 %v466, %v708
  %v864 = vadd.f32 %v505, %v747
  %v865 = vadd.f32 %v544, %v786
  %v866 = vadd.f32 %v583, %v825
  %v867 = vadd.f32 %v468, %v710
  %v868 = vadd.f32 %v507, %v749
  %v869 = vadd.f32 %v546, %v788
  %v870 = vadd.f32 %v585, %v827
  %v871 = vadd.f32 %v471, %v713
  %v872 = vadd.f32 %v510, %v752
  %v873 = vadd.f32 %v549, %v791
  %v874 = vadd.f32 %v588, %v830
  %v875 = vadd.f32 %v473, %v715
  %v876 = vadd.f32 %v512, %v754
  %v877 = vadd.f32 %v551, %v793
  %v878 = vadd.f32 %v590, %v832
  %v879 = vadd.f32 %v476, %v718
  %v880 = vadd.f32 %v515, %v757
  %v881 = vadd.f32 %v554, %v796
  %v882 = vadd.f32 %v593, %v835
  %v883 = vadd.f32 %v478, %v720
  %v884 = vadd.f32 %v517, %v759
  %v885 = vadd.f32 %v556, %v798
  %v886 = vadd.f32 %v595, %v837
  %v887 = vmax.f32 %v839, %v840
  %v888 = vmax.f32 %v843, %v844
  %v889 = vmax.f32 %v847, %v848
  %v890 = vmax.f32 %v851, %v852
  %v891 = vmax.f32 %v855, %v856
  %v892 = vmax.f32 %v859, %v860
  %v893 = vmax.f32 %v863, %v864
  %v894 = vmax.f32 %v867, %v868
  %v895 = vmax.f32 %v871, %v872
  %v896 = vmax.f32 %v875, %v876
  %v897 = vmax.f32 %v879, %v880
  %v898 = vmax.f32 %v883, %v884
  %v899 = vmax.f32 %v841, %v842
  %v900 = vmax.f32 %v845, %v846
  %v901 = vmax.f32 %v849, %v850
  %v902 = vmax.f32 %v853, %v854
  %v903 = vmax.f32 %v857, %v858
  %v904 = vmax.f32 %v861, %v862
  %v905 = vmax.f32 %v865, %v866
  %v906 = vmax.f32 %v869, %v870
  %v907 = vmax.f32 %v873, %v874
  %v908 = vmax.f32 %v877, %v878
  %v909 = vmax.f32 %v881, %v882
  %v910 = vmax.f32 %v885, %v886
  %v911 = vmax.f32 %v887, %v899
  %v912 = vmax.f32 %v888, %v900
  %v913 = vmax.f32 %v889, %v901
  %v914 = vmax.f32 %v890, %v902
  %v915 = vmax.f32 %v891, %v903
  %v916 = vmax.f32 %v892, %v904
  %v917 = vmax.f32 %v893, %v905
  %v918 = vmax.f32 %v894, %v906
  %v919 = vmax.f32 %v895, %v907
  %v920 = vmax.f32 %v896, %v908
  %v921 = vmax.f32 %v897, %v909
  %v922 = vmax.f32 %v898, %v910
  %v923 = vld [vmem:[%s2] sm:$0x1]
  %v925 = vperm.slane %v923, 0
  %v927 = vadd.f32 %v911, %v925
  %v928 = vadd.f32 %v912, %v925
  %v929 = vadd.f32 %v913, %v925
  %v930 = vadd.f32 %v914, %v925
  %v931 = vadd.f32 %v915, %v925
  %v932 = vadd.f32 %v916, %v925
  %v933 = vadd.f32 %v917, %v925
  %v934 = vadd.f32 %v918, %v925
  %v935 = vadd.f32 %v919, %v925
  %v936 = vadd.f32 %v920, %v925
  %v937 = vadd.f32 %v921, %v925
  %v938 = vadd.f32 %v922, %v925
  %v939 = vmax.f32 %v927, 0.0
  %v940 = vmax.f32 %v928, 0.0
  %v941 = vmax.f32 %v929, 0.0
  %v942 = vmax.f32 %v930, 0.0
  %v943 = vmax.f32 %v931, 0.0
  %v944 = vmax.f32 %v932, 0.0
  %v945 = vmax.f32 %v933, 0.0
  %v946 = vmax.f32 %v934, 0.0
  %v947 = vmax.f32 %v935, 0.0
  %v948 = vmax.f32 %v936, 0.0
  %v949 = vmax.f32 %v937, 0.0
  %v950 = vmax.f32 %v938, 0.0
  %951 = vst [vmem:[%s3] sm:$0xff] %v939
  %952 = vst [vmem:[%s3 + $0x8] sm:$0xff] %v940
  %953 = vst [vmem:[%s3 + $0x10] sm:$0xff] %v941
  %954 = vst [vmem:[%s3 + $0x18] sm:$0xff] %v942
  %955 = vst [vmem:[%s3 + $0x20] sm:$0xff] %v943
  %956 = vst [vmem:[%s3 + $0x28] sm:$0xff] %v944
  %957 = vst [vmem:[%s3 + $0x30] sm:$0xff] %v945
  %958 = vst [vmem:[%s3 + $0x38] sm:$0xff] %v946
  %959 = vst [vmem:[%s3 + $0x40] sm:$0xff] %v947
  %960 = vst [vmem:[%s3 + $0x48] sm:$0xff] %v948
  %961 = vst [vmem:[%s3 + $0x50] sm:$0xff] %v949
  %962 = vst [vmem:[%s3 + $0x58] sm:$0xff] %v950
  // Predicated region
  $region14: #{conv_classifier_forward.2} parent=0 // pred_check
    _
  $region15: #{conv_classifier_forward.2} parent=0 // pred_check_branch
    %964 = sbr.rel (0) target = $region17
  $region16: #{conv_classifier_forward.2} parent=0 // pred_region
    _
  $region17: #{conv_classifier_forward.2} parent=0 // pred_fallthru
    _
  // Predicated region
  $region18: #{conv_classifier_forward.2} parent=0 // pred_check
    _
  $region19: #{conv_classifier_forward.2} parent=0 // pred_check_branch
    %966 = sbr.rel (0) target = $region21
  $region20: #{conv_classifier_forward.2} parent=0 // pred_region
    _
  $region21: #{conv_classifier_forward.2} parent=0 // pred_fallthru
    _

// kernel: conv_classifier_forward.3
$region0: #{conv_classifier_forward.3}
  #allocation0 [shape = 'u32[]', space=smem, size = 0x4, offset = 0x4, fixed_abs, tag = 'smem constant byte address 0x4 - core index']
  #allocation1 [shape = 'u32[72,128]{1,0:T(1,128)}', space=vmem, size = 0x9000, scoped, tag = 'internal scratch']
  %s0 = inlined_call_operand.vmem [shape: f32[12,8,128], index: 0, kind: input, shape index: {}]
  %s1 = inlined_call_operand.hbm [shape: bf16[6,128,512], index: 1, kind: input, shape index: {}]
  %s2 = inlined_call_operand.vmem [shape: f32[1,128], index: 2, kind: input, shape index: {}]
  %s3 = inlined_call_operand.vmem [shape: bf16[4,128,50], index: 3, kind: input, shape index: {}]
  %s4 = inlined_call_operand.vmem [shape: f32[1,50], index: 4, kind: input, shape index: {}]
  %s5 = inlined_call_operand.vmem [shape: bf16[50,10], index: 5, kind: input, shape index: {}]
  %s6 = inlined_call_operand.vmem [shape: f32[1,10], index: 6, kind: input, shape index: {}]
  %s7 = inlined_call_operand.vmem [shape: f32[8,10], index: 7, kind: output, shape index: {}]
  %s8 = sld [smem:[#allocation0]]
  $region42: #{conv_classifier_forward.3} parent=0
    _
  %s10 = ssub.s32 1, %s8
  %s11 = scalar_select 0, %s10, %s8
  $region1: #{conv_classifier_forward.3} parent=0
    #allocation2 [shape = 'u8[786432]{0}', space=vmem, size = 0xc0000, scoped, tag = 'input window, operand 1, single buffered']
    #allocation3 [shape = 's32[1]{0}', space=sflag, size = 0x4, scoped, tag = 'scoped memory for conv_classifier_forward.3']
    %12 = vsyncpa [#allocation3], 0
    // Predicated region
    $region2: #{conv_classifier_forward.3} parent=1 // pred_check
      _
    $region3: #{conv_classifier_forward.3} parent=1 // pred_check_branch
      %14 = sbr.rel (0) target = $region5
    $region4: #{conv_classifier_forward.3} parent=1 // pred_region
      _
    $region5: #{conv_classifier_forward.3} parent=1 // pred_fallthru
      _
    // Predicated region
    $region6: #{conv_classifier_forward.3} parent=1 // pred_check
      _
    $region7: #{conv_classifier_forward.3} parent=1 // pred_check_branch
      %16 = sbr.rel (0) target = $region9
    $region8: #{conv_classifier_forward.3} parent=1 // pred_region
      %18 = vsyncadd [#allocation3], 0
      %s19 = sshll.u32 %s1, 4
      %s20 = int_to_ptr.hbm [resolvable:$true] %s19
      %s21 = sshll.u32 [#allocation2], 4
      %s22 = int_to_ptr.vmem [resolvable:$true] %s21
      %27 = dma.hbm_to_vmem [thread:$0]  %s20, 24576, %s22, [#allocation3], 256, 256, 16
    $region9: #{conv_classifier_forward.3} parent=1 // pred_fallthru
      _
    // Predicated region
    $region10: #{conv_classifier_forward.3} parent=1 // pred_check
      _
    $region11: #{conv_classifier_forward.3} parent=1 // pred_check_branch
      %29 = sbr.rel (0) target = $region13
    $region12: #{conv_classifier_forward.3} parent=1 // pred_region
      _
    $region13: #{conv_classifier_forward.3} parent=1 // pred_fallthru
      _
    // Predicated region
    $region14: #{conv_classifier_forward.3} parent=1 // pred_check
      _
    $region15: #{conv_classifier_forward.3} parent=1 // pred_check_branch
      %31 = sbr.rel (0) target = $region17
    $region16: #{conv_classifier_forward.3} parent=1 // pred_region
      _
    $region17: #{conv_classifier_forward.3} parent=1 // pred_fallthru
      _
    // Predicated region
    $region18: #{conv_classifier_forward.3} parent=1 // pred_check
      _
    $region19: #{conv_classifier_forward.3} parent=1 // pred_check_branch
      %33 = sbr.rel (0) target = $region21
    $region20: #{conv_classifier_forward.3} parent=1 // pred_region
      _
    $region21: #{conv_classifier_forward.3} parent=1 // pred_fallthru
      _
    // Predicated region
    $region22: #{conv_classifier_forward.3} parent=1 // pred_check
      _
    $region23: #{conv_classifier_forward.3} parent=1 // pred_check_branch
      %35 = sbr.rel (0) target = $region25
    $region24: #{conv_classifier_forward.3} parent=1 // pred_region
      _
    $region25: #{conv_classifier_forward.3} parent=1 // pred_fallthru
      _
    // Predicated region
    $region26: #{conv_classifier_forward.3} parent=1 // pred_check
      _
    $region27: #{conv_classifier_forward.3} parent=1 // pred_check_branch
      %37 = sbr.rel (0) target = $region29
    $region28: #{conv_classifier_forward.3} parent=1 // pred_region
      _
    $region29: #{conv_classifier_forward.3} parent=1 // pred_fallthru
      _
    // Predicated region
    $region30: #{conv_classifier_forward.3} parent=1 // pred_check
      _
    $region31: #{conv_classifier_forward.3} parent=1 // pred_check_branch
      %39 = sbr.rel (0) target = $region33
    $region32: #{conv_classifier_forward.3} parent=1 // pred_region
      %41 = dma.done [#allocation3], 24576
    $region33: #{conv_classifier_forward.3} parent=1 // pred_fallthru
      _
    %v43 = vld [vmem:[%s0] sm:$0xff]
    %v44 = vld [vmem:[%s0 + $0x8] sm:$0xff]
    %v45 = vld [vmem:[%s0 + $0x10] sm:$0xff]
    %v46 = vld [vmem:[%s0 + $0x18] sm:$0xff]
    %v47 = vld [vmem:[%s0 + $0x20] sm:$0xff]
    %v48 = vld [vmem:[%s0 + $0x28] sm:$0xff]
    %v49 = vld [vmem:[%s0 + $0x30] sm:$0xff]
    %v50 = vld [vmem:[%s0 + $0x38] sm:$0xff]
    %v51 = vld [vmem:[%s0 + $0x40] sm:$0xff]
    %v52 = vld [vmem:[%s0 + $0x48] sm:$0xff]
    %v53 = vld [vmem:[%s0 + $0x50] sm:$0xff]
    %v54 = vld [vmem:[%s0 + $0x58] sm:$0xff]
    %v55 = vld [vmem:[#allocation2] sm:$0xff]
    %v56 = vld [vmem:[#allocation2 + $0x8] sm:$0xff]
    %v57 = vld [vmem:[#allocation2 + $0x10] sm:$0xff]
    %v58 = vld [vmem:[#allocation2 + $0x18] sm:$0xff]
    %v59 = vld [vmem:[#allocation2 + $0x20] sm:$0xff]
    %v60 = vld [vmem:[#allocation2 + $0x28] sm:$0xff]
    %v61 = vld [vmem:[#allocation2 + $0x30] sm:$0xff]
    %v62 = vld [vmem:[#allocation2 + $0x38] sm:$0xff]
    %v63 = vld [vmem:[#allocation2 + $0x40] sm:$0xff]
    %v64 = vld [vmem:[#allocation2 + $0x48] sm:$0xff]
    %v65 = vld [vmem:[#allocation2 + $0x50] sm:$0xff]
    %v66 = vld [vmem:[#allocation2 + $0x58] sm:$0xff]
    %v67 = vld [vmem:[#allocation2 + $0x60] sm:$0xff]
    %v68 = vld [vmem:[#allocation2 + $0x68] sm:$0xff]
    %v69 = vld [vmem:[#allocation2 + $0x70] sm:$0xff]
    %v70 = vld [vmem:[#allocation2 + $0x78] sm:$0xff]
    %v71 = vld [vmem:[#allocation2 + $0x80] sm:$0xff]
    %v72 = vld [vmem:[#allocation2 + $0x88] sm:$0xff]
    %v73 = vld [vmem:[#allocation2 + $0x90] sm:$0xff]
    %v74 = vld [vmem:[#allocation2 + $0x98] sm:$0xff]
    %v75 = vld [vmem:[#allocation2 + $0xa0] sm:$0xff]
    %v76 = vld [vmem:[#allocation2 + $0xa8] sm:$0xff]
    %v77 = vld [vmem:[#allocation2 + $0xb0] sm:$0xff]
    %v78 = vld [vmem:[#allocation2 + $0xb8] sm:$0xff]
    %v79 = vld [vmem:[#allocation2 + $0xc0] sm:$0xff]
    %v80 = vld [vmem:[#allocation2 + $0xc8] sm:$0xff]
    %v81 = vld [vmem:[#allocation2 + $0xd0] sm:$0xff]
    %v82 = vld [vmem:[#allocation2 + $0xd8] sm:$0xff]
    %v83 = vld [vmem:[#allocation2 + $0xe0] sm:$0xff]
    %v84 = vld [vmem:[#allocation2 + $0xe8] sm:$0xff]
    %v85 = vld [vmem:[#allocation2 + $0xf0] sm:$0xff]
    %v86 = vld [vmem:[#allocation2 + $0xf8] sm:$0xff]
    %v87 = vld [vmem:[#allocation2 + $0x100] sm:$0xff]
    %v88 = vld [vmem:[#allocation2 + $0x108] sm:$0xff]
    %v89 = vld [vmem:[#allocation2 + $0x110] sm:$0xff]
    %v90 = vld [vmem:[#allocation2 + $0x118] sm:$0xff]
    %v91 = vld [vmem:[#allocation2 + $0x120] sm:$0xff]
    %v92 = vld [vmem:[#allocation2 + $0x128] sm:$0xff]
    %v93 = vld [vmem:[#allocation2 + $0x130] sm:$0xff]
    %v94 = vld [vmem:[#allocation2 + $0x138] sm:$0xff]
    %v95 = vld [vmem:[#allocation2 + $0x140] sm:$0xff]
    %v96 = vld [vmem:[#allocation2 + $0x148] sm:$0xff]
    %v97 = vld [vmem:[#allocation2 + $0x150] sm:$0xff]
    %v98 = vld [vmem:[#allocation2 + $0x158] sm:$0xff]
    %v99 = vld [vmem:[#allocation2 + $0x160] sm:$0xff]
    %v100 = vld [vmem:[#allocation2 + $0x168] sm:$0xff]
    %v101 = vld [vmem:[#allocation2 + $0x170] sm:$0xff]
    %v102 = vld [vmem:[#allocation2 + $0x178] sm:$0xff]
    %v103 = vld [vmem:[#allocation2 + $0x180] sm:$0xff]
    %v104 = vld [vmem:[#allocation2 + $0x188] sm:$0xff]
    %v105 = vld [vmem:[#allocation2 + $0x190] sm:$0xff]
    %v106 = vld [vmem:[#allocation2 + $0x198] sm:$0xff]
    %v107 = vld [vmem:[#allocation2 + $0x1a0] sm:$0xff]
    %v108 = vld [vmem:[#allocation2 + $0x1a8] sm:$0xff]
    %v109 = vld [vmem:[#allocation2 + $0x1b0] sm:$0xff]
    %v110 = vld [vmem:[#allocation2 + $0x1b8] sm:$0xff]
    %v111 = vld [vmem:[#allocation2 + $0x1c0] sm:$0xff]
    %v112 = vld [vmem:[#allocation2 + $0x1c8] sm:$0xff]
    %v113 = vld [vmem:[#allocation2 + $0x1d0] sm:$0xff]
    %v114 = vld [vmem:[#allocation2 + $0x1d8] sm:$0xff]
    %v115 = vld [vmem:[#allocation2 + $0x1e0] sm:$0xff]
    %v116 = vld [vmem:[#allocation2 + $0x1e8] sm:$0xff]
    %v117 = vld [vmem:[#allocation2 + $0x1f0] sm:$0xff]
    %v118 = vld [vmem:[#allocation2 + $0x1f8] sm:$0xff]
    %v119 = vld [vmem:[#allocation2 + $0x200] sm:$0xff]
    %v120 = vld [vmem:[#allocation2 + $0x208] sm:$0xff]
    %v121 = vld [vmem:[#allocation2 + $0x210] sm:$0xff]
    %v122 = vld [vmem:[#allocation2 + $0x218] sm:$0xff]
    %v123 = vld [vmem:[#allocation2 + $0x220] sm:$0xff]
    %v124 = vld [vmem:[#allocation2 + $0x228] sm:$0xff]
    %v125 = vld [vmem:[#allocation2 + $0x230] sm:$0xff]
    %v126 = vld [vmem:[#allocation2 + $0x238] sm:$0xff]
    %v127 = vld [vmem:[#allocation2 + $0x240] sm:$0xff]
    %v128 = vld [vmem:[#allocation2 + $0x248] sm:$0xff]
    %v129 = vld [vmem:[#allocation2 + $0x250] sm:$0xff]
    %v130 = vld [vmem:[#allocation2 + $0x258] sm:$0xff]
    %v131 = vld [vmem:[#allocation2 + $0x260] sm:$0xff]
    %v132 = vld [vmem:[#allocation2 + $0x268] sm:$0xff]
    %v133 = vld [vmem:[#allocation2 + $0x270] sm:$0xff]
    %v134 = vld [vmem:[#allocation2 + $0x278] sm:$0xff]
    %v135 = vld [vmem:[#allocation2 + $0x280] sm:$0xff]
    %v136 = vld [vmem:[#allocation2 + $0x288] sm:$0xff]
    %v137 = vld [vmem:[#allocation2 + $0x290] sm:$0xff]
    %v138 = vld [vmem:[#allocation2 + $0x298] sm:$0xff]
    %v139 = vld [vmem:[#allocation2 + $0x2a0] sm:$0xff]
    %v140 = vld [vmem:[#allocation2 + $0x2a8] sm:$0xff]
    %v141 = vld [vmem:[#allocation2 + $0x2b0] sm:$0xff]
    %v142 = vld [vmem:[#allocation2 + $0x2b8] sm:$0xff]
    %v143 = vld [vmem:[#allocation2 + $0x2c0] sm:$0xff]
    %v144 = vld [vmem:[#allocation2 + $0x2c8] sm:$0xff]
    %v145 = vld [vmem:[#allocation2 + $0x2d0] sm:$0xff]
    %v146 = vld [vmem:[#allocation2 + $0x2d8] sm:$0xff]
    %v147 = vld [vmem:[#allocation2 + $0x2e0] sm:$0xff]
    %v148 = vld [vmem:[#allocation2 + $0x2e8] sm:$0xff]
    %v149 = vld [vmem:[#allocation2 + $0x2f0] sm:$0xff]
    %v150 = vld [vmem:[#allocation2 + $0x2f8] sm:$0xff]
    %v151 = vld [vmem:[#allocation2 + $0x300] sm:$0xff]
    %v152 = vld [vmem:[#allocation2 + $0x308] sm:$0xff]
    %v153 = vld [vmem:[#allocation2 + $0x310] sm:$0xff]
    %v154 = vld [vmem:[#allocation2 + $0x318] sm:$0xff]
    %v155 = vld [vmem:[#allocation2 + $0x320] sm:$0xff]
    %v156 = vld [vmem:[#allocation2 + $0x328] sm:$0xff]
    %v157 = vld [vmem:[#allocation2 + $0x330] sm:$0xff]
    %v158 = vld [vmem:[#allocation2 + $0x338] sm:$0xff]
    %v159 = vld [vmem:[#allocation2 + $0x340] sm:$0xff]
    %v160 = vld [vmem:[#allocation2 + $0x348] sm:$0xff]
    %v161 = vld [vmem:[#allocation2 + $0x350] sm:$0xff]
    %v162 = vld [vmem:[#allocation2 + $0x358] sm:$0xff]
    %v163 = vld [vmem:[#allocation2 + $0x360] sm:$0xff]
    %v164 = vld [vmem:[#allocation2 + $0x368] sm:$0xff]
    %v165 = vld [vmem:[#allocation2 + $0x370] sm:$0xff]
    %v166 = vld [vmem:[#allocation2 + $0x378] sm:$0xff]
    %v167 = vld [vmem:[#allocation2 + $0x380] sm:$0xff]
    %v168 = vld [vmem:[#allocation2 + $0x388] sm:$0xff]
    %v169 = vld [vmem:[#allocation2 + $0x390] sm:$0xff]
    %v170 = vld [vmem:[#allocation2 + $0x398] sm:$0xff]
    %v171 = vld [vmem:[#allocation2 + $0x3a0] sm:$0xff]
    %v172 = vld [vmem:[#allocation2 + $0x3a8] sm:$0xff]
    %v173 = vld [vmem:[#allocation2 + $0x3b0] sm:$0xff]
    %v174 = vld [vmem:[#allocation2 + $0x3b8] sm:$0xff]
    %v175 = vld [vmem:[#allocation2 + $0x3c0] sm:$0xff]
    %v176 = vld [vmem:[#allocation2 + $0x3c8] sm:$0xff]
    %v177 = vld [vmem:[#allocation2 + $0x3d0] sm:$0xff]
    %v178 = vld [vmem:[#allocation2 + $0x3d8] sm:$0xff]
    %v179 = vld [vmem:[#allocation2 + $0x3e0] sm:$0xff]
    %v180 = vld [vmem:[#allocation2 + $0x3e8] sm:$0xff]
    %v181 = vld [vmem:[#allocation2 + $0x3f0] sm:$0xff]
    %v182 = vld [vmem:[#allocation2 + $0x3f8] sm:$0xff]
    %v183 = vld [vmem:[#allocation2 + $0x400] sm:$0xff]
    %v184 = vld [vmem:[#allocation2 + $0x408] sm:$0xff]
    %v185 = vld [vmem:[#allocation2 + $0x410] sm:$0xff]
    %v186 = vld [vmem:[#allocation2 + $0x418] sm:$0xff]
    %v187 = vld [vmem:[#allocation2 + $0x420] sm:$0xff]
    %v188 = vld [vmem:[#allocation2 + $0x428] sm:$0xff]
    %v189 = vld [vmem:[#allocation2 + $0x430] sm:$0xff]
    %v190 = vld [vmem:[#allocation2 + $0x438] sm:$0xff]
    %v191 = vld [vmem:[#allocation2 + $0x440] sm:$0xff]
    %v192 = vld [vmem:[#allocation2 + $0x448] sm:$0xff]
    %v193 = vld [vmem:[#allocation2 + $0x450] sm:$0xff]
    %v194 = vld [vmem:[#allocation2 + $0x458] sm:$0xff]
    %v195 = vld [vmem:[#allocation2 + $0x460] sm:$0xff]
    %v196 = vld [vmem:[#allocation2 + $0x468] sm:$0xff]
    %v197 = vld [vmem:[#allocation2 + $0x470] sm:$0xff]
    %v198 = vld [vmem:[#allocation2 + $0x478] sm:$0xff]
    %v199 = vld [vmem:[#allocation2 + $0x480] sm:$0xff]
    %v200 = vld [vmem:[#allocation2 + $0x488] sm:$0xff]
    %v201 = vld [vmem:[#allocation2 + $0x490] sm:$0xff]
    %v202 = vld [vmem:[#allocation2 + $0x498] sm:$0xff]
    %v203 = vld [vmem:[#allocation2 + $0x4a0] sm:$0xff]
    %v204 = vld [vmem:[#allocation2 + $0x4a8] sm:$0xff]
    %v205 = vld [vmem:[#allocation2 + $0x4b0] sm:$0xff]
    %v206 = vld [vmem:[#allocation2 + $0x4b8] sm:$0xff]
    %v207 = vld [vmem:[#allocation2 + $0x4c0] sm:$0xff]
    %v208 = vld [vmem:[#allocation2 + $0x4c8] sm:$0xff]
    %v209 = vld [vmem:[#allocation2 + $0x4d0] sm:$0xff]
    %v210 = vld [vmem:[#allocation2 + $0x4d8] sm:$0xff]
    %v211 = vld [vmem:[#allocation2 + $0x4e0] sm:$0xff]
    %v212 = vld [vmem:[#allocation2 + $0x4e8] sm:$0xff]
    %v213 = vld [vmem:[#allocation2 + $0x4f0] sm:$0xff]
    %v214 = vld [vmem:[#allocation2 + $0x4f8] sm:$0xff]
    %v215 = vld [vmem:[#allocation2 + $0x500] sm:$0xff]
    %v216 = vld [vmem:[#allocation2 + $0x508] sm:$0xff]
    %v217 = vld [vmem:[#allocation2 + $0x510] sm:$0xff]
    %v218 = vld [vmem:[#allocation2 + $0x518] sm:$0xff]
    %v219 = vld [vmem:[#allocation2 + $0x520] sm:$0xff]
    %v220 = vld [vmem:[#allocation2 + $0x528] sm:$0xff]
    %v221 = vld [vmem:[#allocation2 + $0x530] sm:$0xff]
    %v222 = vld [vmem:[#allocation2 + $0x538] sm:$0xff]
    %v223 = vld [vmem:[#allocation2 + $0x540] sm:$0xff]
    %v224 = vld [vmem:[#allocation2 + $0x548] sm:$0xff]
    %v225 = vld [vmem:[#allocation2 + $0x550] sm:$0xff]
    %v226 = vld [vmem:[#allocation2 + $0x558] sm:$0xff]
    %v227 = vld [vmem:[#allocation2 + $0x560] sm:$0xff]
    %v228 = vld [vmem:[#allocation2 + $0x568] sm:$0xff]
    %v229 = vld [vmem:[#allocation2 + $0x570] sm:$0xff]
    %v230 = vld [vmem:[#allocation2 + $0x578] sm:$0xff]
    %v231 = vld [vmem:[#allocation2 + $0x580] sm:$0xff]
    %v232 = vld [vmem:[#allocation2 + $0x588] sm:$0xff]
    %v233 = vld [vmem:[#allocation2 + $0x590] sm:$0xff]
    %v234 = vld [vmem:[#allocation2 + $0x598] sm:$0xff]
    %v235 = vld [vmem:[#allocation2 + $0x5a0] sm:$0xff]
    %v236 = vld [vmem:[#allocation2 + $0x5a8] sm:$0xff]
    %v237 = vld [vmem:[#allocation2 + $0x5b0] sm:$0xff]
    %v238 = vld [vmem:[#allocation2 + $0x5b8] sm:$0xff]
    %v239 = vld [vmem:[#allocation2 + $0x5c0] sm:$0xff]
    %v240 = vld [vmem:[#allocation2 + $0x5c8] sm:$0xff]
    %v241 = vld [vmem:[#allocation2 + $0x5d0] sm:$0xff]
    %v242 = vld [vmem:[#allocation2 + $0x5d8] sm:$0xff]
    %v243 = vld [vmem:[#allocation2 + $0x5e0] sm:$0xff]
    %v244 = vld [vmem:[#allocation2 + $0x5e8] sm:$0xff]
    %v245 = vld [vmem:[#allocation2 + $0x5f0] sm:$0xff]
    %v246 = vld [vmem:[#allocation2 + $0x5f8] sm:$0xff]
    %v247 = vpack.c.bf16 %v45, %v43
    %v248 = vpack.c.bf16 %v49, %v47
    %v249 = vpack.c.bf16 %v46, %v44
    %v250 = vpack.c.bf16 %v50, %v48
    %v283 = vunpack.c.l.b16 %v87
    %v284 = vunpack.c.h.b16 %v87
    %v285 = vunpack.c.l.b16 %v88
    %v286 = vunpack.c.h.b16 %v88
    %v287 = vunpack.c.l.b16 %v89
    %v288 = vunpack.c.h.b16 %v89
    %v289 = vunpack.c.l.b16 %v90
    %v290 = vunpack.c.h.b16 %v90
    %v291 = vunpack.c.l.b16 %v91
    %v292 = vunpack.c.h.b16 %v91
    %v293 = vunpack.c.l.b16 %v92
    %v294 = vunpack.c.h.b16 %v92
    %v295 = vunpack.c.l.b16 %v93
    %v296 = vunpack.c.h.b16 %v93
    %v297 = vunpack.c.l.b16 %v94
    %v298 = vunpack.c.h.b16 %v94
    %v299 = vunpack.c.l.b16 %v95
    %v300 = vunpack.c.h.b16 %v95
    %v301 = vunpack.c.l.b16 %v96
    %v302 = vunpack.c.h.b16 %v96
    %v303 = vunpack.c.l.b16 %v97
    %v304 = vunpack.c.h.b16 %v97
    %v305 = vunpack.c.l.b16 %v98
    %v306 = vunpack.c.h.b16 %v98
    %v307 = vunpack.c.l.b16 %v99
    %v308 = vunpack.c.h.b16 %v99
    %v309 = vunpack.c.l.b16 %v100
    %v310 = vunpack.c.h.b16 %v100
    %v311 = vunpack.c.l.b16 %v101
    %v312 = vunpack.c.h.b16 %v101
    %v313 = vunpack.c.l.b16 %v102
    %v314 = vunpack.c.h.b16 %v102
    %v315 = vunpack.c.l.b16 %v103
    %v316 = vunpack.c.h.b16 %v103
    %v317 = vunpack.c.l.b16 %v104
    %v318 = vunpack.c.h.b16 %v104
    %v319 = vunpack.c.l.b16 %v105
    %v320 = vunpack.c.h.b16 %v105
    %v321 = vunpack.c.l.b16 %v106
    %v322 = vunpack.c.h.b16 %v106
    %v323 = vunpack.c.l.b16 %v107
    %v324 = vunpack.c.h.b16 %v107
    %v325 = vunpack.c.l.b16 %v108
    %v326 = vunpack.c.h.b16 %v108
    %v327 = vunpack.c.l.b16 %v109
    %v328 = vunpack.c.h.b16 %v109
    %v329 = vunpack.c.l.b16 %v110
    %v330 = vunpack.c.h.b16 %v110
    %v331 = vunpack.c.l.b16 %v111
    %v332 = vunpack.c.h.b16 %v111
    %v333 = vunpack.c.l.b16 %v112
    %v334 = vunpack.c.h.b16 %v112
    %v335 = vunpack.c.l.b16 %v113
    %v336 = vunpack.c.h.b16 %v113
    %v337 = vunpack.c.l.b16 %v114
    %v338 = vunpack.c.h.b16 %v114
    %v339 = vunpack.c.l.b16 %v115
    %v340 = vunpack.c.h.b16 %v115
    %v341 = vunpack.c.l.b16 %v116
    %v342 = vunpack.c.h.b16 %v116
    %v343 = vunpack.c.l.b16 %v117
    %v344 = vunpack.c.h.b16 %v117
    %v345 = vunpack.c.l.b16 %v118
    %v346 = vunpack.c.h.b16 %v118
    %v347 = vpack.c.b16 %v287, %v283
    %v348 = vpack.c.b16 %v288, %v284
    %v349 = vpack.c.b16 %v289, %v285
    %v350 = vpack.c.b16 %v290, %v286
    %v351 = vpack.c.b16 %v295, %v291
    %v352 = vpack.c.b16 %v296, %v292
    %v353 = vpack.c.b16 %v297, %v293
    %v354 = vpack.c.b16 %v298, %v294
    %v355 = vpack.c.b16 %v303, %v299
    %v356 = vpack.c.b16 %v304, %v300
    %v357 = vpack.c.b16 %v305, %v301
    %v358 = vpack.c.b16 %v306, %v302
    %v359 = vpack.c.b16 %v311, %v307
    %v360 = vpack.c.b16 %v312, %v308
    %v361 = vpack.c.b16 %v313, %v309
    %v362 = vpack.c.b16 %v314, %v310
    %v363 = vpack.c.b16 %v319, %v315
    %v364 = vpack.c.b16 %v320, %v316
    %v365 = vpack.c.b16 %v321, %v317
    %v366 = vpack.c.b16 %v322, %v318
    %v367 = vpack.c.b16 %v327, %v323
    %v368 = vpack.c.b16 %v328, %v324
    %v369 = vpack.c.b16 %v329, %v325
    %v370 = vpack.c.b16 %v330, %v326
    %v371 = vpack.c.b16 %v335, %v331
    %v372 = vpack.c.b16 %v336, %v332
    %v373 = vpack.c.b16 %v337, %v333
    %v374 = vpack.c.b16 %v338, %v334
    %v375 = vpack.c.b16 %v343, %v339
    %v376 = vpack.c.b16 %v344, %v340
    %v377 = vpack.c.b16 %v345, %v341
    %v378 = vpack.c.b16 %v346, %v342
    %411 = vmatpush.bf16.msra.mxu0 %v375
    %412 = vmatpush.bf16.msra.mxu0 %v371
    %413 = vmatpush.bf16.msra.mxu0 %v367
    %414 = vmatpush.bf16.msra.mxu0 %v363
    %415 = vmatpush.bf16.msra.mxu0 %v359
    %416 = vmatpush.bf16.msra.mxu0 %v355
    %417 = vmatpush.bf16.msra.mxu0 %v351
    %418 = vmatpush.bf16.msra.mxu0 %v347
    %419 = vmatmul.bf16.gmra.mxu0 %v249
    %v420 = vpop.f32.mrf.mxu0
    %v421 = vadd.f32 0.0, %v420
    %v422 = vpop.f32.mrf.mxu0
    %v423 = vadd.f32 0.0, %v422
    %424 = vmatmul.bf16.gmra.mxu0 %v250
    %v425 = vpop.f32.mrf.mxu0
    %v426 = vadd.f32 0.0, %v425
    %v427 = vpop.f32.mrf.mxu0
    %v428 = vadd.f32 0.0, %v427
    %429 = vdwg.mxu0
    %430 = vmatpush.bf16.msra.mxu0 %v376
    %431 = vmatpush.bf16.msra.mxu0 %v372
    %432 = vmatpush.bf16.msra.mxu0 %v368
    %433 = vmatpush.bf16.msra.mxu0 %v364
    %434 = vmatpush.bf16.msra.mxu0 %v360
    %435 = vmatpush.bf16.msra.mxu0 %v356
    %436 = vmatpush.bf16.msra.mxu0 %v352
    %437 = vmatpush.bf16.msra.mxu0 %v348
    %438 = vmatmul.bf16.gmra.mxu0 %v249
    %v439 = vpop.f32.mrf.mxu0
    %v440 = vadd.f32 0.0, %v439
    %v441 = vpop.f32.mrf.mxu0
    %v442 = vadd.f32 0.0, %v441
    %443 = vmatmul.bf16.gmra.mxu0 %v250
    %v444 = vpop.f32.mrf.mxu0
    %v445 = vadd.f32 0.0, %v444
    %v446 = vpop.f32.mrf.mxu0
    %v447 = vadd.f32 0.0, %v446
    %448 = vdwg.mxu0
    %449 = vmatpush.bf16.msra.mxu0 %v377
    %450 = vmatpush.bf16.msra.mxu0 %v373
    %451 = vmatpush.bf16.msra.mxu0 %v369
    %452 = vmatpush.bf16.msra.mxu0 %v365
    %453 = vmatpush.bf16.msra.mxu0 %v361
    %454 = vmatpush.bf16.msra.mxu0 %v357
    %455 = vmatpush.bf16.msra.mxu0 %v353
    %456 = vmatpush.bf16.msra.mxu0 %v349
    %457 = vmatmul.bf16.gmra.mxu0 %v249
    %v458 = vpop.f32.mrf.mxu0
    %v459 = vadd.f32 0.0, %v458
    %v460 = vpop.f32.mrf.mxu0
    %v461 = vadd.f32 0.0, %v460
    %462 = vmatmul.bf16.gmra.mxu0 %v250
    %v463 = vpop.f32.mrf.mxu0
    %v464 = vadd.f32 0.0, %v463
    %v465 = vpop.f32.mrf.mxu0
    %v466 = vadd.f32 0.0, %v465
    %467 = vdwg.mxu0
    %468 = vmatpush.bf16.msra.mxu0 %v378
    %469 = vmatpush.bf16.msra.mxu0 %v374
    %470 = vmatpush.bf16.msra.mxu0 %v370
    %471 = vmatpush.bf16.msra.mxu0 %v366
    %472 = vmatpush.bf16.msra.mxu0 %v362
    %473 = vmatpush.bf16.msra.mxu0 %v358
    %474 = vmatpush.bf16.msra.mxu0 %v354
    %475 = vmatpush.bf16.msra.mxu0 %v350
    %476 = vmatmul.bf16.gmra.mxu0 %v249
    %v477 = vpop.f32.mrf.mxu0
    %v478 = vadd.f32 0.0, %v477
    %v479 = vpop.f32.mrf.mxu0
    %v480 = vadd.f32 0.0, %v479
    %481 = vmatmul.bf16.gmra.mxu0 %v250
    %v482 = vpop.f32.mrf.mxu0
    %v483 = vadd.f32 0.0, %v482
    %v484 = vpop.f32.mrf.mxu0
    %v485 = vadd.f32 0.0, %v484
    %486 = vdwg.mxu0
    %v519 = vunpack.c.l.b16 %v55
    %v520 = vunpack.c.h.b16 %v55
    %v521 = vunpack.c.l.b16 %v56
    %v522 = vunpack.c.h.b16 %v56
    %v523 = vunpack.c.l.b16 %v57
    %v524 = vunpack.c.h.b16 %v57
    %v525 = vunpack.c.l.b16 %v58
    %v526 = vunpack.c.h.b16 %v58
    %v527 = vunpack.c.l.b16 %v59
    %v528 = vunpack.c.h.b16 %v59
    %v529 = vunpack.c.l.b16 %v60
    %v530 = vunpack.c.h.b16 %v60
    %v531 = vunpack.c.l.b16 %v61
    %v532 = vunpack.c.h.b16 %v61
    %v533 = vunpack.c.l.b16 %v62
    %v534 = vunpack.c.h.b16 %v62
    %v535 = vunpack.c.l.b16 %v63
    %v536 = vunpack.c.h.b16 %v63
    %v537 = vunpack.c.l.b16 %v64
    %v538 = vunpack.c.h.b16 %v64
    %v539 = vunpack.c.l.b16 %v65
    %v540 = vunpack.c.h.b16 %v65
    %v541 = vunpack.c.l.b16 %v66
    %v542 = vunpack.c.h.b16 %v66
    %v543 = vunpack.c.l.b16 %v67
    %v544 = vunpack.c.h.b16 %v67
    %v545 = vunpack.c.l.b16 %v68
    %v546 = vunpack.c.h.b16 %v68
    %v547 = vunpack.c.l.b16 %v69
    %v548 = vunpack.c.h.b16 %v69
    %v549 = vunpack.c.l.b16 %v70
    %v550 = vunpack.c.h.b16 %v70
    %v551 = vunpack.c.l.b16 %v71
    %v552 = vunpack.c.h.b16 %v71
    %v553 = vunpack.c.l.b16 %v72
    %v554 = vunpack.c.h.b16 %v72
    %v555 = vunpack.c.l.b16 %v73
    %v556 = vunpack.c.h.b16 %v73
    %v557 = vunpack.c.l.b16 %v74
    %v558 = vunpack.c.h.b16 %v74
    %v559 = vunpack.c.l.b16 %v75
    %v560 = vunpack.c.h.b16 %v75
    %v561 = vunpack.c.l.b16 %v76
    %v562 = vunpack.c.h.b16 %v76
    %v563 = vunpack.c.l.b16 %v77
    %v564 = vunpack.c.h.b16 %v77
    %v565 = vunpack.c.l.b16 %v78
    %v566 = vunpack.c.h.b16 %v78
    %v567 = vunpack.c.l.b16 %v79
    %v568 = vunpack.c.h.b16 %v79
    %v569 = vunpack.c.l.b16 %v80
    %v570 = vunpack.c.h.b16 %v80
    %v571 = vunpack.c.l.b16 %v81
    %v572 = vunpack.c.h.b16 %v81
    %v573 = vunpack.c.l.b16 %v82
    %v574 = vunpack.c.h.b16 %v82
    %v575 = vunpack.c.l.b16 %v83
    %v576 = vunpack.c.h.b16 %v83
    %v577 = vunpack.c.l.b16 %v84
    %v578 = vunpack.c.h.b16 %v84
    %v579 = vunpack.c.l.b16 %v85
    %v580 = vunpack.c.h.b16 %v85
    %v581 = vunpack.c.l.b16 %v86
    %v582 = vunpack.c.h.b16 %v86
    %v583 = vpack.c.b16 %v523, %v519
    %v584 = vpack.c.b16 %v524, %v520
    %v585 = vpack.c.b16 %v525, %v521
    %v586 = vpack.c.b16 %v526, %v522
    %v587 = vpack.c.b16 %v531, %v527
    %v588 = vpack.c.b16 %v532, %v528
    %v589 = vpack.c.b16 %v533, %v529
    %v590 = vpack.c.b16 %v534, %v530
    %v591 = vpack.c.b16 %v539, %v535
    %v592 = vpack.c.b16 %v540, %v536
    %v593 = vpack.c.b16 %v541, %v537
    %v594 = vpack.c.b16 %v542, %v538
    %v595 = vpack.c.b16 %v547, %v543
    %v596 = vpack.c.b16 %v548, %v544
    %v597 = vpack.c.b16 %v549, %v545
    %v598 = vpack.c.b16 %v550, %v546
    %v599 = vpack.c.b16 %v555, %v551
    %v600 = vpack.c.b16 %v556, %v552
    %v601 = vpack.c.b16 %v557, %v553
    %v602 = vpack.c.b16 %v558, %v554
    %v603 = vpack.c.b16 %v563, %v559
    %v604 = vpack.c.b16 %v564, %v560
    %v605 = vpack.c.b16 %v565, %v561
    %v606 = vpack.c.b16 %v566, %v562
    %v607 = vpack.c.b16 %v571, %v567
    %v608 = vpack.c.b16 %v572, %v568
    %v609 = vpack.c.b16 %v573, %v569
    %v610 = vpack.c.b16 %v574, %v570
    %v611 = vpack.c.b16 %v579, %v575
    %v612 = vpack.c.b16 %v580, %v576
    %v613 = vpack.c.b16 %v581, %v577
    %v614 = vpack.c.b16 %v582, %v578
    %647 = vmatpush.bf16.msra.mxu0 %v611
    %648 = vmatpush.bf16.msra.mxu0 %v607
    %649 = vmatpush.bf16.msra.mxu0 %v603
    %650 = vmatpush.bf16.msra.mxu0 %v599
    %651 = vmatpush.bf16.msra.mxu0 %v595
    %652 = vmatpush.bf16.msra.mxu0 %v591
    %653 = vmatpush.bf16.msra.mxu0 %v587
    %654 = vmatpush.bf16.msra.mxu0 %v583
    %655 = vmatmul.bf16.gmra.mxu0 %v247
    %v656 = vpop.f32.mrf.mxu0
    %v657 = vadd.f32 %v421, %v656
    %v658 = vpop.f32.mrf.mxu0
    %v659 = vadd.f32 %v423, %v658
    %660 = vmatmul.bf16.gmra.mxu0 %v248
    %v661 = vpop.f32.mrf.mxu0
    %v662 = vadd.f32 %v426, %v661
    %v663 = vpop.f32.mrf.mxu0
    %v664 = vadd.f32 %v428, %v663
    %665 = vdwg.mxu0
    %666 = vmatpush.bf16.msra.mxu0 %v612
    %667 = vmatpush.bf16.msra.mxu0 %v608
    %668 = vmatpush.bf16.msra.mxu0 %v604
    %669 = vmatpush.bf16.msra.mxu0 %v600
    %670 = vmatpush.bf16.msra.mxu0 %v596
    %671 = vmatpush.bf16.msra.mxu0 %v592
    %672 = vmatpush.bf16.msra.mxu0 %v588
    %673 = vmatpush.bf16.msra.mxu0 %v584
    %674 = vmatmul.bf16.gmra.mxu0 %v247
    %v675 = vpop.f32.mrf.mxu0
    %v676 = vadd.f32 %v440, %v675
    %v677 = vpop.f32.mrf.mxu0
    %v678 = vadd.f32 %v442, %v677
    %679 = vmatmul.bf16.gmra.mxu0 %v248
    %v680 = vpop.f32.mrf.mxu0
    %v681 = vadd.f32 %v445, %v680
    %v682 = vpop.f32.mrf.mxu0
    %v683 = vadd.f32 %v447, %v682
    %684 = vdwg.mxu0
    %685 = vmatpush.bf16.msra.mxu0 %v613
    %686 = vmatpush.bf16.msra.mxu0 %v609
    %687 = vmatpush.bf16.msra.mxu0 %v605
    %688 = vmatpush.bf16.msra.mxu0 %v601
    %689 = vmatpush.bf16.msra.mxu0 %v597
    %690 = vmatpush.bf16.msra.mxu0 %v593
    %691 = vmatpush.bf16.msra.mxu0 %v589
    %692 = vmatpush.bf16.msra.mxu0 %v585
    %693 = vmatmul.bf16.gmra.mxu0 %v247
    %v694 = vpop.f32.mrf.mxu0
    %v695 = vadd.f32 %v459, %v694
    %v696 = vpop.f32.mrf.mxu0
    %v697 = vadd.f32 %v461, %v696
    %698 = vmatmul.bf16.gmra.mxu0 %v248
    %v699 = vpop.f32.mrf.mxu0
    %v700 = vadd.f32 %v464, %v699
    %v701 = vpop.f32.mrf.mxu0
    %v702 = vadd.f32 %v466, %v701
    %703 = vdwg.mxu0
    %704 = vmatpush.bf16.msra.mxu0 %v614
    %705 = vmatpush.bf16.msra.mxu0 %v610
    %706 = vmatpush.bf16.msra.mxu0 %v606
    %707 = vmatpush.bf16.msra.mxu0 %v602
    %708 = vmatpush.bf16.msra.mxu0 %v598
    %709 = vmatpush.bf16.msra.mxu0 %v594
    %710 = vmatpush.bf16.msra.mxu0 %v590
    %711 = vmatpush.bf16.msra.mxu0 %v586
    %712 = vmatmul.bf16.gmra.mxu0 %v247
    %v713 = vpop.f32.mrf.mxu0
    %v714 = vadd.f32 %v478, %v713
    %v715 = vpop.f32.mrf.mxu0
    %v716 = vadd.f32 %v480, %v715
    %717 = vmatmul.bf16.gmra.mxu0 %v248
    %v718 = vpop.f32.mrf.mxu0
    %v719 = vadd.f32 %v483, %v718
    %v720 = vpop.f32.mrf.mxu0
    %v721 = vadd.f32 %v485, %v720
    %722 = vdwg.mxu0
    %v723 = vpack.c.bf16 %v47, %v45
    %v724 = vpack.c.bf16 %v51, %v49
    %v757 = vunpack.c.l.b16 %v119
    %v758 = vunpack.c.h.b16 %v119
    %v759 = vunpack.c.l.b16 %v120
    %v760 = vunpack.c.h.b16 %v120
    %v761 = vunpack.c.l.b16 %v121
    %v762 = vunpack.c.h.b16 %v121
    %v763 = vunpack.c.l.b16 %v122
    %v764 = vunpack.c.h.b16 %v122
    %v765 = vunpack.c.l.b16 %v123
    %v766 = vunpack.c.h.b16 %v123
    %v767 = vunpack.c.l.b16 %v124
    %v768 = vunpack.c.h.b16 %v124
    %v769 = vunpack.c.l.b16 %v125
    %v770 = vunpack.c.h.b16 %v125
    %v771 = vunpack.c.l.b16 %v126
    %v772 = vunpack.c.h.b16 %v126
    %v773 = vunpack.c.l.b16 %v127
    %v774 = vunpack.c.h.b16 %v127
    %v775 = vunpack.c.l.b16 %v128
    %v776 = vunpack.c.h.b16 %v128
    %v777 = vunpack.c.l.b16 %v129
    %v778 = vunpack.c.h.b16 %v129
    %v779 = vunpack.c.l.b16 %v130
    %v780 = vunpack.c.h.b16 %v130
    %v781 = vunpack.c.l.b16 %v131
    %v782 = vunpack.c.h.b16 %v131
    %v783 = vunpack.c.l.b16 %v132
    %v784 = vunpack.c.h.b16 %v132
    %v785 = vunpack.c.l.b16 %v133
    %v786 = vunpack.c.h.b16 %v133
    %v787 = vunpack.c.l.b16 %v134
    %v788 = vunpack.c.h.b16 %v134
    %v789 = vunpack.c.l.b16 %v135
    %v790 = vunpack.c.h.b16 %v135
    %v791 = vunpack.c.l.b16 %v136
    %v792 = vunpack.c.h.b16 %v136
    %v793 = vunpack.c.l.b16 %v137
    %v794 = vunpack.c.h.b16 %v137
    %v795 = vunpack.c.l.b16 %v138
    %v796 = vunpack.c.h.b16 %v138
    %v797 = vunpack.c.l.b16 %v139
    %v798 = vunpack.c.h.b16 %v139
    %v799 = vunpack.c.l.b16 %v140
    %v800 = vunpack.c.h.b16 %v140
    %v801 = vunpack.c.l.b16 %v141
    %v802 = vunpack.c.h.b16 %v141
    %v803 = vunpack.c.l.b16 %v142
    %v804 = vunpack.c.h.b16 %v142
    %v805 = vunpack.c.l.b16 %v143
    %v806 = vunpack.c.h.b16 %v143
    %v807 = vunpack.c.l.b16 %v144
    %v808 = vunpack.c.h.b16 %v144
    %v809 = vunpack.c.l.b16 %v145
    %v810 = vunpack.c.h.b16 %v145
    %v811 = vunpack.c.l.b16 %v146
    %v812 = vunpack.c.h.b16 %v146
    %v813 = vunpack.c.l.b16 %v147
    %v814 = vunpack.c.h.b16 %v147
    %v815 = vunpack.c.l.b16 %v148
    %v816 = vunpack.c.h.b16 %v148
    %v817 = vunpack.c.l.b16 %v149
    %v818 = vunpack.c.h.b16 %v149
    %v819 = vunpack.c.l.b16 %v150
    %v820 = vunpack.c.h.b16 %v150
    %v821 = vpack.c.b16 %v761, %v757
    %v822 = vpack.c.b16 %v762, %v758
    %v823 = vpack.c.b16 %v763, %v759
    %v824 = vpack.c.b16 %v764, %v760
    %v825 = vpack.c.b16 %v769, %v765
    %v826 = vpack.c.b16 %v770, %v766
    %v827 = vpack.c.b16 %v771, %v767
    %v828 = vpack.c.b16 %v772, %v768
    %v829 = vpack.c.b16 %v777, %v773
    %v830 = vpack.c.b16 %v778, %v774
    %v831 = vpack.c.b16 %v779, %v775
    %v832 = vpack.c.b16 %v780, %v776
    %v833 = vpack.c.b16 %v785, %v781
    %v834 = vpack.c.b16 %v786, %v782
    %v835 = vpack.c.b16 %v787, %v783
    %v836 = vpack.c.b16 %v788, %v784
    %v837 = vpack.c.b16 %v793, %v789
    %v838 = vpack.c.b16 %v794, %v790
    %v839 = vpack.c.b16 %v795, %v791
    %v840 = vpack.c.b16 %v796, %v792
    %v841 = vpack.c.b16 %v801, %v797
    %v842 = vpack.c.b16 %v802, %v798
    %v843 = vpack.c.b16 %v803, %v799
    %v844 = vpack.c.b16 %v804, %v800
    %v845 = vpack.c.b16 %v809, %v805
    %v846 = vpack.c.b16 %v810, %v806
    %v847 = vpack.c.b16 %v811, %v807
    %v848 = vpack.c.b16 %v812, %v808
    %v849 = vpack.c.b16 %v817, %v813
    %v850 = vpack.c.b16 %v818, %v814
    %v851 = vpack.c.b16 %v819, %v815
    %v852 = vpack.c.b16 %v820, %v816
    %885 = vmatpush.bf16.msra.mxu0 %v849
    %886 = vmatpush.bf16.msra.mxu0 %v845
    %887 = vmatpush.bf16.msra.mxu0 %v841
    %888 = vmatpush.bf16.msra.mxu0 %v837
    %889 = vmatpush.bf16.msra.mxu0 %v833
    %890 = vmatpush.bf16.msra.mxu0 %v829
    %891 = vmatpush.bf16.msra.mxu0 %v825
    %892 = vmatpush.bf16.msra.mxu0 %v821
    %893 = vmatmul.bf16.gmra.mxu0 %v723
    %v894 = vpop.f32.mrf.mxu0
    %v895 = vadd.f32 0.0, %v894
    %v896 = vpop.f32.mrf.mxu0
    %v897 = vadd.f32 0.0, %v896
    %898 = vmatmul.bf16.gmra.mxu0 %v724
    %v899 = vpop.f32.mrf.mxu0
    %v900 = vadd.f32 0.0, %v899
    %v901 = vpop.f32.mrf.mxu0
    %v902 = vadd.f32 0.0, %v901
    %903 = vdwg.mxu0
    %904 = vmatpush.bf16.msra.mxu0 %v850
    %905 = vmatpush.bf16.msra.mxu0 %v846
    %906 = vmatpush.bf16.msra.mxu0 %v842
    %907 = vmatpush.bf16.msra.mxu0 %v838
    %908 = vmatpush.bf16.msra.mxu0 %v834
    %909 = vmatpush.bf16.msra.mxu0 %v830
    %910 = vmatpush.bf16.msra.mxu0 %v826
    %911 = vmatpush.bf16.msra.mxu0 %v822
    %912 = vmatmul.bf16.gmra.mxu0 %v723
    %v913 = vpop.f32.mrf.mxu0
    %v914 = vadd.f32 0.0, %v913
    %v915 = vpop.f32.mrf.mxu0
    %v916 = vadd.f32 0.0, %v915
    %917 = vmatmul.bf16.gmra.mxu0 %v724
    %v918 = vpop.f32.mrf.mxu0
    %v919 = vadd.f32 0.0, %v918
    %v920 = vpop.f32.mrf.mxu0
    %v921 = vadd.f32 0.0, %v920
    %922 = vdwg.mxu0
    %923 = vmatpush.bf16.msra.mxu0 %v851
    %924 = vmatpush.bf16.msra.mxu0 %v847
    %925 = vmatpush.bf16.msra.mxu0 %v843
    %926 = vmatpush.bf16.msra.mxu0 %v839
    %927 = vmatpush.bf16.msra.mxu0 %v835
    %928 = vmatpush.bf16.msra.mxu0 %v831
    %929 = vmatpush.bf16.msra.mxu0 %v827
    %930 = vmatpush.bf16.msra.mxu0 %v823
    %931 = vmatmul.bf16.gmra.mxu0 %v723
    %v932 = vpop.f32.mrf.mxu0
    %v933 = vadd.f32 0.0, %v932
    %v934 = vpop.f32.mrf.mxu0
    %v935 = vadd.f32 0.0, %v934
    %936 = vmatmul.bf16.gmra.mxu0 %v724
    %v937 = vpop.f32.mrf.mxu0
    %v938 = vadd.f32 0.0, %v937
    %v939 = vpop.f32.mrf.mxu0
    %v940 = vadd.f32 0.0, %v939
    %941 = vdwg.mxu0
    %942 = vmatpush.bf16.msra.mxu0 %v852
    %943 = vmatpush.bf16.msra.mxu0 %v848
    %944 = vmatpush.bf16.msra.mxu0 %v844
    %945 = vmatpush.bf16.msra.mxu0 %v840
    %946 = vmatpush.bf16.msra.mxu0 %v836
    %947 = vmatpush.bf16.msra.mxu0 %v832
    %948 = vmatpush.bf16.msra.mxu0 %v828
    %949 = vmatpush.bf16.msra.mxu0 %v824
    %950 = vmatmul.bf16.gmra.mxu0 %v723
    %v951 = vpop.f32.mrf.mxu0
    %v952 = vadd.f32 0.0, %v951
    %v953 = vpop.f32.mrf.mxu0
    %v954 = vadd.f32 0.0, %v953
    %955 = vmatmul.bf16.gmra.mxu0 %v724
    %v956 = vpop.f32.mrf.mxu0
    %v957 = vadd.f32 0.0, %v956
    %v958 = vpop.f32.mrf.mxu0
    %v959 = vadd.f32 0.0, %v958
    %960 = vdwg.mxu0
    %v961 = vadd.f32 %v657, %v895
    %v962 = vadd.f32 %v676, %v914
    %v963 = vadd.f32 %v695, %v933
    %v964 = vadd.f32 %v714, %v952
    %v965 = vadd.f32 %v659, %v897
    %v966 = vadd.f32 %v678, %v916
    %v967 = vadd.f32 %v697, %v935
    %v968 = vadd.f32 %v716, %v954
    %v969 = vadd.f32 %v662, %v900
    %v970 = vadd.f32 %v681, %v919
    %v971 = vadd.f32 %v700, %v938
    %v972 = vadd.f32 %v719, %v957
    %v973 = vadd.f32 %v664, %v902
    %v974 = vadd.f32 %v683, %v921
    %v975 = vadd.f32 %v702, %v940
    %v976 = vadd.f32 %v721, %v959
    %v977 = vpack.c.bf16 %v48, %v46
    %v978 = vpack.c.bf16 %v52, %v50
    %v1011 = vunpack.c.l.b16 %v151
    %v1012 = vunpack.c.h.b16 %v151
    %v1013 = vunpack.c.l.b16 %v152
    %v1014 = vunpack.c.h.b16 %v152
    %v1015 = vunpack.c.l.b16 %v153
    %v1016 = vunpack.c.h.b16 %v153
    %v1017 = vunpack.c.l.b16 %v154
    %v1018 = vunpack.c.h.b16 %v154
    %v1019 = vunpack.c.l.b16 %v155
    %v1020 = vunpack.c.h.b16 %v155
    %v1021 = vunpack.c.l.b16 %v156
    %v1022 = vunpack.c.h.b16 %v156
    %v1023 = vunpack.c.l.b16 %v157
    %v1024 = vunpack.c.h.b16 %v157
    %v1025 = vunpack.c.l.b16 %v158
    %v1026 = vunpack.c.h.b16 %v158
    %v1027 = vunpack.c.l.b16 %v159
    %v1028 = vunpack.c.h.b16 %v159
    %v1029 = vunpack.c.l.b16 %v160
    %v1030 = vunpack.c.h.b16 %v160
    %v1031 = vunpack.c.l.b16 %v161
    %v1032 = vunpack.c.h.b16 %v161
    %v1033 = vunpack.c.l.b16 %v162
    %v1034 = vunpack.c.h.b16 %v162
    %v1035 = vunpack.c.l.b16 %v163
    %v1036 = vunpack.c.h.b16 %v163
    %v1037 = vunpack.c.l.b16 %v164
    %v1038 = vunpack.c.h.b16 %v164
    %v1039 = vunpack.c.l.b16 %v165
    %v1040 = vunpack.c.h.b16 %v165
    %v1041 = vunpack.c.l.b16 %v166
    %v1042 = vunpack.c.h.b16 %v166
    %v1043 = vunpack.c.l.b16 %v167
    %v1044 = vunpack.c.h.b16 %v167
    %v1045 = vunpack.c.l.b16 %v168
    %v1046 = vunpack.c.h.b16 %v168
    %v1047 = vunpack.c.l.b16 %v169
    %v1048 = vunpack.c.h.b16 %v169
    %v1049 = vunpack.c.l.b16 %v170
    %v1050 = vunpack.c.h.b16 %v170
    %v1051 = vunpack.c.l.b16 %v171
    %v1052 = vunpack.c.h.b16 %v171
    %v1053 = vunpack.c.l.b16 %v172
    %v1054 = vunpack.c.h.b16 %v172
    %v1055 = vunpack.c.l.b16 %v173
    %v1056 = vunpack.c.h.b16 %v173
    %v1057 = vunpack.c.l.b16 %v174
    %v1058 = vunpack.c.h.b16 %v174
    %v1059 = vunpack.c.l.b16 %v175
    %v1060 = vunpack.c.h.b16 %v175
    %v1061 = vunpack.c.l.b16 %v176
    %v1062 = vunpack.c.h.b16 %v176
    %v1063 = vunpack.c.l.b16 %v177
    %v1064 = vunpack.c.h.b16 %v177
    %v1065 = vunpack.c.l.b16 %v178
    %v1066 = vunpack.c.h.b16 %v178
    %v1067 = vunpack.c.l.b16 %v179
    %v1068 = vunpack.c.h.b16 %v179
    %v1069 = vunpack.c.l.b16 %v180
    %v1070 = vunpack.c.h.b16 %v180
    %v1071 = vunpack.c.l.b16 %v181
    %v1072 = vunpack.c.h.b16 %v181
    %v1073 = vunpack.c.l.b16 %v182
    %v1074 = vunpack.c.h.b16 %v182
    %v1075 = vpack.c.b16 %v1015, %v1011
    %v1076 = vpack.c.b16 %v1016, %v1012
    %v1077 = vpack.c.b16 %v1017, %v1013
    %v1078 = vpack.c.b16 %v1018, %v1014
    %v1079 = vpack.c.b16 %v1023, %v1019
    %v1080 = vpack.c.b16 %v1024, %v1020
    %v1081 = vpack.c.b16 %v1025, %v1021
    %v1082 = vpack.c.b16 %v1026, %v1022
    %v1083 = vpack.c.b16 %v1031, %v1027
    %v1084 = vpack.c.b16 %v1032, %v1028
    %v1085 = vpack.c.b16 %v1033, %v1029
    %v1086 = vpack.c.b16 %v1034, %v1030
    %v1087 = vpack.c.b16 %v1039, %v1035
    %v1088 = vpack.c.b16 %v1040, %v1036
    %v1089 = vpack.c.b16 %v1041, %v1037
    %v1090 = vpack.c.b16 %v1042, %v1038
    %v1091 = vpack.c.b16 %v1047, %v1043
    %v1092 = vpack.c.b16 %v1048, %v1044
    %v1093 = vpack.c.b16 %v1049, %v1045
    %v1094 = vpack.c.b16 %v1050, %v1046
    %v1095 = vpack.c.b16 %v1055, %v1051
    %v1096 = vpack.c.b16 %v1056, %v1052
    %v1097 = vpack.c.b16 %v1057, %v1053
    %v1098 = vpack.c.b16 %v1058, %v1054
    %v1099 = vpack.c.b16 %v1063, %v1059
    %v1100 = vpack.c.b16 %v1064, %v1060
    %v1101 = vpack.c.b16 %v1065, %v1061
    %v1102 = vpack.c.b16 %v1066, %v1062
    %v1103 = vpack.c.b16 %v1071, %v1067
    %v1104 = vpack.c.b16 %v1072, %v1068
    %v1105 = vpack.c.b16 %v1073, %v1069
    %v1106 = vpack.c.b16 %v1074, %v1070
    %1139 = vmatpush.bf16.msra.mxu0 %v1103
    %1140 = vmatpush.bf16.msra.mxu0 %v1099
    %1141 = vmatpush.bf16.msra.mxu0 %v1095
    %1142 = vmatpush.bf16.msra.mxu0 %v1091
    %1143 = vmatpush.bf16.msra.mxu0 %v1087
    %1144 = vmatpush.bf16.msra.mxu0 %v1083
    %1145 = vmatpush.bf16.msra.mxu0 %v1079
    %1146 = vmatpush.bf16.msra.mxu0 %v1075
    %1147 = vmatmul.bf16.gmra.mxu0 %v977
    %v1148 = vpop.f32.mrf.mxu0
    %v1149 = vadd.f32 0.0, %v1148
    %v1150 = vpop.f32.mrf.mxu0
    %v1151 = vadd.f32 0.0, %v1150
    %1152 = vmatmul.bf16.gmra.mxu0 %v978
    %v1153 = vpop.f32.mrf.mxu0
    %v1154 = vadd.f32 0.0, %v1153
    %v1155 = vpop.f32.mrf.mxu0
    %v1156 = vadd.f32 0.0, %v1155
    %1157 = vdwg.mxu0
    %1158 = vmatpush.bf16.msra.mxu0 %v1104
    %1159 = vmatpush.bf16.msra.mxu0 %v1100
    %1160 = vmatpush.bf16.msra.mxu0 %v1096
    %1161 = vmatpush.bf16.msra.mxu0 %v1092
    %1162 = vmatpush.bf16.msra.mxu0 %v1088
    %1163 = vmatpush.bf16.msra.mxu0 %v1084
    %1164 = vmatpush.bf16.msra.mxu0 %v1080
    %1165 = vmatpush.bf16.msra.mxu0 %v1076
    %1166 = vmatmul.bf16.gmra.mxu0 %v977
    %v1167 = vpop.f32.mrf.mxu0
    %v1168 = vadd.f32 0.0, %v1167
    %v1169 = vpop.f32.mrf.mxu0
    %v1170 = vadd.f32 0.0, %v1169
    %1171 = vmatmul.bf16.gmra.mxu0 %v978
    %v1172 = vpop.f32.mrf.mxu0
    %v1173 = vadd.f32 0.0, %v1172
    %v1174 = vpop.f32.mrf.mxu0
    %v1175 = vadd.f32 0.0, %v1174
    %1176 = vdwg.mxu0
    %1177 = vmatpush.bf16.msra.mxu0 %v1105
    %1178 = vmatpush.bf16.msra.mxu0 %v1101
    %1179 = vmatpush.bf16.msra.mxu0 %v1097
    %1180 = vmatpush.bf16.msra.mxu0 %v1093
    %1181 = vmatpush.bf16.msra.mxu0 %v1089
    %1182 = vmatpush.bf16.msra.mxu0 %v1085
    %1183 = vmatpush.bf16.msra.mxu0 %v1081
    %1184 = vmatpush.bf16.msra.mxu0 %v1077
    %1185 = vmatmul.bf16.gmra.mxu0 %v977
    %v1186 = vpop.f32.mrf.mxu0
    %v1187 = vadd.f32 0.0, %v1186
    %v1188 = vpop.f32.mrf.mxu0
    %v1189 = vadd.f32 0.0, %v1188
    %1190 = vmatmul.bf16.gmra.mxu0 %v978
    %v1191 = vpop.f32.mrf.mxu0
    %v1192 = vadd.f32 0.0, %v1191
    %v1193 = vpop.f32.mrf.mxu0
    %v1194 = vadd.f32 0.0, %v1193
    %1195 = vdwg.mxu0
    %1196 = vmatpush.bf16.msra.mxu0 %v1106
    %1197 = vmatpush.bf16.msra.mxu0 %v1102
    %1198 = vmatpush.bf16.msra.mxu0 %v1098
    %1199 = vmatpush.bf16.msra.mxu0 %v1094
    %1200 = vmatpush.bf16.msra.mxu0 %v1090
    %1201 = vmatpush.bf16.msra.mxu0 %v1086
    %1202 = vmatpush.bf16.msra.mxu0 %v1082
    %1203 = vmatpush.bf16.msra.mxu0 %v1078
    %1204 = vmatmul.bf16.gmra.mxu0 %v977
    %v1205 = vpop.f32.mrf.mxu0
    %v1206 = vadd.f32 0.0, %v1205
    %v1207 = vpop.f32.mrf.mxu0
    %v1208 = vadd.f32 0.0, %v1207
    %1209 = vmatmul.bf16.gmra.mxu0 %v978
    %v1210 = vpop.f32.mrf.mxu0
    %v1211 = vadd.f32 0.0, %v1210
    %v1212 = vpop.f32.mrf.mxu0
    %v1213 = vadd.f32 0.0, %v1212
    %1214 = vdwg.mxu0
    %v1215 = vadd.f32 %v961, %v1149
    %v1216 = vadd.f32 %v962, %v1168
    %v1217 = vadd.f32 %v963, %v1187
    %v1218 = vadd.f32 %v964, %v1206
    %v1219 = vadd.f32 %v965, %v1151
    %v1220 = vadd.f32 %v966, %v1170
    %v1221 = vadd.f32 %v967, %v1189
    %v1222 = vadd.f32 %v968, %v1208
    %v1223 = vadd.f32 %v969, %v1154
    %v1224 = vadd.f32 %v970, %v1173
    %v1225 = vadd.f32 %v971, %v1192
    %v1226 = vadd.f32 %v972, %v1211
    %v1227 = vadd.f32 %v973, %v1156
    %v1228 = vadd.f32 %v974, %v1175
    %v1229 = vadd.f32 %v975, %v1194
    %v1230 = vadd.f32 %v976, %v1213
    %v1231 = vpack.c.bf16 %v53, %v51
    %v1264 = vunpack.c.l.b16 %v183
    %v1265 = vunpack.c.h.b16 %v183
    %v1266 = vunpack.c.l.b16 %v184
    %v1267 = vunpack.c.h.b16 %v184
    %v1268 = vunpack.c.l.b16 %v185
    %v1269 = vunpack.c.h.b16 %v185
    %v1270 = vunpack.c.l.b16 %v186
    %v1271 = vunpack.c.h.b16 %v186
    %v1272 = vunpack.c.l.b16 %v187
    %v1273 = vunpack.c.h.b16 %v187
    %v1274 = vunpack.c.l.b16 %v188
    %v1275 = vunpack.c.h.b16 %v188
    %v1276 = vunpack.c.l.b16 %v189
    %v1277 = vunpack.c.h.b16 %v189
    %v1278 = vunpack.c.l.b16 %v190
    %v1279 = vunpack.c.h.b16 %v190
    %v1280 = vunpack.c.l.b16 %v191
    %v1281 = vunpack.c.h.b16 %v191
    %v1282 = vunpack.c.l.b16 %v192
    %v1283 = vunpack.c.h.b16 %v192
    %v1284 = vunpack.c.l.b16 %v193
    %v1285 = vunpack.c.h.b16 %v193
    %v1286 = vunpack.c.l.b16 %v194
    %v1287 = vunpack.c.h.b16 %v194
    %v1288 = vunpack.c.l.b16 %v195
    %v1289 = vunpack.c.h.b16 %v195
    %v1290 = vunpack.c.l.b16 %v196
    %v1291 = vunpack.c.h.b16 %v196
    %v1292 = vunpack.c.l.b16 %v197
    %v1293 = vunpack.c.h.b16 %v197
    %v1294 = vunpack.c.l.b16 %v198
    %v1295 = vunpack.c.h.b16 %v198
    %v1296 = vunpack.c.l.b16 %v199
    %v1297 = vunpack.c.h.b16 %v199
    %v1298 = vunpack.c.l.b16 %v200
    %v1299 = vunpack.c.h.b16 %v200
    %v1300 = vunpack.c.l.b16 %v201
    %v1301 = vunpack.c.h.b16 %v201
    %v1302 = vunpack.c.l.b16 %v202
    %v1303 = vunpack.c.h.b16 %v202
    %v1304 = vunpack.c.l.b16 %v203
    %v1305 = vunpack.c.h.b16 %v203
    %v1306 = vunpack.c.l.b16 %v204
    %v1307 = vunpack.c.h.b16 %v204
    %v1308 = vunpack.c.l.b16 %v205
    %v1309 = vunpack.c.h.b16 %v205
    %v1310 = vunpack.c.l.b16 %v206
    %v1311 = vunpack.c.h.b16 %v206
    %v1312 = vunpack.c.l.b16 %v207
    %v1313 = vunpack.c.h.b16 %v207
    %v1314 = vunpack.c.l.b16 %v208
    %v1315 = vunpack.c.h.b16 %v208
    %v1316 = vunpack.c.l.b16 %v209
    %v1317 = vunpack.c.h.b16 %v209
    %v1318 = vunpack.c.l.b16 %v210
    %v1319 = vunpack.c.h.b16 %v210
    %v1320 = vunpack.c.l.b16 %v211
    %v1321 = vunpack.c.h.b16 %v211
    %v1322 = vunpack.c.l.b16 %v212
    %v1323 = vunpack.c.h.b16 %v212
    %v1324 = vunpack.c.l.b16 %v213
    %v1325 = vunpack.c.h.b16 %v213
    %v1326 = vunpack.c.l.b16 %v214
    %v1327 = vunpack.c.h.b16 %v214
    %v1328 = vpack.c.b16 %v1268, %v1264
    %v1329 = vpack.c.b16 %v1269, %v1265
    %v1330 = vpack.c.b16 %v1270, %v1266
    %v1331 = vpack.c.b16 %v1271, %v1267
    %v1332 = vpack.c.b16 %v1276, %v1272
    %v1333 = vpack.c.b16 %v1277, %v1273
    %v1334 = vpack.c.b16 %v1278, %v1274
    %v1335 = vpack.c.b16 %v1279, %v1275
    %v1336 = vpack.c.b16 %v1284, %v1280
    %v1337 = vpack.c.b16 %v1285, %v1281
    %v1338 = vpack.c.b16 %v1286, %v1282
    %v1339 = vpack.c.b16 %v1287, %v1283
    %v1340 = vpack.c.b16 %v1292, %v1288
    %v1341 = vpack.c.b16 %v1293, %v1289
    %v1342 = vpack.c.b16 %v1294, %v1290
    %v1343 = vpack.c.b16 %v1295, %v1291
    %v1344 = vpack.c.b16 %v1300, %v1296
    %v1345 = vpack.c.b16 %v1301, %v1297
    %v1346 = vpack.c.b16 %v1302, %v1298
    %v1347 = vpack.c.b16 %v1303, %v1299
    %v1348 = vpack.c.b16 %v1308, %v1304
    %v1349 = vpack.c.b16 %v1309, %v1305
    %v1350 = vpack.c.b16 %v1310, %v1306
    %v1351 = vpack.c.b16 %v1311, %v1307
    %v1352 = vpack.c.b16 %v1316, %v1312
    %v1353 = vpack.c.b16 %v1317, %v1313
    %v1354 = vpack.c.b16 %v1318, %v1314
    %v1355 = vpack.c.b16 %v1319, %v1315
    %v1356 = vpack.c.b16 %v1324, %v1320
    %v1357 = vpack.c.b16 %v1325, %v1321
    %v1358 = vpack.c.b16 %v1326, %v1322
    %v1359 = vpack.c.b16 %v1327, %v1323
    %1392 = vmatpush.bf16.msra.mxu0 %v1356
    %1393 = vmatpush.bf16.msra.mxu0 %v1352
    %1394 = vmatpush.bf16.msra.mxu0 %v1348
    %1395 = vmatpush.bf16.msra.mxu0 %v1344
    %1396 = vmatpush.bf16.msra.mxu0 %v1340
    %1397 = vmatpush.bf16.msra.mxu0 %v1336
    %1398 = vmatpush.bf16.msra.mxu0 %v1332
    %1399 = vmatpush.bf16.msra.mxu0 %v1328
    %1400 = vmatmul.bf16.gmra.mxu0 %v248
    %v1401 = vpop.f32.mrf.mxu0
    %v1402 = vadd.f32 0.0, %v1401
    %v1403 = vpop.f32.mrf.mxu0
    %v1404 = vadd.f32 0.0, %v1403
    %1405 = vmatmul.bf16.gmra.mxu0 %v1231
    %v1406 = vpop.f32.mrf.mxu0
    %v1407 = vadd.f32 0.0, %v1406
    %v1408 = vpop.f32.mrf.mxu0
    %v1409 = vadd.f32 0.0, %v1408
    %1410 = vdwg.mxu0
    %1411 = vmatpush.bf16.msra.mxu0 %v1357
    %1412 = vmatpush.bf16.msra.mxu0 %v1353
    %1413 = vmatpush.bf16.msra.mxu0 %v1349
    %1414 = vmatpush.bf16.msra.mxu0 %v1345
    %1415 = vmatpush.bf16.msra.mxu0 %v1341
    %1416 = vmatpush.bf16.msra.mxu0 %v1337
    %1417 = vmatpush.bf16.msra.mxu0 %v1333
    %1418 = vmatpush.bf16.msra.mxu0 %v1329
    %1419 = vmatmul.bf16.gmra.mxu0 %v248
    %v1420 = vpop.f32.mrf.mxu0
    %v1421 = vadd.f32 0.0, %v1420
    %v1422 = vpop.f32.mrf.mxu0
    %v1423 = vadd.f32 0.0, %v1422
    %1424 = vmatmul.bf16.gmra.mxu0 %v1231
    %v1425 = vpop.f32.mrf.mxu0
    %v1426 = vadd.f32 0.0, %v1425
    %v1427 = vpop.f32.mrf.mxu0
    %v1428 = vadd.f32 0.0, %v1427
    %1429 = vdwg.mxu0
    %1430 = vmatpush.bf16.msra.mxu0 %v1358
    %1431 = vmatpush.bf16.msra.mxu0 %v1354
    %1432 = vmatpush.bf16.msra.mxu0 %v1350
    %1433 = vmatpush.bf16.msra.mxu0 %v1346
    %1434 = vmatpush.bf16.msra.mxu0 %v1342
    %1435 = vmatpush.bf16.msra.mxu0 %v1338
    %1436 = vmatpush.bf16.msra.mxu0 %v1334
    %1437 = vmatpush.bf16.msra.mxu0 %v1330
    %1438 = vmatmul.bf16.gmra.mxu0 %v248
    %v1439 = vpop.f32.mrf.mxu0
    %v1440 = vadd.f32 0.0, %v1439
    %v1441 = vpop.f32.mrf.mxu0
    %v1442 = vadd.f32 0.0, %v1441
    %1443 = vmatmul.bf16.gmra.mxu0 %v1231
    %v1444 = vpop.f32.mrf.mxu0
    %v1445 = vadd.f32 0.0, %v1444
    %v1446 = vpop.f32.mrf.mxu0
    %v1447 = vadd.f32 0.0, %v1446
    %1448 = vdwg.mxu0
    %1449 = vmatpush.bf16.msra.mxu0 %v1359
    %1450 = vmatpush.bf16.msra.mxu0 %v1355
    %1451 = vmatpush.bf16.msra.mxu0 %v1351
    %1452 = vmatpush.bf16.msra.mxu0 %v1347
    %1453 = vmatpush.bf16.msra.mxu0 %v1343
    %1454 = vmatpush.bf16.msra.mxu0 %v1339
    %1455 = vmatpush.bf16.msra.mxu0 %v1335
    %1456 = vmatpush.bf16.msra.mxu0 %v1331
    %1457 = vmatmul.bf16.gmra.mxu0 %v248
    %v1458 = vpop.f32.mrf.mxu0
    %v1459 = vadd.f32 0.0, %v1458
    %v1460 = vpop.f32.mrf.mxu0
    %v1461 = vadd.f32 0.0, %v1460
    %1462 = vmatmul.bf16.gmra.mxu0 %v1231
    %v1463 = vpop.f32.mrf.mxu0
    %v1464 = vadd.f32 0.0, %v1463
    %v1465 = vpop.f32.mrf.mxu0
    %v1466 = vadd.f32 0.0, %v1465
    %1467 = vdwg.mxu0
    %v1468 = vadd.f32 %v1215, %v1402
    %v1469 = vadd.f32 %v1216, %v1421
    %v1470 = vadd.f32 %v1217, %v1440
    %v1471 = vadd.f32 %v1218, %v1459
    %v1472 = vadd.f32 %v1219, %v1404
    %v1473 = vadd.f32 %v1220, %v1423
    %v1474 = vadd.f32 %v1221, %v1442
    %v1475 = vadd.f32 %v1222, %v1461
    %v1476 = vadd.f32 %v1223, %v1407
    %v1477 = vadd.f32 %v1224, %v1426
    %v1478 = vadd.f32 %v1225, %v1445
    %v1479 = vadd.f32 %v1226, %v1464
    %v1480 = vadd.f32 %v1227, %v1409
    %v1481 = vadd.f32 %v1228, %v1428
    %v1482 = vadd.f32 %v1229, %v1447
    %v1483 = vadd.f32 %v1230, %v1466
    %v1484 = vpack.c.bf16 %v54, %v52
    %v1517 = vunpack.c.l.b16 %v215
    %v1518 = vunpack.c.h.b16 %v215
    %v1519 = vunpack.c.l.b16 %v216
    %v1520 = vunpack.c.h.b16 %v216
    %v1521 = vunpack.c.l.b16 %v217
    %v1522 = vunpack.c.h.b16 %v217
    %v1523 = vunpack.c.l.b16 %v218
    %v1524 = vunpack.c.h.b16 %v218
    %v1525 = vunpack.c.l.b16 %v219
    %v1526 = vunpack.c.h.b16 %v219
    %v1527 = vunpack.c.l.b16 %v220
    %v1528 = vunpack.c.h.b16 %v220
    %v1529 = vunpack.c.l.b16 %v221
    %v1530 = vunpack.c.h.b16 %v221
    %v1531 = vunpack.c.l.b16 %v222
    %v1532 = vunpack.c.h.b16 %v222
    %v1533 = vunpack.c.l.b16 %v223
    %v1534 = vunpack.c.h.b16 %v223
    %v1535 = vunpack.c.l.b16 %v224
    %v1536 = vunpack.c.h.b16 %v224
    %v1537 = vunpack.c.l.b16 %v225
    %v1538 = vunpack.c.h.b16 %v225
    %v1539 = vunpack.c.l.b16 %v226
    %v1540 = vunpack.c.h.b16 %v226
    %v1541 = vunpack.c.l.b16 %v227
    %v1542 = vunpack.c.h.b16 %v227
    %v1543 = vunpack.c.l.b16 %v228
    %v1544 = vunpack.c.h.b16 %v228
    %v1545 = vunpack.c.l.b16 %v229
    %v1546 = vunpack.c.h.b16 %v229
    %v1547 = vunpack.c.l.b16 %v230
    %v1548 = vunpack.c.h.b16 %v230
    %v1549 = vunpack.c.l.b16 %v231
    %v1550 = vunpack.c.h.b16 %v231
    %v1551 = vunpack.c.l.b16 %v232
    %v1552 = vunpack.c.h.b16 %v232
    %v1553 = vunpack.c.l.b16 %v233
    %v1554 = vunpack.c.h.b16 %v233
    %v1555 = vunpack.c.l.b16 %v234
    %v1556 = vunpack.c.h.b16 %v234
    %v1557 = vunpack.c.l.b16 %v235
    %v1558 = vunpack.c.h.b16 %v235
    %v1559 = vunpack.c.l.b16 %v236
    %v1560 = vunpack.c.h.b16 %v236
    %v1561 = vunpack.c.l.b16 %v237
    %v1562 = vunpack.c.h.b16 %v237
    %v1563 = vunpack.c.l.b16 %v238
    %v1564 = vunpack.c.h.b16 %v238
    %v1565 = vunpack.c.l.b16 %v239
    %v1566 = vunpack.c.h.b16 %v239
    %v1567 = vunpack.c.l.b16 %v240
    %v1568 = vunpack.c.h.b16 %v240
    %v1569 = vunpack.c.l.b16 %v241
    %v1570 = vunpack.c.h.b16 %v241
    %v1571 = vunpack.c.l.b16 %v242
    %v1572 = vunpack.c.h.b16 %v242
    %v1573 = vunpack.c.l.b16 %v243
    %v1574 = vunpack.c.h.b16 %v243
    %v1575 = vunpack.c.l.b16 %v244
    %v1576 = vunpack.c.h.b16 %v244
    %v1577 = vunpack.c.l.b16 %v245
    %v1578 = vunpack.c.h.b16 %v245
    %v1579 = vunpack.c.l.b16 %v246
    %v1580 = vunpack.c.h.b16 %v246
    %v1581 = vpack.c.b16 %v1521, %v1517
    %v1582 = vpack.c.b16 %v1522, %v1518
    %v1583 = vpack.c.b16 %v1523, %v1519
    %v1584 = vpack.c.b16 %v1524, %v1520
    %v1585 = vpack.c.b16 %v1529, %v1525
    %v1586 = vpack.c.b16 %v1530, %v1526
    %v1587 = vpack.c.b16 %v1531, %v1527
    %v1588 = vpack.c.b16 %v1532, %v1528
    %v1589 = vpack.c.b16 %v1537, %v1533
    %v1590 = vpack.c.b16 %v1538, %v1534
    %v1591 = vpack.c.b16 %v1539, %v1535
    %v1592 = vpack.c.b16 %v1540, %v1536
    %v1593 = vpack.c.b16 %v1545, %v1541
    %v1594 = vpack.c.b16 %v1546, %v1542
    %v1595 = vpack.c.b16 %v1547, %v1543
    %v1596 = vpack.c.b16 %v1548, %v1544
    %v1597 = vpack.c.b16 %v1553, %v1549
    %v1598 = vpack.c.b16 %v1554, %v1550
    %v1599 = vpack.c.b16 %v1555, %v1551
    %v1600 = vpack.c.b16 %v1556, %v1552
    %v1601 = vpack.c.b16 %v1561, %v1557
    %v1602 = vpack.c.b16 %v1562, %v1558
    %v1603 = vpack.c.b16 %v1563, %v1559
    %v1604 = vpack.c.b16 %v1564, %v1560
    %v1605 = vpack.c.b16 %v1569, %v1565
    %v1606 = vpack.c.b16 %v1570, %v1566
    %v1607 = vpack.c.b16 %v1571, %v1567
    %v1608 = vpack.c.b16 %v1572, %v1568
    %v1609 = vpack.c.b16 %v1577, %v1573
    %v1610 = vpack.c.b16 %v1578, %v1574
    %v1611 = vpack.c.b16 %v1579, %v1575
    %v1612 = vpack.c.b16 %v1580, %v1576
    %1645 = vmatpush.bf16.msra.mxu0 %v1609
    %1646 = vmatpush.bf16.msra.mxu0 %v1605
    %1647 = vmatpush.bf16.msra.mxu0 %v1601
    %1648 = vmatpush.bf16.msra.mxu0 %v1597
    %1649 = vmatpush.bf16.msra.mxu0 %v1593
    %1650 = vmatpush.bf16.msra.mxu0 %v1589
    %1651 = vmatpush.bf16.msra.mxu0 %v1585
    %1652 = vmatpush.bf16.msra.mxu0 %v1581
    %1653 = vmatmul.bf16.gmra.mxu0 %v250
    %v1654 = vpop.f32.mrf.mxu0
    %v1655 = vadd.f32 0.0, %v1654
    %v1656 = vpop.f32.mrf.mxu0
    %v1657 = vadd.f32 0.0, %v1656
    %1658 = vmatmul.bf16.gmra.mxu0 %v1484
    %v1659 = vpop.f32.mrf.mxu0
    %v1660 = vadd.f32 0.0, %v1659
    %v1661 = vpop.f32.mrf.mxu0
    %v1662 = vadd.f32 0.0, %v1661
    %1663 = vdwg.mxu0
    %1664 = vmatpush.bf16.msra.mxu0 %v1610
    %1665 = vmatpush.bf16.msra.mxu0 %v1606
    %1666 = vmatpush.bf16.msra.mxu0 %v1602
    %1667 = vmatpush.bf16.msra.mxu0 %v1598
    %1668 = vmatpush.bf16.msra.mxu0 %v1594
    %1669 = vmatpush.bf16.msra.mxu0 %v1590
    %1670 = vmatpush.bf16.msra.mxu0 %v1586
    %1671 = vmatpush.bf16.msra.mxu0 %v1582
    %1672 = vmatmul.bf16.gmra.mxu0 %v250
    %v1673 = vpop.f32.mrf.mxu0
    %v1674 = vadd.f32 0.0, %v1673
    %v1675 = vpop.f32.mrf.mxu0
    %v1676 = vadd.f32 0.0, %v1675
    %1677 = vmatmul.bf16.gmra.mxu0 %v1484
    %v1678 = vpop.f32.mrf.mxu0
    %v1679 = vadd.f32 0.0, %v1678
    %v1680 = vpop.f32.mrf.mxu0
    %v1681 = vadd.f32 0.0, %v1680
    %1682 = vdwg.mxu0
    %1683 = vmatpush.bf16.msra.mxu0 %v1611
    %1684 = vmatpush.bf16.msra.mxu0 %v1607
    %1685 = vmatpush.bf16.msra.mxu0 %v1603
    %1686 = vmatpush.bf16.msra.mxu0 %v1599
    %1687 = vmatpush.bf16.msra.mxu0 %v1595
    %1688 = vmatpush.bf16.msra.mxu0 %v1591
    %1689 = vmatpush.bf16.msra.mxu0 %v1587
    %1690 = vmatpush.bf16.msra.mxu0 %v1583
    %1691 = vmatmul.bf16.gmra.mxu0 %v250
    %v1692 = vpop.f32.mrf.mxu0
    %v1693 = vadd.f32 0.0, %v1692
    %v1694 = vpop.f32.mrf.mxu0
    %v1695 = vadd.f32 0.0, %v1694
    %1696 = vmatmul.bf16.gmra.mxu0 %v1484
    %v1697 = vpop.f32.mrf.mxu0
    %v1698 = vadd.f32 0.0, %v1697
    %v1699 = vpop.f32.mrf.mxu0
    %v1700 = vadd.f32 0.0, %v1699
    %1701 = vdwg.mxu0
    %1702 = vmatpush.bf16.msra.mxu0 %v1612
    %1703 = vmatpush.bf16.msra.mxu0 %v1608
    %1704 = vmatpush.bf16.msra.mxu0 %v1604
    %1705 = vmatpush.bf16.msra.mxu0 %v1600
    %1706 = vmatpush.bf16.msra.mxu0 %v1596
    %1707 = vmatpush.bf16.msra.mxu0 %v1592
    %1708 = vmatpush.bf16.msra.mxu0 %v1588
    %1709 = vmatpush.bf16.msra.mxu0 %v1584
    %1710 = vmatmul.bf16.gmra.mxu0 %v250
    %v1711 = vpop.f32.mrf.mxu0
    %v1712 = vadd.f32 0.0, %v1711
    %v1713 = vpop.f32.mrf.mxu0
    %v1714 = vadd.f32 0.0, %v1713
    %1715 = vmatmul.bf16.gmra.mxu0 %v1484
    %v1716 = vpop.f32.mrf.mxu0
    %v1717 = vadd.f32 0.0, %v1716
    %v1718 = vpop.f32.mrf.mxu0
    %v1719 = vadd.f32 0.0, %v1718
    %1720 = vdwg.mxu0
    %v1721 = vadd.f32 %v1468, %v1655
    %v1722 = vadd.f32 %v1469, %v1674
    %v1723 = vadd.f32 %v1470, %v1693
    %v1724 = vadd.f32 %v1471, %v1712
    %v1725 = vadd.f32 %v1472, %v1657
    %v1726 = vadd.f32 %v1473, %v1676
    %v1727 = vadd.f32 %v1474, %v1695
    %v1728 = vadd.f32 %v1475, %v1714
    %v1729 = vadd.f32 %v1476, %v1660
    %v1730 = vadd.f32 %v1477, %v1679
    %v1731 = vadd.f32 %v1478, %v1698
    %v1732 = vadd.f32 %v1479, %v1717
    %v1733 = vadd.f32 %v1480, %v1662
    %v1734 = vadd.f32 %v1481, %v1681
    %v1735 = vadd.f32 %v1482, %v1700
    %v1736 = vadd.f32 %v1483, %v1719
    %v1737 = vmax.f32 %v1721, %v1722
    %v1738 = vmax.f32 %v1725, %v1726
    %v1739 = vmax.f32 %v1729, %v1730
    %v1740 = vmax.f32 %v1733, %v1734
    %v1741 = vmax.f32 %v1723, %v1724
    %v1742 = vmax.f32 %v1727, %v1728
    %v1743 = vmax.f32 %v1731, %v1732
    %v1744 = vmax.f32 %v1735, %v1736
    %v1745 = vmax.f32 %v1737, %v1741
    %v1746 = vmax.f32 %v1738, %v1742
    %v1747 = vmax.f32 %v1739, %v1743
    %v1748 = vmax.f32 %v1740, %v1744
    %v1749 = vld [vmem:[%s2] sm:$0x1]
    %v1751 = vperm.slane %v1749, 0
    %v1753 = vadd.f32 %v1745, %v1751
    %v1754 = vadd.f32 %v1746, %v1751
    %v1755 = vadd.f32 %v1747, %v1751
    %v1756 = vadd.f32 %v1748, %v1751
    %v1757 = vmax.f32 %v1753, 0.0
    %v1758 = vmax.f32 %v1754, 0.0
    %v1759 = vmax.f32 %v1755, 0.0
    %v1760 = vmax.f32 %v1756, 0.0
    %v1761 = vld [vmem:[%s3] sm:$0xf]
    %v1762 = vld [vmem:[%s3 + $0x4] sm:$0xf]
    %v1763 = vld [vmem:[%s3 + $0x8] sm:$0xf]
    %v1764 = vld [vmem:[%s3 + $0xc] sm:$0xf]
    %v1765 = vld [vmem:[%s3 + $0x10] sm:$0xf]
    %v1766 = vld [vmem:[%s3 + $0x14] sm:$0xf]
    %v1767 = vld [vmem:[%s3 + $0x18] sm:$0xf]
    %v1768 = vld [vmem:[%s3 + $0x1c] sm:$0xf]
    %v1769 = vld [vmem:[%s3 + $0x20] sm:$0xf]
    %v1770 = vld [vmem:[%s3 + $0x24] sm:$0xf]
    %v1771 = vld [vmem:[%s3 + $0x28] sm:$0xf]
    %v1772 = vld [vmem:[%s3 + $0x2c] sm:$0xf]
    %v1773 = vld [vmem:[%s3 + $0x30] sm:$0xf]
    %v1774 = vld [vmem:[%s3 + $0x34] sm:$0xf]
    %v1775 = vld [vmem:[%s3 + $0x38] sm:$0xf]
    %v1776 = vld [vmem:[%s3 + $0x3c] sm:$0xf]
    %v1777 = vld [vmem:[%s3 + $0x40] sm:$0xf]
    %v1778 = vld [vmem:[%s3 + $0x44] sm:$0xf]
    %v1779 = vld [vmem:[%s3 + $0x48] sm:$0xf]
    %v1780 = vld [vmem:[%s3 + $0x4c] sm:$0xf]
    %v1781 = vld [vmem:[%s3 + $0x50] sm:$0xf]
    %v1782 = vld [vmem:[%s3 + $0x54] sm:$0xf]
    %v1783 = vld [vmem:[%s3 + $0x58] sm:$0xf]
    %v1784 = vld [vmem:[%s3 + $0x5c] sm:$0xf]
    %v1785 = vld [vmem:[%s3 + $0x60] sm:$0xf]
    %v1786 = vld [vmem:[%s3 + $0x64] sm:$0xf]
    %v1787 = vld [vmem:[%s3 + $0x68] sm:$0xf]
    %v1788 = vld [vmem:[%s3 + $0x6c] sm:$0xf]
    %v1789 = vld [vmem:[%s3 + $0x70] sm:$0xf]
    %v1790 = vld [vmem:[%s3 + $0x74] sm:$0xf]
    %v1791 = vld [vmem:[%s3 + $0x78] sm:$0xf]
    %v1792 = vld [vmem:[%s3 + $0x7c] sm:$0xf]
    %v1793 = vld [vmem:[%s3 + $0x80] sm:$0xf]
    %v1794 = vld [vmem:[%s3 + $0x84] sm:$0xf]
    %v1795 = vld [vmem:[%s3 + $0x88] sm:$0xf]
    %v1796 = vld [vmem:[%s3 + $0x8c] sm:$0xf]
    %v1797 = vld [vmem:[%s3 + $0x90] sm:$0xf]
    %v1798 = vld [vmem:[%s3 + $0x94] sm:$0xf]
    %v1799 = vld [vmem:[%s3 + $0x98] sm:$0xf]
    %v1800 = vld [vmem:[%s3 + $0x9c] sm:$0xf]
    %v1801 = vld [vmem:[%s3 + $0xa0] sm:$0xf]
    %v1802 = vld [vmem:[%s3 + $0xa4] sm:$0xf]
    %v1803 = vld [vmem:[%s3 + $0xa8] sm:$0xf]
    %v1804 = vld [vmem:[%s3 + $0xac] sm:$0xf]
    %v1805 = vld [vmem:[%s3 + $0xb0] sm:$0xf]
    %v1806 = vld [vmem:[%s3 + $0xb4] sm:$0xf]
    %v1807 = vld [vmem:[%s3 + $0xb8] sm:$0xf]
    %v1808 = vld [vmem:[%s3 + $0xbc] sm:$0xf]
    %v1809 = vld [vmem:[%s3 + $0xc0] sm:$0xf]
    %v1810 = vld [vmem:[%s3 + $0xc4] sm:$0xf]
    %v1811 = vld [vmem:[%s3 + $0xc8] sm:$0xf]
    %v1812 = vld [vmem:[%s3 + $0xcc] sm:$0xf]
    %v1813 = vld [vmem:[%s3 + $0xd0] sm:$0xf]
    %v1814 = vld [vmem:[%s3 + $0xd4] sm:$0xf]
    %v1815 = vld [vmem:[%s3 + $0xd8] sm:$0xf]
    %v1816 = vld [vmem:[%s3 + $0xdc] sm:$0xf]
    %v1817 = vld [vmem:[%s3 + $0xe0] sm:$0xf]
    %v1818 = vld [vmem:[%s3 + $0xe4] sm:$0xf]
    %v1819 = vld [vmem:[%s3 + $0xe8] sm:$0xf]
    %v1820 = vld [vmem:[%s3 + $0xec] sm:$0xf]
    %v1821 = vld [vmem:[%s3 + $0xf0] sm:$0xf]
    %v1822 = vld [vmem:[%s3 + $0xf4] sm:$0xf]
    %v1823 = vld [vmem:[%s3 + $0xf8] sm:$0xf]
    %v1824 = vld [vmem:[%s3 + $0xfc] sm:$0xf]
    %v1825 = vpack.c.bf16 %v1757, %v1757
    %v1826 = vpack.c.bf16 %v1758, %v1758
    %v1843 = vunpack.c.l.b16 %v1777
    %v1844 = vunpack.c.l.b16 %v1778
    %v1845 = vunpack.c.l.b16 %v1779
    %v1846 = vunpack.c.l.b16 %v1780
    %v1847 = vunpack.c.l.b16 %v1781
    %v1848 = vunpack.c.l.b16 %v1782
    %v1849 = vunpack.c.l.b16 %v1783
    %v1850 = vunpack.c.l.b16 %v1784
    %v1851 = vunpack.c.l.b16 %v1785
    %v1852 = vunpack.c.l.b16 %v1786
    %v1853 = vunpack.c.l.b16 %v1787
    %v1854 = vunpack.c.l.b16 %v1788
    %v1855 = vunpack.c.l.b16 %v1789
    %v1856 = vunpack.c.l.b16 %v1790
    %v1857 = vunpack.c.l.b16 %v1791
    %v1858 = vunpack.c.l.b16 %v1792
    %v1859 = vpack.c.b16 %v1844, %v1843
    %v1860 = vpack.c.b16 %v1846, %v1845
    %v1861 = vpack.c.b16 %v1848, %v1847
    %v1862 = vpack.c.b16 %v1850, %v1849
    %v1863 = vpack.c.b16 %v1852, %v1851
    %v1864 = vpack.c.b16 %v1854, %v1853
    %v1865 = vpack.c.b16 %v1856, %v1855
    %v1866 = vpack.c.b16 %v1858, %v1857
    %1875 = vmatpush.bf16.msra.mxu0 %v1866
    %1876 = vmatpush.bf16.msra.mxu0 %v1865
    %1877 = vmatpush.bf16.msra.mxu0 %v1864
    %1878 = vmatpush.bf16.msra.mxu0 %v1863
    %1879 = vmatpush.bf16.msra.mxu0 %v1862
    %1880 = vmatpush.bf16.msra.mxu0 %v1861
    %1881 = vmatpush.bf16.msra.mxu0 %v1860
    %1882 = vmatpush.bf16.msra.mxu0 %v1859
    %1883 = vmatmul.bf16.gmra.mxu0 %v1826
    %v1884 = vpop.f32.mrf.mxu0
    %v1885 = vadd.f32 0.0, %v1884
    %v1886 = vpop.f32.mrf.mxu0
    %1887 = vdwg.mxu0
    %v1904 = vunpack.c.l.b16 %v1761
    %v1905 = vunpack.c.l.b16 %v1762
    %v1906 = vunpack.c.l.b16 %v1763
    %v1907 = vunpack.c.l.b16 %v1764
    %v1908 = vunpack.c.l.b16 %v1765
    %v1909 = vunpack.c.l.b16 %v1766
    %v1910 = vunpack.c.l.b16 %v1767
    %v1911 = vunpack.c.l.b16 %v1768
    %v1912 = vunpack.c.l.b16 %v1769
    %v1913 = vunpack.c.l.b16 %v1770
    %v1914 = vunpack.c.l.b16 %v1771
    %v1915 = vunpack.c.l.b16 %v1772
    %v1916 = vunpack.c.l.b16 %v1773
    %v1917 = vunpack.c.l.b16 %v1774
    %v1918 = vunpack.c.l.b16 %v1775
    %v1919 = vunpack.c.l.b16 %v1776
    %v1920 = vpack.c.b16 %v1905, %v1904
    %v1921 = vpack.c.b16 %v1907, %v1906
    %v1922 = vpack.c.b16 %v1909, %v1908
    %v1923 = vpack.c.b16 %v1911, %v1910
    %v1924 = vpack.c.b16 %v1913, %v1912
    %v1925 = vpack.c.b16 %v1915, %v1914
    %v1926 = vpack.c.b16 %v1917, %v1916
    %v1927 = vpack.c.b16 %v1919, %v1918
    %1936 = vmatpush.bf16.msra.mxu0 %v1927
    %1937 = vmatpush.bf16.msra.mxu0 %v1926
    %1938 = vmatpush.bf16.msra.mxu0 %v1925
    %1939 = vmatpush.bf16.msra.mxu0 %v1924
    %1940 = vmatpush.bf16.msra.mxu0 %v1923
    %1941 = vmatpush.bf16.msra.mxu0 %v1922
    %1942 = vmatpush.bf16.msra.mxu0 %v1921
    %1943 = vmatpush.bf16.msra.mxu0 %v1920
    %1944 = vmatmul.bf16.gmra.mxu0 %v1825
    %v1945 = vpop.f32.mrf.mxu0
    %v1946 = vadd.f32 %v1885, %v1945
    %v1947 = vpop.f32.mrf.mxu0
    %1948 = vdwg.mxu0
    %v1949 = vpack.c.bf16 %v1759, %v1759
    %v1966 = vunpack.c.l.b16 %v1793
    %v1967 = vunpack.c.l.b16 %v1794
    %v1968 = vunpack.c.l.b16 %v1795
    %v1969 = vunpack.c.l.b16 %v1796
    %v1970 = vunpack.c.l.b16 %v1797
    %v1971 = vunpack.c.l.b16 %v1798
    %v1972 = vunpack.c.l.b16 %v1799
    %v1973 = vunpack.c.l.b16 %v1800
    %v1974 = vunpack.c.l.b16 %v1801
    %v1975 = vunpack.c.l.b16 %v1802
    %v1976 = vunpack.c.l.b16 %v1803
    %v1977 = vunpack.c.l.b16 %v1804
    %v1978 = vunpack.c.l.b16 %v1805
    %v1979 = vunpack.c.l.b16 %v1806
    %v1980 = vunpack.c.l.b16 %v1807
    %v1981 = vunpack.c.l.b16 %v1808
    %v1982 = vpack.c.b16 %v1967, %v1966
    %v1983 = vpack.c.b16 %v1969, %v1968
    %v1984 = vpack.c.b16 %v1971, %v1970
    %v1985 = vpack.c.b16 %v1973, %v1972
    %v1986 = vpack.c.b16 %v1975, %v1974
    %v1987 = vpack.c.b16 %v1977, %v1976
    %v1988 = vpack.c.b16 %v1979, %v1978
    %v1989 = vpack.c.b16 %v1981, %v1980
    %1998 = vmatpush.bf16.msra.mxu0 %v1989
    %1999 = vmatpush.bf16.msra.mxu0 %v1988
    %2000 = vmatpush.bf16.msra.mxu0 %v1987
    %2001 = vmatpush.bf16.msra.mxu0 %v1986
    %2002 = vmatpush.bf16.msra.mxu0 %v1985
    %2003 = vmatpush.bf16.msra.mxu0 %v1984
    %2004 = vmatpush.bf16.msra.mxu0 %v1983
    %2005 = vmatpush.bf16.msra.mxu0 %v1982
    %2006 = vmatmul.bf16.gmra.mxu0 %v1949
    %v2007 = vpop.f32.mrf.mxu0
    %v2008 = vadd.f32 0.0, %v2007
    %v2009 = vpop.f32.mrf.mxu0
    %2010 = vdwg.mxu0
    %v2011 = vadd.f32 %v1946, %v2008
    %v2012 = vpack.c.bf16 %v1760, %v1760
    %v2029 = vunpack.c.l.b16 %v1809
    %v2030 = vunpack.c.l.b16 %v1810
    %v2031 = vunpack.c.l.b16 %v1811
    %v2032 = vunpack.c.l.b16 %v1812
    %v2033 = vunpack.c.l.b16 %v1813
    %v2034 = vunpack.c.l.b16 %v1814
    %v2035 = vunpack.c.l.b16 %v1815
    %v2036 = vunpack.c.l.b16 %v1816
    %v2037 = vunpack.c.l.b16 %v1817
    %v2038 = vunpack.c.l.b16 %v1818
    %v2039 = vunpack.c.l.b16 %v1819
    %v2040 = vunpack.c.l.b16 %v1820
    %v2041 = vunpack.c.l.b16 %v1821
    %v2042 = vunpack.c.l.b16 %v1822
    %v2043 = vunpack.c.l.b16 %v1823
    %v2044 = vunpack.c.l.b16 %v1824
    %v2045 = vpack.c.b16 %v2030, %v2029
    %v2046 = vpack.c.b16 %v2032, %v2031
    %v2047 = vpack.c.b16 %v2034, %v2033
    %v2048 = vpack.c.b16 %v2036, %v2035
    %v2049 = vpack.c.b16 %v2038, %v2037
    %v2050 = vpack.c.b16 %v2040, %v2039
    %v2051 = vpack.c.b16 %v2042, %v2041
    %v2052 = vpack.c.b16 %v2044, %v2043
    %2061 = vmatpush.bf16.msra.mxu0 %v2052
    %2062 = vmatpush.bf16.msra.mxu0 %v2051
    %2063 = vmatpush.bf16.msra.mxu0 %v2050
    %2064 = vmatpush.bf16.msra.mxu0 %v2049
    %2065 = vmatpush.bf16.msra.mxu0 %v2048
    %2066 = vmatpush.bf16.msra.mxu0 %v2047
    %2067 = vmatpush.bf16.msra.mxu0 %v2046
    %2068 = vmatpush.bf16.msra.mxu0 %v2045
    %2069 = vmatmul.bf16.gmra.mxu0 %v2012
    %v2070 = vpop.f32.mrf.mxu0
    %v2071 = vadd.f32 0.0, %v2070
    %v2072 = vpop.f32.mrf.mxu0
    %2073 = vdwg.mxu0
    %v2074 = vadd.f32 %v2011, %v2071
    %v2075 = vld [vmem:[%s4] sm:$0x1]
    %v2077 = vperm.slane %v2075, 0
    %v2079 = vadd.f32 %v2074, %v2077
    %v2080 = vmax.f32 %v2079, 0.0
    %v2081 = vpack.c.bf16 %v2080, %v2080
    %v2082 = vld [vmem:[%s5] sm:$0xf]
    %v2083 = vld [vmem:[%s5 + $0x4] sm:$0xf]
    %v2084 = vld [vmem:[%s5 + $0x8] sm:$0xf]
    %v2085 = vld [vmem:[%s5 + $0xc] sm:$0xf]
    %v2086 = vld [vmem:[%s5 + $0x10] sm:$0xf]
    %v2087 = vld [vmem:[%s5 + $0x14] sm:$0xf]
    %v2088 = vld [vmem:[%s5 + $0x18] sm:$0x1]
    %v2089 = vld [vmem:[%s6] sm:$0x1]
    %v2091 = vperm.slane %v2089, 0
    %v2100 = vunpack.c.l.b16 %v2082
    %v2101 = vunpack.c.l.b16 %v2083
    %v2102 = vunpack.c.l.b16 %v2084
    %v2103 = vunpack.c.l.b16 %v2085
    %v2104 = vunpack.c.l.b16 %v2086
    %v2105 = vunpack.c.l.b16 %v2087
    %v2106 = vunpack.c.l.b16 %v2088
    %v2107 = vpack.c.b16 %v2101, %v2100
    %v2108 = vpack.c.b16 %v2103, %v2102
    %v2109 = vpack.c.b16 %v2105, %v2104
    %v2110 = vpack.c.b16 %v2106, %v2106
    %vm2114 = vcmask 408576
    %v2116 = vsel %vm2114, %v2081, 0
    %vm2118 = vcmask 1040384
    %v2120 = vsel %vm2118, %v2110, 0
    %2122 = vmatpush.bf16.msra.mxu0 0
    %2123 = vmatpush.bf16.msra.mxu0 0
    %2124 = vmatpush.bf16.msra.mxu0 0
    %2125 = vmatpush.bf16.msra.mxu0 0
    %2126 = vmatpush.bf16.msra.mxu0 %v2120
    %2127 = vmatpush.bf16.msra.mxu0 %v2109
    %2128 = vmatpush.bf16.msra.mxu0 %v2108
    %2129 = vmatpush.bf16.msra.mxu0 %v2107
    %2130 = vmatmul.bf16.gmra.mxu0 %v2116
    %v2131 = vpop.f32.mrf.mxu0
    %v2132 = vadd.f32 %v2091, %v2131
    %v2133 = vpop.f32.mrf.mxu0
    %2134 = vdwg.mxu0
    %vm2135 = vcmask 80896
    %v2136 = vsel %vm2135, %v2132, -inf
    %2137 = vmax.xlane.f32.xlu0 %v2136
    %v2138 = vpop.xlane.xlu0 %2137
    %v2139 = vsub.f32 %v2132, %v2138
    %v2140 = vmul.f32 %v2139, 1.442695
    %v2141 = vpow.pop %v2140
    %v2142 = vsel %vm2135, %v2141, 0.0
    %2143 = vadd.xlane.f32.xlu0 %v2142
    %v2144 = vpop.xlane.xlu0 %2143
    %v2145 = vrcp.pop %v2144
    %v2146 = vmul.f32 %v2144, %v2145
    %v2147 = vsub.f32 1.0, %v2146
    %v2148 = vmul.f32 %v2145, %v2147
    %v2149 = vadd.f32 %v2145, %v2148
    %vm2150 = vweird.f32 %v2144
    %vm2151 = vweird.f32 %v2145
    %vm2152 = vmor %vm2150, %vm2151
    %v2153 = vsel %vm2152, %v2145, %v2149
    %v2154 = vand.u32 2147483647, %v2144
    %vm2155 = vcmp.eq.f32.partialorder %v2154, 8.507059e+37
    %v2156 = vand.u32 %v2144, 2147483648
    %v2157 = vor.u32 1.1754944e-38, %v2156
    %v2158 = vsel %vm2155, %v2157, %v2153
    %v2159 = vmul.f32 %v2141, %v2158
    %2160 = vst.msk [vmem:[%s7] sm:$0xff] %vm2135, %v2159
    // Predicated region
    $region34: #{conv_classifier_forward.3} parent=1 // pred_check
      _
    $region35: #{conv_classifier_forward.3} parent=1 // pred_check_branch
      %2162 = sbr.rel (0) target = $region37
    $region36: #{conv_classifier_forward.3} parent=1 // pred_region
      _
    $region37: #{conv_classifier_forward.3} parent=1 // pred_fallthru
      _
    // Predicated region
    $region38: #{conv_classifier_forward.3} parent=1 // pred_check
      _
    $region39: #{conv_classifier_forward.3} parent=1 // pred_check_branch
      %2164 = sbr.rel (0) target = $region41
    $region40: #{conv_classifier_forward.3} parent=1 // pred_region
      _
    $region41: #{conv_classifier_forward.3} parent=1 // pred_fallthru
      _
    %2165 = vsyncpa [#allocation3], 1

</llo_original>
